<compile_context>
chip_gen: v5e
topology: v5e:2x2
jax: 0.10.0
libtpu: 0.0.40
codegen_flags: <defaults>
</compile_context>

<pallas_src>
import functools
import math

import jax
import jax.numpy as jnp
from jax import lax
from jax.experimental import pallas as pl
from jax.experimental.pallas import tpu as pltpu

_NEG_INF = -1e18

_PARAM_ORDER = ("ln1_w", "ln1_b", "wq", "bq", "wk", "bk", "wv", "bv",
                "wo", "bo", "ln2_w", "ln2_b", "w1", "b1", "w2", "b2")


# ---------------------------------------------------------------------------
# Capability / hardware probes
# ---------------------------------------------------------------------------
@functools.lru_cache(maxsize=1)
def _single_buffer_supported():
    """Upfront probe: does this jax/mosaic build accept pl.Buffered(buffer_count=1)
    on a BlockSpec?  Probed once on a throwaway kernel so an unrelated runtime
    error in the real kernel can never flip the flag."""
    if not hasattr(pl, "Buffered"):
        return False

    def probe(x_ref, o_ref):
        o_ref[...] = x_ref[...] + 1.0

    try:
        spec = pl.BlockSpec((8, 128), lambda i: (0, 0),
                            pipeline_mode=pl.Buffered(buffer_count=1))
        out = pl.pallas_call(
            probe,
            out_shape=jax.ShapeDtypeStruct((8, 128), jnp.float32),
            grid=(1,),
            in_specs=[spec],
            out_specs=pl.BlockSpec((8, 128), lambda i: (0, 0)),
        )(jnp.zeros((8, 128), jnp.float32))
        jax.block_until_ready(out)
        return True
    except Exception:
        return False


def _vmem_capacity_bytes():
    try:
        cap = int(pltpu.get_tpu_info().vmem_capacity_bytes)
        if cap > 0:
            return cap
    except Exception:
        pass
    return 64 * 1024 * 1024            # conservative default (v7x per-TC VMEM)


def _vmem_limit_bytes():
    cap = _vmem_capacity_bytes()
    if cap >= 96 * 1024 * 1024:        # v5e / v6e: 128 MiB physical VMEM
        return min(cap - 16 * 1024 * 1024, 104 * 1024 * 1024)
    # v7x: 64 MiB per TensorCore -> stay well below the physical cap
    return min(48 * 1024 * 1024, (cap * 3) // 4)


def _layer_weight_bytes(D, d_ff):
    # bf16 matmul weights + f32 biases / LN params (incl. fused final LN).
    return (4 * D * D + 2 * D * d_ff) * 2 + (12 * D + d_ff) * 4


def _pick_q_block(S, D, d_ff, vmem_budget, weight_bufs, invariant_bufs,
                  max_block=512):
    """Largest q tile (multiple of 8, divisor of S, <= max_block) whose per-step
    working set fits the scoped-VMEM budget of this TPU generation."""
    fixed = (invariant_bufs * (S * D * 4 + S * 4)          # x_full + mask streams
             + weight_bufs * _layer_weight_bytes(D, d_ff)  # layer weights
             + 2 * S * D * 2)                              # bf16 K/V scratch
    budget = int(vmem_budget * 0.9)
    cands = [c for c in range(min(max_block, S), 7, -8) if S % c == 0]
    if not cands:
        cands = [S]
    for tq in cands:
        work = (2 * tq * D * 4          # double-buffered output tile
                + 2 * tq * S * 4        # scores + exp(scores), f32
                + tq * d_ff * 4         # FFN hidden
                + 6 * tq * D * 4)       # q / xn / ctx / residual temporaries
        if fixed + work <= budget:
            return tq
    return cands[-1]


# ---------------------------------------------------------------------------
# Kernels
# ---------------------------------------------------------------------------
def _layer_norm(x, w, b, eps=1e-6):
    mean = jnp.mean(x, axis=-1, keepdims=True)
    var = jnp.mean((x - mean) ** 2, axis=-1, keepdims=True)
    return (x - mean) * lax.rsqrt(var + eps) * w + b


def encoder_layer_kernel(heads, q_block, apply_final_ln,
                         x_ref, mask_ref,
                         ln1_w, ln1_b,
                         wq, bq, wk, bk, wv, bv, wo, bo,
                         ln2_w, ln2_b,
                         w1, b1, w2, b2,
                         fln_w, fln_b,
                         out_ref,
                         k_scr, v_scr):
    x_view = x_ref.at[0]                 # [S, D]  f32 (full sequence, resident)
    mask = mask_ref[0]                   # [1, S]  f32 : 1.0 == padded key position
    S, D = x_view.shape
    dh = D // heads
    scale = 1.0 / math.sqrt(dh)
    t = pl.program_id(1)

    # --- once per batch row: full-sequence pre-LN + K/V projections -> VMEM ---
    # (q-tile grid axis is "arbitrary", so the bf16 scratch persists across t)
    @pl.when(t == 0)
    def _():
        xn_kv = _layer_norm(x_view[...], ln1_w[...], ln1_b[...]).astype(jnp.bfloat16)
        k_full = jnp.dot(xn_kv, wk[...], preferred_element_type=jnp.float32) + bk[...]
        v_full = jnp.dot(xn_kv, wv[...], preferred_element_type=jnp.float32) + bv[...]
        k_scr[...] = k_full.astype(jnp.bfloat16)
        v_scr[...] = v_full.astype(jnp.bfloat16)

    # Mask bias computed once per grid step (no per-head compare+select).
    mask_bias = jnp.where(mask > 0.5, _NEG_INF, 0.0)        # [1, S] f32

    # --- query tile sliced out of the resident full-sequence block ---
    q_start = pl.multiple_of(t * q_block, q_block)
    x_q = x_view[pl.ds(q_start, q_block), :]                # [TQ, D] f32
    xn_q = _layer_norm(x_q, ln1_w[...], ln1_b[...])
    q_full = jnp.dot(xn_q.astype(jnp.bfloat16), wq[...],
                     preferred_element_type=jnp.float32) + bq[...]   # [TQ, D]

    k_all = k_scr[...]                                      # [S, D] bf16
    v_all = v_scr[...]                                      # [S, D] bf16

    # --- multi-head SDPA: only the score math is per head (static unroll, H<=8
    #     typical; heavier H should move to a fori_loop to bound live ranges) ---
    ctx_heads = []
    for h in range(heads):
        lo = h * dh
        q_h = (q_full[:, lo:lo + dh] * scale).astype(jnp.bfloat16)   # [TQ, dh]
        k_h = k_all[:, lo:lo + dh]                                   # [S, dh]
        v_h = v_all[:, lo:lo + dh]                                   # [S, dh]

        s = lax.dot_general(q_h, k_h, (((1,), (1,)), ((), ())),
                            preferred_element_type=jnp.float32)      # [TQ, S]
        s = s + mask_bias
        m = jnp.max(s, axis=-1, keepdims=True)
        p = jnp.exp(s - m)                                           # unnormalized
        l = jnp.sum(p, axis=-1, keepdims=True)                       # [TQ, 1]

        ctx = jnp.dot(p.astype(jnp.bfloat16), v_h,
                      preferred_element_type=jnp.float32)            # [TQ, dh]
        # Deferred softmax normalization on the small [TQ, dh] result (EUP recip).
        ctx_heads.append(ctx * pl.reciprocal(l, approx=True))

    ctx_all = jnp.concatenate(ctx_heads, axis=-1)                    # [TQ, D]
    # Single full-width output projection (vs. per-head narrow-N GEMMs).
    attn = jnp.dot(ctx_all.astype(jnp.bfloat16), wo[...],
                   preferred_element_type=jnp.float32) + bo[...]
    out1 = attn + x_q

    # --- position-wise feed forward (pre-LN, residual inside) ---
    yn = _layer_norm(out1, ln2_w[...], ln2_b[...])
    hidden = jnp.maximum(
        jnp.dot(yn.astype(jnp.bfloat16), w1[...],
                preferred_element_type=jnp.float32) + b1[...], 0.0)
    ffn = jnp.dot(hidden.astype(jnp.bfloat16), w2[...],
                  preferred_element_type=jnp.float32) + b2[...]
    out = ffn + out1

    if apply_final_ln:        # final encoder LayerNorm fused into the last layer
        out = _layer_norm(out, fln_w[...], fln_b[...])
    out_ref[0] = out.astype(out_ref.dtype)


def final_ln_kernel(x_ref, w_ref, b_ref, out_ref):
    out_ref[0] = _layer_norm(x_ref[0], w_ref[...], b_ref[...])


# ---------------------------------------------------------------------------
# Wrappers
# ---------------------------------------------------------------------------
def _prep_layer_params(params):
    """Host-side: cast matmul weights to bf16 (half the DMA bytes / weight VMEM);
    keep LN params and biases in f32."""
    bf = lambda w: w.astype(jnp.bfloat16)
    prepped = {
        "ln1_w": params["ln1_w"], "ln1_b": params["ln1_b"],
        "wq": bf(params["wq"]), "bq": params["bq"],
        "wk": bf(params["wk"]), "bk": params["bk"],
        "wv": bf(params["wv"]), "bv": params["bv"],
        "wo": bf(params["wo"]), "bo": params["bo"],
        "ln2_w": params["ln2_w"], "ln2_b": params["ln2_b"],
        "w1": bf(params["w1"]), "b1": params["b1"],
        "w2": bf(params["w2"]), "b2": params["b2"],
    }
    return [prepped[name] for name in _PARAM_ORDER]


def _cost_estimate(B, S, D, d_ff, heads):
    flops = 2 * B * S * D * D * 4           # Q, K, V, O projections (once each)
    flops += 4 * B * S * S * D              # QK^T + PV over all heads
    flops += 4 * B * S * D * d_ff           # FFN
    transcendentals = B * heads * S * S + 6 * B * S
    bytes_accessed = 2 * B * S * D * 4 + B * S * 4 + _layer_weight_bytes(D, d_ff)
    return pl.CostEstimate(flops=int(flops),
                           transcendentals=int(transcendentals),
                           bytes_accessed=int(bytes_accessed))


def run_encoder_layer(x, mask, params, heads, fln_w, fln_b, *,
                      apply_final_ln=False, q_block=None):
    B, S, D = x.shape
    assert D % heads == 0, "d_model must be divisible by heads"
    d_ff = params["w1"].shape[1]

    single_buf = _single_buffer_supported()
    invariant_bufs = 1 if single_buf else 2
    weight_bufs = 1 if single_buf else 2
    vmem_limit = _vmem_limit_bytes()

    if q_block is None:
        q_block = _pick_q_block(S, D, d_ff, vmem_limit, weight_bufs, invariant_bufs)
    assert S % q_block == 0 and (q_block % 8 == 0 or q_block == S)
    n_q = S // q_block

    plist = _prep_layer_params(params) + [fln_w, fln_b]
    kernel = functools.partial(encoder_layer_kernel, heads, q_block, apply_final_ln)

    def invariant(shape, index_map):
        # Grid-invariant (along t) blocks: single pipeline buffer when supported.
        kwargs = {}
        if single_buf:
            kwargs["pipeline_mode"] = pl.Buffered(buffer_count=1)
        return pl.BlockSpec(shape, index_map, **kwargs)

    x_full_spec = invariant((1, S, D), lambda b, t: (b, 0, 0))
    mask_spec = invariant((1, 1, S), lambda b, t: (b, 0, 0))
    param_specs = [invariant(p.shape, lambda b, t, _n=p.ndim: (0,) * _n)
                   for p in plist]
    out_spec = pl.BlockSpec((1, q_block, D), lambda b, t: (b, t, 0))

    return pl.pallas_call(
        kernel,
        out_shape=jax.ShapeDtypeStruct((B, S, D), jnp.float32),
        grid=(B, n_q),
        in_specs=[x_full_spec, mask_spec] + param_specs,
        out_specs=out_spec,
        scratch_shapes=[pltpu.VMEM((S, D), jnp.bfloat16),    # K (post-LN, projected)
                        pltpu.VMEM((S, D), jnp.bfloat16)],   # V
        compiler_params=pltpu.CompilerParams(
            # q-tile axis must be "arbitrary" so the K/V scratch persists across it.
            dimension_semantics=("parallel", "arbitrary"),
            vmem_limit_bytes=vmem_limit),
        cost_estimate=_cost_estimate(B, S, D, d_ff, heads),
    )(x, mask, *plist)


def run_final_layer_norm(x, w, b):
    # Only used for the degenerate num_layers == 0 case (normally fused).
    B, S, D = x.shape
    return pl.pallas_call(
        final_ln_kernel,
        out_shape=jax.ShapeDtypeStruct((B, S, D), jnp.float32),
        grid=(B,),
        in_specs=[pl.BlockSpec((1, S, D), lambda i: (i, 0, 0)),
                  pl.BlockSpec(w.shape, lambda i: (0, 0)),
                  pl.BlockSpec(b.shape, lambda i: (0, 0))],
        out_specs=pl.BlockSpec((1, S, D), lambda i: (i, 0, 0)),
        compiler_params=pltpu.CompilerParams(dimension_semantics=("parallel",)),
    )(x, w, b)


def onmt_encoder_pallas(src, mask, layer_params, final_ln_w, final_ln_b, heads,
                        q_block=None):
    out = src
    n = len(layer_params)
    if n == 0:
        return run_final_layer_norm(out, final_ln_w, final_ln_b)
    for i, params in enumerate(layer_params):
        out = run_encoder_layer(out, mask, params, heads, final_ln_w, final_ln_b,
                                apply_final_ln=(i == n - 1), q_block=q_block)
    return out


# ---------------------------------------------------------------------------
# Pure-JAX reference (mirrors the PyTorch forward exactly, f32 throughout)
# ---------------------------------------------------------------------------
def _ref_ln(x, w, b, eps=1e-6):
    m = jnp.mean(x, axis=-1, keepdims=True)
    v = jnp.mean((x - m) ** 2, axis=-1, keepdims=True)
    return (x - m) / jnp.sqrt(v + eps) * w + b


def onmt_encoder_reference(src, mask, layer_params, final_ln_w, final_ln_b, heads):
    B, S, D = src.shape
    dh = D // heads
    out = src
    for p in layer_params:
        xn = _ref_ln(out, p["ln1_w"], p["ln1_b"])
        q = xn @ p["wq"] + p["bq"]
        k = xn @ p["wk"] + p["bk"]
        v = xn @ p["wv"] + p["bv"]
        q = q.reshape(B, S, heads, dh).transpose(0, 2, 1, 3) / jnp.sqrt(jnp.float32(dh))
        k = k.reshape(B, S, heads, dh).transpose(0, 2, 1, 3)
        v = v.reshape(B, S, heads, dh).transpose(0, 2, 1, 3)
        scores = jnp.einsum("bhqd,bhkd->bhqk", q, k)
        scores = jnp.where(mask[:, None, :, :] > 0.5, -1e18, scores)
        attn = jax.nn.softmax(scores, axis=-1)
        ctx = jnp.einsum("bhqk,bhkd->bhqd", attn, v)
        ctx = ctx.transpose(0, 2, 1, 3).reshape(B, S, D)
        out1 = ctx @ p["wo"] + p["bo"] + out
        yn = _ref_ln(out1, p["ln2_w"], p["ln2_b"])
        ffn = jnp.maximum(yn @ p["w1"] + p["b1"], 0.0) @ p["w2"] + p["b2"]
        out = ffn + out1
    return _ref_ln(out, final_ln_w, final_ln_b)


# ---------------------------------------------------------------------------
# Deterministic parameter construction (shapes from ONMT TransformerEncoderLayer)
# ---------------------------------------------------------------------------
def init_layer_params(key, d_model, d_ff):
    ks = jax.random.split(key, 12)

    def lin(k, din, dout):
        return jax.random.normal(k, (din, dout), jnp.float32) * 0.02

    def vec(k, d):
        return jax.random.normal(k, (1, d), jnp.float32) * 0.02

    return {
        "ln1_w": jnp.ones((1, d_model), jnp.float32) + vec(ks[0], d_model),
        "ln1_b": vec(ks[1], d_model),
        "wq": lin(ks[2], d_model, d_model), "bq": vec(ks[3], d_model),
        "wk": lin(ks[4], d_model, d_model), "bk": vec(ks[5], d_model),
        "wv": lin(ks[6], d_model, d_model), "bv": vec(ks[7], d_model),
        "wo": lin(ks[8], d_model, d_model), "bo": jnp.zeros((1, d_model), jnp.float32),
        "ln2_w": jnp.ones((1, d_model), jnp.float32) + vec(ks[9], d_model),
        "ln2_b": vec(ks[10], d_model),
        "w1": lin(ks[11], d_model, d_ff), "b1": jnp.zeros((1, d_ff), jnp.float32),
        "w2": lin(jax.random.fold_in(key, 99), d_ff, d_model),
        "b2": jnp.zeros((1, d_model), jnp.float32),
    }


if __name__ == "__main__":
    # Small but lane-aligned config (D, d_ff multiples of 128; S, q_block multiples of 8).
    NUM_LAYERS, D_MODEL, HEADS, D_FF = 2, 128, 4, 256
    B, S, Q_BLOCK = 2, 64, 32          # Q_BLOCK < S exercises the K/V-scratch reuse path

    root = jax.random.PRNGKey(0)
    k_src, k_ln, *k_layers = jax.random.split(root, 2 + NUM_LAYERS)

    src = jax.random.normal(k_src, (B, S, D_MODEL), jnp.float32)
    lengths = jnp.array([S, S - 16], jnp.int32)                  # simple padding mask
    mask = (jnp.arange(S)[None, :] >= lengths[:, None]).astype(jnp.float32)
    mask = mask.reshape(B, 1, S)

    layer_params = [init_layer_params(k_layers[i], D_MODEL, D_FF)
                    for i in range(NUM_LAYERS)]
    final_ln_w = jnp.ones((1, D_MODEL), jnp.float32) \
        + jax.random.normal(k_ln, (1, D_MODEL), jnp.float32) * 0.02
    final_ln_b = jax.random.normal(jax.random.fold_in(k_ln, 1),
                                   (1, D_MODEL), jnp.float32) * 0.02

    out = onmt_encoder_pallas(src, mask, layer_params, final_ln_w, final_ln_b,
                              HEADS, q_block=Q_BLOCK)
    out = jax.block_until_ready(out)

    ref = onmt_encoder_reference(src, mask, layer_params, final_ln_w, final_ln_b, HEADS)
    ref = jax.block_until_ready(ref)

    assert out.shape == (B, S, D_MODEL) and out.dtype == jnp.float32
    max_err = float(jnp.max(jnp.abs(out - ref)))
    assert jnp.allclose(out, ref, rtol=2e-2, atol=2e-2), \
        f"mismatch vs reference (max abs err {max_err})"
    print("KERNEL_OK")
</pallas_src>

<mosaic_0001>
module attributes {stable_mosaic.version = 11 : i64} {
  func.func @probe(%arg0: i32, %arg1: memref<8x128xf32, #tpu.memory_space<vmem>>, %arg2: memref<8x128xf32, #tpu.memory_space<vmem>>) attributes {dimension_semantics = [#tpu.dimension_semantics<arbitrary>], iteration_bounds = array<i64: 1>, scalar_prefetch = 0 : i64, scratch_operands = 0 : i64, tpu.core_type = #tpu.core_type<tc>, window_params = [{pipeline_mode = #tpu.pipeline_mode<synchronous>, transform_indices = @transform_0, window_bounds = array<i64: 8, 128>}, {pipeline_mode = #tpu.pipeline_mode<synchronous>, transform_indices = @transform_1, window_bounds = array<i64: 8, 128>}]} {
    %c0 = arith.constant 0 : index
    %c0_0 = arith.constant 0 : index
    %0 = vector.load %arg1[%c0, %c0_0] : memref<8x128xf32, #tpu.memory_space<vmem>>, vector<8x128xf32>
    %cst = arith.constant 1.000000e+00 : f32
    %1 = vector.broadcast %cst : f32 to vector<8x128xf32>
    %2 = arith.addf %0, %1 : vector<8x128xf32>
    %c0_1 = arith.constant 0 : index
    %c0_2 = arith.constant 0 : index
    %3 = vector.load %arg2[%c0_1, %c0_2] : memref<8x128xf32, #tpu.memory_space<vmem>>, vector<8x128xf32>
    tpu.vector_store %arg2[%c0_1, %c0_2], %2 {strides = array<i32>} : memref<8x128xf32, #tpu.memory_space<vmem>>, vector<8x128xf32>,
    return
  }
  func.func @transform_0(%arg0: i32) -> (i32, i32) {
    %c0_i32 = arith.constant 0 : i32
    %c0_i32_0 = arith.constant 0 : i32
    %c0_i32_1 = arith.constant 0 : i32
    return %c0_i32, %c0_i32_0 : i32, i32
  }
  func.func @transform_1(%arg0: i32) -> (i32, i32) {
    %c0_i32 = arith.constant 0 : i32
    %c0_i32_0 = arith.constant 0 : i32
    %c0_i32_1 = arith.constant 0 : i32
    return %c0_i32, %c0_i32_0 : i32, i32
  }
}

module attributes {stable_mosaic.version = 11 : i64} {
  func.func @encoder_layer_kernel(%arg0: i32, %arg1: i32, %arg2: memref<1x64x128xf32, #tpu.memory_space<vmem>>, %arg3: memref<1x1x64xf32, #tpu.memory_space<vmem>>, %arg4: memref<1x128xf32, #tpu.memory_space<vmem>>, %arg5: memref<1x128xf32, #tpu.memory_space<vmem>>, %arg6: memref<128x128xbf16, #tpu.memory_space<vmem>>, %arg7: memref<1x128xf32, #tpu.memory_space<vmem>>, %arg8: memref<128x128xbf16, #tpu.memory_space<vmem>>, %arg9: memref<1x128xf32, #tpu.memory_space<vmem>>, %arg10: memref<128x128xbf16, #tpu.memory_space<vmem>>, %arg11: memref<1x128xf32, #tpu.memory_space<vmem>>, %arg12: memref<128x128xbf16, #tpu.memory_space<vmem>>, %arg13: memref<1x128xf32, #tpu.memory_space<vmem>>, %arg14: memref<1x128xf32, #tpu.memory_space<vmem>>, %arg15: memref<1x128xf32, #tpu.memory_space<vmem>>, %arg16: memref<128x256xbf16, #tpu.memory_space<vmem>>, %arg17: memref<1x256xf32, #tpu.memory_space<vmem>>, %arg18: memref<256x128xbf16, #tpu.memory_space<vmem>>, %arg19: memref<1x128xf32, #tpu.memory_space<vmem>>, %arg20: memref<1x128xf32, #tpu.memory_space<vmem>>, %arg21: memref<1x128xf32, #tpu.memory_space<vmem>>, %arg22: memref<1x32x128xf32, #tpu.memory_space<vmem>>, %arg23: memref<64x128xbf16, #tpu.memory_space<vmem>>, %arg24: memref<64x128xbf16, #tpu.memory_space<vmem>>) attributes {dimension_semantics = [#tpu.dimension_semantics<parallel>, #tpu.dimension_semantics<arbitrary>], iteration_bounds = array<i64: 2, 2>, scalar_prefetch = 0 : i64, scratch_operands = 2 : i64, tpu.core_type = #tpu.core_type<tc>, window_params = [{transform_indices = @transform_0, window_bounds = array<i64: 1, 64, 128>}, {transform_indices = @transform_1, window_bounds = array<i64: 1, 1, 64>}, {pipeline_mode = #tpu.pipeline_mode<synchronous>, transform_indices = @transform_2, window_bounds = array<i64: 1, 128>}, {pipeline_mode = #tpu.pipeline_mode<synchronous>, transform_indices = @transform_3, window_bounds = array<i64: 1, 128>}, {pipeline_mode = #tpu.pipeline_mode<synchronous>, transform_indices = @transform_4, window_bounds = array<i64: 128, 128>}, {pipeline_mode = #tpu.pipeline_mode<synchronous>, transform_indices = @transform_5, window_bounds = array<i64: 1, 128>}, {pipeline_mode = #tpu.pipeline_mode<synchronous>, transform_indices = @transform_6, window_bounds = array<i64: 128, 128>}, {pipeline_mode = #tpu.pipeline_mode<synchronous>, transform_indices = @transform_7, window_bounds = array<i64: 1, 128>}, {pipeline_mode = #tpu.pipeline_mode<synchronous>, transform_indices = @transform_8, window_bounds = array<i64: 128, 128>}, {pipeline_mode = #tpu.pipeline_mode<synchronous>, transform_indices = @transform_9, window_bounds = array<i64: 1, 128>}, {pipeline_mode = #tpu.pipeline_mode<synchronous>, transform_indices = @transform_10, window_bounds = array<i64: 128, 128>}, {pipeline_mode = #tpu.pipeline_mode<synchronous>, transform_indices = @transform_11, window_bounds = array<i64: 1, 128>}, {pipeline_mode = #tpu.pipeline_mode<synchronous>, transform_indices = @transform_12, window_bounds = array<i64: 1, 128>}, {pipeline_mode = #tpu.pipeline_mode<synchronous>, transform_indices = @transform_13, window_bounds = array<i64: 1, 128>}, {pipeline_mode = #tpu.pipeline_mode<synchronous>, transform_indices = @transform_14, window_bounds = array<i64: 128, 256>}, {pipeline_mode = #tpu.pipeline_mode<synchronous>, transform_indices = @transform_15, window_bounds = array<i64: 1, 256>}, {pipeline_mode = #tpu.pipeline_mode<synchronous>, transform_indices = @transform_16, window_bounds = array<i64: 256, 128>}, {pipeline_mode = #tpu.pipeline_mode<synchronous>, transform_indices = @transform_17, window_bounds = array<i64: 1, 128>}, {pipeline_mode = #tpu.pipeline_mode<synchronous>, transform_indices = @transform_18, window_bounds = array<i64: 1, 128>}, {pipeline_mode = #tpu.pipeline_mode<synchronous>, transform_indices = @transform_19, window_bounds = array<i64: 1, 128>}, {transform_indices = @transform_20, window_bounds = array<i64: 1, 32, 128>}]} {
    %c0 = arith.constant 0 : index
    %c0_0 = arith.constant 0 : index
    %c0_1 = arith.constant 0 : index
    %0 = vector.load %arg3[%c0, %c0_0, %c0_1] : memref<1x1x64xf32, #tpu.memory_space<vmem>>, vector<1x1x64xf32>
    %1 = vector.shape_cast %0 : vector<1x1x64xf32> to vector<1x64xf32>
    %c0_i32 = arith.constant 0 : i32
    %2 = arith.cmpi eq, %arg1, %c0_i32 : i32
    %3 = arith.extui %2 : i1 to i32
    %c0_i32_2 = arith.constant 0 : i32
    %c0_i32_3 = arith.constant 0 : i32
    %4 = arith.cmpi ne, %3, %c0_i32_3 : i32
    scf.if %4 {
      %182 = arith.index_cast %c0_i32_2 : i32 to index
      %c0_76 = arith.constant 0 : index
      %c0_77 = arith.constant 0 : index
      %183 = vector.load %arg2[%182, %c0_76, %c0_77] : memref<1x64x128xf32, #tpu.memory_space<vmem>>, vector<1x64x128xf32>
      %184 = vector.shape_cast %183 : vector<1x64x128xf32> to vector<64x128xf32>
      %c0_78 = arith.constant 0 : index
      %c0_79 = arith.constant 0 : index
      %185 = vector.load %arg4[%c0_78, %c0_79] : memref<1x128xf32, #tpu.memory_space<vmem>>, vector<1x128xf32>
      %c0_80 = arith.constant 0 : index
      %c0_81 = arith.constant 0 : index
      %186 = vector.load %arg5[%c0_80, %c0_81] : memref<1x128xf32, #tpu.memory_space<vmem>>, vector<1x128xf32>
      %cst_82 = arith.constant dense<0.000000e+00> : vector<64xf32>
      %187 = vector.multi_reduction <add>, %184, %cst_82 [1] : vector<64x128xf32> to vector<64xf32>
      %188 = vector.shape_cast %187 : vector<64xf32> to vector<64x1xf32>
      %cst_83 = arith.constant 1.280000e+02 : f32
      %189 = vector.broadcast %cst_83 : f32 to vector<64x1xf32>
      %190 = arith.divf %188, %189 : vector<64x1xf32>
      %191 = vector.broadcast %190 : vector<64x1xf32> to vector<64x128xf32>
      %192 = arith.subf %184, %191 : vector<64x128xf32>
      %193 = arith.mulf %192, %192 : vector<64x128xf32>
      %cst_84 = arith.constant dense<0.000000e+00> : vector<64xf32>
      %194 = vector.multi_reduction <add>, %193, %cst_84 [1] : vector<64x128xf32> to vector<64xf32>
      %195 = vector.shape_cast %194 : vector<64xf32> to vector<64x1xf32>
      %cst_85 = arith.constant 1.280000e+02 : f32
      %196 = vector.broadcast %cst_85 : f32 to vector<64x1xf32>
      %197 = arith.divf %195, %196 : vector<64x1xf32>
      %198 = vector.broadcast %190 : vector<64x1xf32> to vector<64x128xf32>
      %199 = arith.subf %184, %198 : vector<64x128xf32>
      %cst_86 = arith.constant 9.99999997E-7 : f32
      %200 = vector.broadcast %cst_86 : f32 to vector<64x1xf32>
      %201 = arith.addf %197, %200 : vector<64x1xf32>
      %202 = math.rsqrt %201 : vector<64x1xf32>
      %203 = vector.broadcast %202 : vector<64x1xf32> to vector<64x128xf32>
      %204 = arith.mulf %199, %203 : vector<64x128xf32>
      %205 = vector.broadcast %185 : vector<1x128xf32> to vector<64x128xf32>
      %206 = arith.mulf %204, %205 : vector<64x128xf32>
      %207 = vector.broadcast %186 : vector<1x128xf32> to vector<64x128xf32>
      %208 = arith.addf %206, %207 : vector<64x128xf32>
      %209 = arith.truncf %208 : vector<64x128xf32> to vector<64x128xbf16>
      %c0_87 = arith.constant 0 : index
      %c0_88 = arith.constant 0 : index
      %210 = vector.load %arg8[%c0_87, %c0_88] : memref<128x128xbf16, #tpu.memory_space<vmem>>, vector<128x128xbf16>
      %cst_89 = arith.constant dense<0.000000e+00> : vector<64x128xf32>
      %211 = tpu.matmul %209, %210, %cst_89 {dimension_numbers = #tpu.dot_dimension_numbers<[1], [0], [0], [1], [0, 0, 1, 1], [], []>} : vector<64x128xbf16>, vector<128x128xbf16>, vector<64x128xf32> -> vector<64x128xf32>
      %c0_90 = arith.constant 0 : index
      %c0_91 = arith.constant 0 : index
      %212 = vector.load %arg9[%c0_90, %c0_91] : memref<1x128xf32, #tpu.memory_space<vmem>>, vector<1x128xf32>
      %213 = vector.broadcast %212 : vector<1x128xf32> to vector<64x128xf32>
      %214 = arith.addf %211, %213 : vector<64x128xf32>
      %c0_92 = arith.constant 0 : index
      %c0_93 = arith.constant 0 : index
      %215 = vector.load %arg10[%c0_92, %c0_93] : memref<128x128xbf16, #tpu.memory_space<vmem>>, vector<128x128xbf16>
      %cst_94 = arith.constant dense<0.000000e+00> : vector<64x128xf32>
      %216 = tpu.matmul %209, %215, %cst_94 {dimension_numbers = #tpu.dot_dimension_numbers<[1], [0], [0], [1], [0, 0, 1, 1], [], []>} : vector<64x128xbf16>, vector<128x128xbf16>, vector<64x128xf32> -> vector<64x128xf32>
      %c0_95 = arith.constant 0 : index
      %c0_96 = arith.constant 0 : index
      %217 = vector.load %arg11[%c0_95, %c0_96] : memref<1x128xf32, #tpu.memory_space<vmem>>, vector<1x128xf32>
      %218 = vector.broadcast %217 : vector<1x128xf32> to vector<64x128xf32>
      %219 = arith.addf %216, %218 : vector<64x128xf32>
      %220 = arith.truncf %214 : vector<64x128xf32> to vector<64x128xbf16>
      %c0_97 = arith.constant 0 : index
      %c0_98 = arith.constant 0 : index
      %221 = vector.load %arg23[%c0_97, %c0_98] : memref<64x128xbf16, #tpu.memory_space<vmem>>, vector<64x128xbf16>
      tpu.vector_store %arg23[%c0_97, %c0_98], %220 {strides = array<i32>} : memref<64x128xbf16, #tpu.memory_space<vmem>>, vector<64x128xbf16>,
      %222 = arith.truncf %219 : vector<64x128xf32> to vector<64x128xbf16>
      %c0_99 = arith.constant 0 : index
      %c0_100 = arith.constant 0 : index
      %223 = vector.load %arg24[%c0_99, %c0_100] : memref<64x128xbf16, #tpu.memory_space<vmem>>, vector<64x128xbf16>
      tpu.vector_store %arg24[%c0_99, %c0_100], %222 {strides = array<i32>} : memref<64x128xbf16, #tpu.memory_space<vmem>>, vector<64x128xbf16>,
    } else {
    }
    %cst = arith.constant 5.000000e-01 : f32
    %5 = vector.broadcast %cst : f32 to vector<1x64xf32>
    %6 = arith.cmpf ogt, %1, %5 : vector<1x64xf32>
    %cst_4 = arith.constant -9.99999984E+17 : f32
    %cst_5 = arith.constant 0.000000e+00 : f32
    %7 = vector.broadcast %cst_4 : f32 to vector<1x64xf32>
    %8 = vector.broadcast %cst_5 : f32 to vector<1x64xf32>
    %9 = arith.select %6, %7, %8 : vector<1x64xi1>, vector<1x64xf32>
    %c32_i32 = arith.constant 32 : i32
    %10 = arith.muli %arg1, %c32_i32 : i32
    %11 = tpu.assume_multiple %10, 32 : i32
    %c0_i32_6 = arith.constant 0 : i32
    %c0_i32_7 = arith.constant 0 : i32
    %c0_i32_8 = arith.constant 0 : i32
    %12 = tpu.memref_slice %arg2[%c0_i32_6, %c0_i32_7, %c0_i32_8] : memref<1x64x128xf32, #tpu.memory_space<vmem>> -> memref<1x64x128xf32, #tpu.memory_space<vmem>>
    %13 = tpu.memref_squeeze %12 : memref<1x64x128xf32, #tpu.memory_space<vmem>> -> memref<64x128xf32, #tpu.memory_space<vmem>>
    %14 = arith.index_cast %11 : i32 to index
    %c0_9 = arith.constant 0 : index
    %15 = vector.load %13[%14, %c0_9] : memref<64x128xf32, #tpu.memory_space<vmem>>, vector<32x128xf32>
    %c0_10 = arith.constant 0 : index
    %c0_11 = arith.constant 0 : index
    %16 = vector.load %arg4[%c0_10, %c0_11] : memref<1x128xf32, #tpu.memory_space<vmem>>, vector<1x128xf32>
    %c0_12 = arith.constant 0 : index
    %c0_13 = arith.constant 0 : index
    %17 = vector.load %arg5[%c0_12, %c0_13] : memref<1x128xf32, #tpu.memory_space<vmem>>, vector<1x128xf32>
    %cst_14 = arith.constant dense<0.000000e+00> : vector<32xf32>
    %18 = vector.multi_reduction <add>, %15, %cst_14 [1] : vector<32x128xf32> to vector<32xf32>
    %19 = vector.shape_cast %18 : vector<32xf32> to vector<32x1xf32>
    %cst_15 = arith.constant 1.280000e+02 : f32
    %20 = vector.broadcast %cst_15 : f32 to vector<32x1xf32>
    %21 = arith.divf %19, %20 : vector<32x1xf32>
    %22 = vector.broadcast %21 : vector<32x1xf32> to vector<32x128xf32>
    %23 = arith.subf %15, %22 : vector<32x128xf32>
    %24 = arith.mulf %23, %23 : vector<32x128xf32>
    %cst_16 = arith.constant dense<0.000000e+00> : vector<32xf32>
    %25 = vector.multi_reduction <add>, %24, %cst_16 [1] : vector<32x128xf32> to vector<32xf32>
    %26 = vector.shape_cast %25 : vector<32xf32> to vector<32x1xf32>
    %cst_17 = arith.constant 1.280000e+02 : f32
    %27 = vector.broadcast %cst_17 : f32 to vector<32x1xf32>
    %28 = arith.divf %26, %27 : vector<32x1xf32>
    %29 = vector.broadcast %21 : vector<32x1xf32> to vector<32x128xf32>
    %30 = arith.subf %15, %29 : vector<32x128xf32>
    %cst_18 = arith.constant 9.99999997E-7 : f32
    %31 = vector.broadcast %cst_18 : f32 to vector<32x1xf32>
    %32 = arith.addf %28, %31 : vector<32x1xf32>
    %33 = math.rsqrt %32 : vector<32x1xf32>
    %34 = vector.broadcast %33 : vector<32x1xf32> to vector<32x128xf32>
    %35 = arith.mulf %30, %34 : vector<32x128xf32>
    %36 = vector.broadcast %16 : vector<1x128xf32> to vector<32x128xf32>
    %37 = arith.mulf %35, %36 : vector<32x128xf32>
    %38 = vector.broadcast %17 : vector<1x128xf32> to vector<32x128xf32>
    %39 = arith.addf %37, %38 : vector<32x128xf32>
    %40 = arith.truncf %39 : vector<32x128xf32> to vector<32x128xbf16>
    %c0_19 = arith.constant 0 : index
    %c0_20 = arith.constant 0 : index
    %41 = vector.load %arg6[%c0_19, %c0_20] : memref<128x128xbf16, #tpu.memory_space<vmem>>, vector<128x128xbf16>
    %cst_21 = arith.constant dense<0.000000e+00> : vector<32x128xf32>
    %42 = tpu.matmul %40, %41, %cst_21 {dimension_numbers = #tpu.dot_dimension_numbers<[1], [0], [0], [1], [0, 0, 1, 1], [], []>} : vector<32x128xbf16>, vector<128x128xbf16>, vector<32x128xf32> -> vector<32x128xf32>
    %c0_22 = arith.constant 0 : index
    %c0_23 = arith.constant 0 : index
    %43 = vector.load %arg7[%c0_22, %c0_23] : memref<1x128xf32, #tpu.memory_space<vmem>>, vector<1x128xf32>
    %44 = vector.broadcast %43 : vector<1x128xf32> to vector<32x128xf32>
    %45 = arith.addf %42, %44 : vector<32x128xf32>
    %c0_24 = arith.constant 0 : index
    %c0_25 = arith.constant 0 : index
    %46 = vector.load %arg23[%c0_24, %c0_25] : memref<64x128xbf16, #tpu.memory_space<vmem>>, vector<64x128xbf16>
    %c0_26 = arith.constant 0 : index
    %c0_27 = arith.constant 0 : index
    %47 = vector.load %arg24[%c0_26, %c0_27] : memref<64x128xbf16, #tpu.memory_space<vmem>>, vector<64x128xbf16>
    %48 = vector.extract_strided_slice %45 {offsets = [0, 0], sizes = [32, 32], strides = [1, 1]} : vector<32x128xf32> to vector<32x32xf32>
    %cst_28 = arith.constant 0.176776692 : f32
    %49 = vector.broadcast %cst_28 : f32 to vector<32x32xf32>
    %50 = arith.mulf %48, %49 : vector<32x32xf32>
    %51 = arith.truncf %50 : vector<32x32xf32> to vector<32x32xbf16>
    %52 = vector.extract_strided_slice %46 {offsets = [0, 0], sizes = [64, 32], strides = [1, 1]} : vector<64x128xbf16> to vector<64x32xbf16>
    %53 = vector.extract_strided_slice %47 {offsets = [0, 0], sizes = [64, 32], strides = [1, 1]} : vector<64x128xbf16> to vector<64x32xbf16>
    %cst_29 = arith.constant dense<0.000000e+00> : vector<32x64xf32>
    %54 = tpu.matmul %51, %52, %cst_29 {dimension_numbers = #tpu.dot_dimension_numbers<[1], [1], [0], [0], [0, 0, 1, 0], [], []>} : vector<32x32xbf16>, vector<64x32xbf16>, vector<32x64xf32> -> vector<32x64xf32>
    %55 = vector.broadcast %9 : vector<1x64xf32> to vector<32x64xf32>
    %56 = arith.addf %54, %55 : vector<32x64xf32>
    %cst_30 = arith.constant dense<0xFF800000> : vector<32xf32>
    %57 = vector.multi_reduction <maximumf>, %56, %cst_30 [1] : vector<32x64xf32> to vector<32xf32>
    %58 = vector.shape_cast %57 : vector<32xf32> to vector<32x1xf32>
    %59 = vector.broadcast %58 : vector<32x1xf32> to vector<32x64xf32>
    %60 = arith.subf %56, %59 : vector<32x64xf32>
    %61 = math.exp %60 : vector<32x64xf32>
    %cst_31 = arith.constant dense<0.000000e+00> : vector<32xf32>
    %62 = vector.multi_reduction <add>, %61, %cst_31 [1] : vector<32x64xf32> to vector<32xf32>
    %63 = vector.shape_cast %62 : vector<32xf32> to vector<32x1xf32>
    %64 = arith.truncf %61 : vector<32x64xf32> to vector<32x64xbf16>
    %cst_32 = arith.constant dense<0.000000e+00> : vector<32x32xf32>
    %65 = tpu.matmul %64, %53, %cst_32 {dimension_numbers = #tpu.dot_dimension_numbers<[1], [0], [0], [1], [0, 0, 1, 1], [], []>} : vector<32x64xbf16>, vector<64x32xbf16>, vector<32x32xf32> -> vector<32x32xf32>
    %66 = tpu.reciprocal %63 {approx = true} : vector<32x1xf32> -> vector<32x1xf32>
    %67 = vector.broadcast %66 : vector<32x1xf32> to vector<32x32xf32>
    %68 = arith.mulf %65, %67 : vector<32x32xf32>
    %69 = vector.extract_strided_slice %45 {offsets = [0, 32], sizes = [32, 32], strides = [1, 1]} : vector<32x128xf32> to vector<32x32xf32>
    %cst_33 = arith.constant 0.176776692 : f32
    %70 = vector.broadcast %cst_33 : f32 to vector<32x32xf32>
    %71 = arith.mulf %69, %70 : vector<32x32xf32>
    %72 = arith.truncf %71 : vector<32x32xf32> to vector<32x32xbf16>
    %73 = vector.extract_strided_slice %46 {offsets = [0, 32], sizes = [64, 32], strides = [1, 1]} : vector<64x128xbf16> to vector<64x32xbf16>
    %74 = vector.extract_strided_slice %47 {offsets = [0, 32], sizes = [64, 32], strides = [1, 1]} : vector<64x128xbf16> to vector<64x32xbf16>
    %cst_34 = arith.constant dense<0.000000e+00> : vector<32x64xf32>
    %75 = tpu.matmul %72, %73, %cst_34 {dimension_numbers = #tpu.dot_dimension_numbers<[1], [1], [0], [0], [0, 0, 1, 0], [], []>} : vector<32x32xbf16>, vector<64x32xbf16>, vector<32x64xf32> -> vector<32x64xf32>
    %76 = vector.broadcast %9 : vector<1x64xf32> to vector<32x64xf32>
    %77 = arith.addf %75, %76 : vector<32x64xf32>
    %cst_35 = arith.constant dense<0xFF800000> : vector<32xf32>
    %78 = vector.multi_reduction <maximumf>, %77, %cst_35 [1] : vector<32x64xf32> to vector<32xf32>
    %79 = vector.shape_cast %78 : vector<32xf32> to vector<32x1xf32>
    %80 = vector.broadcast %79 : vector<32x1xf32> to vector<32x64xf32>
    %81 = arith.subf %77, %80 : vector<32x64xf32>
    %82 = math.exp %81 : vector<32x64xf32>
    %cst_36 = arith.constant dense<0.000000e+00> : vector<32xf32>
    %83 = vector.multi_reduction <add>, %82, %cst_36 [1] : vector<32x64xf32> to vector<32xf32>
    %84 = vector.shape_cast %83 : vector<32xf32> to vector<32x1xf32>
    %85 = arith.truncf %82 : vector<32x64xf32> to vector<32x64xbf16>
    %cst_37 = arith.constant dense<0.000000e+00> : vector<32x32xf32>
    %86 = tpu.matmul %85, %74, %cst_37 {dimension_numbers = #tpu.dot_dimension_numbers<[1], [0], [0], [1], [0, 0, 1, 1], [], []>} : vector<32x64xbf16>, vector<64x32xbf16>, vector<32x32xf32> -> vector<32x32xf32>
    %87 = tpu.reciprocal %84 {approx = true} : vector<32x1xf32> -> vector<32x1xf32>
    %88 = vector.broadcast %87 : vector<32x1xf32> to vector<32x32xf32>
    %89 = arith.mulf %86, %88 : vector<32x32xf32>
    %90 = vector.extract_strided_slice %45 {offsets = [0, 64], sizes = [32, 32], strides = [1, 1]} : vector<32x128xf32> to vector<32x32xf32>
    %cst_38 = arith.constant 0.176776692 : f32
    %91 = vector.broadcast %cst_38 : f32 to vector<32x32xf32>
    %92 = arith.mulf %90, %91 : vector<32x32xf32>
    %93 = arith.truncf %92 : vector<32x32xf32> to vector<32x32xbf16>
    %94 = vector.extract_strided_slice %46 {offsets = [0, 64], sizes = [64, 32], strides = [1, 1]} : vector<64x128xbf16> to vector<64x32xbf16>
    %95 = vector.extract_strided_slice %47 {offsets = [0, 64], sizes = [64, 32], strides = [1, 1]} : vector<64x128xbf16> to vector<64x32xbf16>
    %cst_39 = arith.constant dense<0.000000e+00> : vector<32x64xf32>
    %96 = tpu.matmul %93, %94, %cst_39 {dimension_numbers = #tpu.dot_dimension_numbers<[1], [1], [0], [0], [0, 0, 1, 0], [], []>} : vector<32x32xbf16>, vector<64x32xbf16>, vector<32x64xf32> -> vector<32x64xf32>
    %97 = vector.broadcast %9 : vector<1x64xf32> to vector<32x64xf32>
    %98 = arith.addf %96, %97 : vector<32x64xf32>
    %cst_40 = arith.constant dense<0xFF800000> : vector<32xf32>
    %99 = vector.multi_reduction <maximumf>, %98, %cst_40 [1] : vector<32x64xf32> to vector<32xf32>
    %100 = vector.shape_cast %99 : vector<32xf32> to vector<32x1xf32>
    %101 = vector.broadcast %100 : vector<32x1xf32> to vector<32x64xf32>
    %102 = arith.subf %98, %101 : vector<32x64xf32>
    %103 = math.exp %102 : vector<32x64xf32>
    %cst_41 = arith.constant dense<0.000000e+00> : vector<32xf32>
    %104 = vector.multi_reduction <add>, %103, %cst_41 [1] : vector<32x64xf32> to vector<32xf32>
    %105 = vector.shape_cast %104 : vector<32xf32> to vector<32x1xf32>
    %106 = arith.truncf %103 : vector<32x64xf32> to vector<32x64xbf16>
    %cst_42 = arith.constant dense<0.000000e+00> : vector<32x32xf32>
    %107 = tpu.matmul %106, %95, %cst_42 {dimension_numbers = #tpu.dot_dimension_numbers<[1], [0], [0], [1], [0, 0, 1, 1], [], []>} : vector<32x64xbf16>, vector<64x32xbf16>, vector<32x32xf32> -> vector<32x32xf32>
    %108 = tpu.reciprocal %105 {approx = true} : vector<32x1xf32> -> vector<32x1xf32>
    %109 = vector.broadcast %108 : vector<32x1xf32> to vector<32x32xf32>
    %110 = arith.mulf %107, %109 : vector<32x32xf32>
    %111 = vector.extract_strided_slice %45 {offsets = [0, 96], sizes = [32, 32], strides = [1, 1]} : vector<32x128xf32> to vector<32x32xf32>
    %cst_43 = arith.constant 0.176776692 : f32
    %112 = vector.broadcast %cst_43 : f32 to vector<32x32xf32>
    %113 = arith.mulf %111, %112 : vector<32x32xf32>
    %114 = arith.truncf %113 : vector<32x32xf32> to vector<32x32xbf16>
    %115 = vector.extract_strided_slice %46 {offsets = [0, 96], sizes = [64, 32], strides = [1, 1]} : vector<64x128xbf16> to vector<64x32xbf16>
    %116 = vector.extract_strided_slice %47 {offsets = [0, 96], sizes = [64, 32], strides = [1, 1]} : vector<64x128xbf16> to vector<64x32xbf16>
    %cst_44 = arith.constant dense<0.000000e+00> : vector<32x64xf32>
    %117 = tpu.matmul %114, %115, %cst_44 {dimension_numbers = #tpu.dot_dimension_numbers<[1], [1], [0], [0], [0, 0, 1, 0], [], []>} : vector<32x32xbf16>, vector<64x32xbf16>, vector<32x64xf32> -> vector<32x64xf32>
    %118 = vector.broadcast %9 : vector<1x64xf32> to vector<32x64xf32>
    %119 = arith.addf %117, %118 : vector<32x64xf32>
    %cst_45 = arith.constant dense<0xFF800000> : vector<32xf32>
    %120 = vector.multi_reduction <maximumf>, %119, %cst_45 [1] : vector<32x64xf32> to vector<32xf32>
    %121 = vector.shape_cast %120 : vector<32xf32> to vector<32x1xf32>
    %122 = vector.broadcast %121 : vector<32x1xf32> to vector<32x64xf32>
    %123 = arith.subf %119, %122 : vector<32x64xf32>
    %124 = math.exp %123 : vector<32x64xf32>
    %cst_46 = arith.constant dense<0.000000e+00> : vector<32xf32>
    %125 = vector.multi_reduction <add>, %124, %cst_46 [1] : vector<32x64xf32> to vector<32xf32>
    %126 = vector.shape_cast %125 : vector<32xf32> to vector<32x1xf32>
    %127 = arith.truncf %124 : vector<32x64xf32> to vector<32x64xbf16>
    %cst_47 = arith.constant dense<0.000000e+00> : vector<32x32xf32>
    %128 = tpu.matmul %127, %116, %cst_47 {dimension_numbers = #tpu.dot_dimension_numbers<[1], [0], [0], [1], [0, 0, 1, 1], [], []>} : vector<32x64xbf16>, vector<64x32xbf16>, vector<32x32xf32> -> vector<32x32xf32>
    %129 = tpu.reciprocal %126 {approx = true} : vector<32x1xf32> -> vector<32x1xf32>
    %130 = vector.broadcast %129 : vector<32x1xf32> to vector<32x32xf32>
    %131 = arith.mulf %128, %130 : vector<32x32xf32>
    %132 = tpu.concatenate %68, %89, %110, %131 in 1 : vector<32x32xf32>, vector<32x32xf32>, vector<32x32xf32>, vector<32x32xf32> -> vector<32x128xf32>
    %133 = arith.truncf %132 : vector<32x128xf32> to vector<32x128xbf16>
    %c0_48 = arith.constant 0 : index
    %c0_49 = arith.constant 0 : index
    %134 = vector.load %arg12[%c0_48, %c0_49] : memref<128x128xbf16, #tpu.memory_space<vmem>>, vector<128x128xbf16>
    %cst_50 = arith.constant dense<0.000000e+00> : vector<32x128xf32>
    %135 = tpu.matmul %133, %134, %cst_50 {dimension_numbers = #tpu.dot_dimension_numbers<[1], [0], [0], [1], [0, 0, 1, 1], [], []>} : vector<32x128xbf16>, vector<128x128xbf16>, vector<32x128xf32> -> vector<32x128xf32>
    %c0_51 = arith.constant 0 : index
    %c0_52 = arith.constant 0 : index
    %136 = vector.load %arg13[%c0_51, %c0_52] : memref<1x128xf32, #tpu.memory_space<vmem>>, vector<1x128xf32>
    %137 = vector.broadcast %136 : vector<1x128xf32> to vector<32x128xf32>
    %138 = arith.addf %135, %137 : vector<32x128xf32>
    %139 = arith.addf %138, %15 : vector<32x128xf32>
    %c0_53 = arith.constant 0 : index
    %c0_54 = arith.constant 0 : index
    %140 = vector.load %arg14[%c0_53, %c0_54] : memref<1x128xf32, #tpu.memory_space<vmem>>, vector<1x128xf32>
    %c0_55 = arith.constant 0 : index
    %c0_56 = arith.constant 0 : index
    %141 = vector.load %arg15[%c0_55, %c0_56] : memref<1x128xf32, #tpu.memory_space<vmem>>, vector<1x128xf32>
    %cst_57 = arith.constant dense<0.000000e+00> : vector<32xf32>
    %142 = vector.multi_reduction <add>, %139, %cst_57 [1] : vector<32x128xf32> to vector<32xf32>
    %143 = vector.shape_cast %142 : vector<32xf32> to vector<32x1xf32>
    %cst_58 = arith.constant 1.280000e+02 : f32
    %144 = vector.broadcast %cst_58 : f32 to vector<32x1xf32>
    %145 = arith.divf %143, %144 : vector<32x1xf32>
    %146 = vector.broadcast %145 : vector<32x1xf32> to vector<32x128xf32>
    %147 = arith.subf %139, %146 : vector<32x128xf32>
    %148 = arith.mulf %147, %147 : vector<32x128xf32>
    %cst_59 = arith.constant dense<0.000000e+00> : vector<32xf32>
    %149 = vector.multi_reduction <add>, %148, %cst_59 [1] : vector<32x128xf32> to vector<32xf32>
    %150 = vector.shape_cast %149 : vector<32xf32> to vector<32x1xf32>
    %cst_60 = arith.constant 1.280000e+02 : f32
    %151 = vector.broadcast %cst_60 : f32 to vector<32x1xf32>
    %152 = arith.divf %150, %151 : vector<32x1xf32>
    %153 = vector.broadcast %145 : vector<32x1xf32> to vector<32x128xf32>
    %154 = arith.subf %139, %153 : vector<32x128xf32>
    %cst_61 = arith.constant 9.99999997E-7 : f32
    %155 = vector.broadcast %cst_61 : f32 to vector<32x1xf32>
    %156 = arith.addf %152, %155 : vector<32x1xf32>
    %157 = math.rsqrt %156 : vector<32x1xf32>
    %158 = vector.broadcast %157 : vector<32x1xf32> to vector<32x128xf32>
    %159 = arith.mulf %154, %158 : vector<32x128xf32>
    %160 = vector.broadcast %140 : vector<1x128xf32> to vector<32x128xf32>
    %161 = arith.mulf %159, %160 : vector<32x128xf32>
    %162 = vector.broadcast %141 : vector<1x128xf32> to vector<32x128xf32>
    %163 = arith.addf %161, %162 : vector<32x128xf32>
    %164 = arith.truncf %163 : vector<32x128xf32> to vector<32x128xbf16>
    %c0_62 = arith.constant 0 : index
    %c0_63 = arith.constant 0 : index
    %165 = vector.load %arg16[%c0_62, %c0_63] : memref<128x256xbf16, #tpu.memory_space<vmem>>, vector<128x256xbf16>
    %cst_64 = arith.constant dense<0.000000e+00> : vector<32x256xf32>
    %166 = tpu.matmul %164, %165, %cst_64 {dimension_numbers = #tpu.dot_dimension_numbers<[1], [0], [0], [1], [0, 0, 1, 1], [], []>} : vector<32x128xbf16>, vector<128x256xbf16>, vector<32x256xf32> -> vector<32x256xf32>
    %c0_65 = arith.constant 0 : index
    %c0_66 = arith.constant 0 : index
    %167 = vector.load %arg17[%c0_65, %c0_66] : memref<1x256xf32, #tpu.memory_space<vmem>>, vector<1x256xf32>
    %168 = vector.broadcast %167 : vector<1x256xf32> to vector<32x256xf32>
    %169 = arith.addf %166, %168 : vector<32x256xf32>
    %cst_67 = arith.constant 0.000000e+00 : f32
    %170 = vector.broadcast %cst_67 : f32 to vector<32x256xf32>
    %171 = arith.maximumf %169, %170 : vector<32x256xf32>
    %172 = arith.truncf %171 : vector<32x256xf32> to vector<32x256xbf16>
    %c0_68 = arith.constant 0 : index
    %c0_69 = arith.constant 0 : index
    %173 = vector.load %arg18[%c0_68, %c0_69] : memref<256x128xbf16, #tpu.memory_space<vmem>>, vector<256x128xbf16>
    %cst_70 = arith.constant dense<0.000000e+00> : vector<32x128xf32>
    %174 = tpu.matmul %172, %173, %cst_70 {dimension_numbers = #tpu.dot_dimension_numbers<[1], [0], [0], [1], [0, 0, 1, 1], [], []>} : vector<32x256xbf16>, vector<256x128xbf16>, vector<32x128xf32> -> vector<32x128xf32>
    %c0_71 = arith.constant 0 : index
    %c0_72 = arith.constant 0 : index
    %175 = vector.load %arg19[%c0_71, %c0_72] : memref<1x128xf32, #tpu.memory_space<vmem>>, vector<1x128xf32>
    %176 = vector.broadcast %175 : vector<1x128xf32> to vector<32x128xf32>
    %177 = arith.addf %174, %176 : vector<32x128xf32>
    %178 = arith.addf %177, %139 : vector<32x128xf32>
    %c0_73 = arith.constant 0 : index
    %c0_74 = arith.constant 0 : index
    %c0_75 = arith.constant 0 : index
    %179 = vector.load %arg22[%c0_73, %c0_74, %c0_75] : memref<1x32x128xf32, #tpu.memory_space<vmem>>, vector<1x32x128xf32>
    %180 = vector.shape_cast %179 : vector<1x32x128xf32> to vector<32x128xf32>
    %181 = vector.shape_cast %178 : vector<32x128xf32> to vector<1x32x128xf32>
    tpu.vector_store %arg22[%c0_73, %c0_74, %c0_75], %181 {strides = array<i32>} : memref<1x32x128xf32, #tpu.memory_space<vmem>>, vector<1x32x128xf32>,
    return
  }
  func.func @transform_0(%arg0: i32, %arg1: i32) -> (i32, i32, i32) {
    %c0_i32 = arith.constant 0 : i32
    %c0_i32_0 = arith.constant 0 : i32
    %c0_i32_1 = arith.constant 0 : i32
    return %arg0, %c0_i32, %c0_i32_0 : i32, i32, i32
  }
  func.func @transform_1(%arg0: i32, %arg1: i32) -> (i32, i32, i32) {
    %c0_i32 = arith.constant 0 : i32
    %c0_i32_0 = arith.constant 0 : i32
    %c0_i32_1 = arith.constant 0 : i32
    return %arg0, %c0_i32, %c0_i32_0 : i32, i32, i32
  }
  func.func @transform_2(%arg0: i32, %arg1: i32) -> (i32, i32) {
    %c0_i32 = arith.constant 0 : i32
    %c0_i32_0 = arith.constant 0 : i32
    %c0_i32_1 = arith.constant 0 : i32
    return %c0_i32, %c0_i32_0 : i32, i32
  }
  func.func @transform_3(%arg0: i32, %arg1: i32) -> (i32, i32) {
    %c0_i32 = arith.constant 0 : i32
    %c0_i32_0 = arith.constant 0 : i32
    %c0_i32_1 = arith.constant 0 : i32
    return %c0_i32, %c0_i32_0 : i32, i32
  }
  func.func @transform_4(%arg0: i32, %arg1: i32) -> (i32, i32) {
    %c0_i32 = arith.constant 0 : i32
    %c0_i32_0 = arith.constant 0 : i32
    %c0_i32_1 = arith.constant 0 : i32
    return %c0_i32, %c0_i32_0 : i32, i32
  }
  func.func @transform_5(%arg0: i32, %arg1: i32) -> (i32, i32) {
    %c0_i32 = arith.constant 0 : i32
    %c0_i32_0 = arith.constant 0 : i32
    %c0_i32_1 = arith.constant 0 : i32
    return %c0_i32, %c0_i32_0 : i32, i32
  }
  func.func @transform_6(%arg0: i32, %arg1: i32) -> (i32, i32) {
    %c0_i32 = arith.constant 0 : i32
    %c0_i32_0 = arith.constant 0 : i32
    %c0_i32_1 = arith.constant 0 : i32
    return %c0_i32, %c0_i32_0 : i32, i32
  }
  func.func @transform_7(%arg0: i32, %arg1: i32) -> (i32, i32) {
    %c0_i32 = arith.constant 0 : i32
    %c0_i32_0 = arith.constant 0 : i32
    %c0_i32_1 = arith.constant 0 : i32
    return %c0_i32, %c0_i32_0 : i32, i32
  }
  func.func @transform_8(%arg0: i32, %arg1: i32) -> (i32, i32) {
    %c0_i32 = arith.constant 0 : i32
    %c0_i32_0 = arith.constant 0 : i32
    %c0_i32_1 = arith.constant 0 : i32
    return %c0_i32, %c0_i32_0 : i32, i32
  }
  func.func @transform_9(%arg0: i32, %arg1: i32) -> (i32, i32) {
    %c0_i32 = arith.constant 0 : i32
    %c0_i32_0 = arith.constant 0 : i32
    %c0_i32_1 = arith.constant 0 : i32
    return %c0_i32, %c0_i32_0 : i32, i32
  }
  func.func @transform_10(%arg0: i32, %arg1: i32) -> (i32, i32) {
    %c0_i32 = arith.constant 0 : i32
    %c0_i32_0 = arith.constant 0 : i32
    %c0_i32_1 = arith.constant 0 : i32
    return %c0_i32, %c0_i32_0 : i32, i32
  }
  func.func @transform_11(%arg0: i32, %arg1: i32) -> (i32, i32) {
    %c0_i32 = arith.constant 0 : i32
    %c0_i32_0 = arith.constant 0 : i32
    %c0_i32_1 = arith.constant 0 : i32
    return %c0_i32, %c0_i32_0 : i32, i32
  }
  func.func @transform_12(%arg0: i32, %arg1: i32) -> (i32, i32) {
    %c0_i32 = arith.constant 0 : i32
    %c0_i32_0 = arith.constant 0 : i32
    %c0_i32_1 = arith.constant 0 : i32
    return %c0_i32, %c0_i32_0 : i32, i32
  }
  func.func @transform_13(%arg0: i32, %arg1: i32) -> (i32, i32) {
    %c0_i32 = arith.constant 0 : i32
    %c0_i32_0 = arith.constant 0 : i32
    %c0_i32_1 = arith.constant 0 : i32
    return %c0_i32, %c0_i32_0 : i32, i32
  }
  func.func @transform_14(%arg0: i32, %arg1: i32) -> (i32, i32) {
    %c0_i32 = arith.constant 0 : i32
    %c0_i32_0 = arith.constant 0 : i32
    %c0_i32_1 = arith.constant 0 : i32
    return %c0_i32, %c0_i32_0 : i32, i32
  }
  func.func @transform_15(%arg0: i32, %arg1: i32) -> (i32, i32) {
    %c0_i32 = arith.constant 0 : i32
    %c0_i32_0 = arith.constant 0 : i32
    %c0_i32_1 = arith.constant 0 : i32
    return %c0_i32, %c0_i32_0 : i32, i32
  }
  func.func @transform_16(%arg0: i32, %arg1: i32) -> (i32, i32) {
    %c0_i32 = arith.constant 0 : i32
    %c0_i32_0 = arith.constant 0 : i32
    %c0_i32_1 = arith.constant 0 : i32
    return %c0_i32, %c0_i32_0 : i32, i32
  }
  func.func @transform_17(%arg0: i32, %arg1: i32) -> (i32, i32) {
    %c0_i32 = arith.constant 0 : i32
    %c0_i32_0 = arith.constant 0 : i32
    %c0_i32_1 = arith.constant 0 : i32
    return %c0_i32, %c0_i32_0 : i32, i32
  }
  func.func @transform_18(%arg0: i32, %arg1: i32) -> (i32, i32) {
    %c0_i32 = arith.constant 0 : i32
    %c0_i32_0 = arith.constant 0 : i32
    %c0_i32_1 = arith.constant 0 : i32
    return %c0_i32, %c0_i32_0 : i32, i32
  }
  func.func @transform_19(%arg0: i32, %arg1: i32) -> (i32, i32) {
    %c0_i32 = arith.constant 0 : i32
    %c0_i32_0 = arith.constant 0 : i32
    %c0_i32_1 = arith.constant 0 : i32
    return %c0_i32, %c0_i32_0 : i32, i32
  }
  func.func @transform_20(%arg0: i32, %arg1: i32) -> (i32, i32, i32) {
    %c0_i32 = arith.constant 0 : i32
    %c0_i32_0 = arith.constant 0 : i32
    return %arg0, %arg1, %c0_i32 : i32, i32, i32
  }
}

</mosaic_0001>

<llo_original>
// kernel: tpu_custom_call.1
$region0: #{tpu_custom_call.1}
  #allocation0 [shape = 'u32[]', space=smem, size = 0x4, offset = 0x4, fixed_abs, tag = 'smem constant byte address 0x4 - core index']
  #allocation1 [shape = 'u32[72,128]{1,0:T(1,128)}', space=vmem, size = 0x9000, scoped, tag = 'internal scratch']
  %s0 = inlined_call_operand.hbm [shape: f32[8,128], index: 0, kind: input, shape index: {}]
  %s1 = inlined_call_operand.hbm [shape: f32[8,128], index: 1, kind: output, shape index: {}]
  %s2 = sld [smem:[#allocation0]]
  $region18: #{tpu_custom_call.1} parent=0
    _
  %s4 = ssub.s32 1, %s2
  %s5 = scalar_select 0, %s4, %s2
  $region1: #{tpu_custom_call.1} parent=0
    #allocation2 [shape = 'u8[4096]{0}', space=vmem, size = 0x1000, scoped, tag = 'input window, operand 0, single buffered']
    #allocation3 [shape = 's32[1]{0}', space=sflag, size = 0x4, scoped, tag = 'scoped memory for tpu_custom_call.1']
    #allocation4 [shape = 's32[1]{0}', space=sflag, size = 0x4, scoped, tag = 'scoped memory for tpu_custom_call.1']
    #allocation5 [shape = 'u8[4096]{0}', space=vmem, size = 0x1000, scoped, tag = 'output window, operand 0, single buffered']
    %6 = vsyncpa [#allocation3], 0
    %7 = vsyncpa [#allocation4], 0
    // Predicated region
    $region2: #{tpu_custom_call.1} parent=1 // pred_check
      _
    $region3: #{tpu_custom_call.1} parent=1 // pred_check_branch
      %9 = sbr.rel (0) target = $region5
    $region4: #{tpu_custom_call.1} parent=1 // pred_region
      %11 = vsyncadd [#allocation3], 0
      %s13 = sshll.u32 %s0, 4
      %s14 = int_to_ptr.hbm [resolvable:$true] %s13
      %s15 = sshll.u32 [#allocation2], 4
      %s16 = int_to_ptr.vmem [resolvable:$true] %s15
      %18 = dma.hbm_to_vmem [thread:$0]  %s14, 128, %s16, [#allocation3]
    $region5: #{tpu_custom_call.1} parent=1 // pred_fallthru
      _
    // Predicated region
    $region6: #{tpu_custom_call.1} parent=1 // pred_check
      _
    $region7: #{tpu_custom_call.1} parent=1 // pred_check_branch
      %20 = sbr.rel (0) target = $region9
    $region8: #{tpu_custom_call.1} parent=1 // pred_region
      %22 = dma.done [#allocation3], 128
    $region9: #{tpu_custom_call.1} parent=1 // pred_fallthru
      _
    %v23 = vld [vmem:[#allocation2] sm:$0xff]
    %v24 = vadd.f32 %v23, 1.0
    %25 = vst [vmem:[#allocation5] sm:$0xff] %v24
    // Predicated region
    $region10: #{tpu_custom_call.1} parent=1 // pred_check
      _
    $region11: #{tpu_custom_call.1} parent=1 // pred_check_branch
      %27 = sbr.rel (0) target = $region13
    $region12: #{tpu_custom_call.1} parent=1 // pred_region
      %29 = vsyncadd [#allocation4], 0
      %s31 = sshll.u32 [#allocation5], 4
      %s32 = int_to_ptr.vmem [resolvable:$true] %s31
      %s33 = sshll.u32 %s1, 4
      %s34 = int_to_ptr.hbm [resolvable:$true] %s33
      %36 = dma.vmem_to_hbm [thread:$0]  %s32, 128, %s34, [#allocation4]
    $region13: #{tpu_custom_call.1} parent=1 // pred_fallthru
      _
    // Predicated region
    $region14: #{tpu_custom_call.1} parent=1 // pred_check
      _
    $region15: #{tpu_custom_call.1} parent=1 // pred_check_branch
      %38 = sbr.rel (0) target = $region17
    $region16: #{tpu_custom_call.1} parent=1 // pred_region
      %40 = dma.done [#allocation4], 128
    $region17: #{tpu_custom_call.1} parent=1 // pred_fallthru
      _
    %41 = vsyncpa [#allocation3], 1
    %42 = vsyncpa [#allocation4], 1

// kernel: tpu_custom_call.1
$region0: #{tpu_custom_call.1}
  #allocation0 [shape = 'u32[]', space=smem, size = 0x4, offset = 0x4, fixed_abs, tag = 'smem constant byte address 0x4 - core index']
  #allocation1 [shape = 'u32[72,128]{1,0:T(1,128)}', space=vmem, size = 0x9000, scoped, tag = 'internal scratch']
  #allocation2 [shape = 'bf16[64,128]{1,0:T(8,128)(2,1)}', space=vmem, size = 0x4000, scoped, tag = 'scratch operand']
  #allocation3 [shape = 'bf16[64,128]{1,0:T(8,128)(2,1)}', space=vmem, size = 0x4000, scoped, tag = 'scratch operand']
  %s0 = inlined_call_operand.hbm [shape: f32[2,64,128], index: 0, kind: input, shape index: {}]
  %s1 = inlined_call_operand.hbm [shape: f32[2,1,64], index: 1, kind: input, shape index: {}]
  %s2 = inlined_call_operand.vmem [shape: f32[1,128], index: 2, kind: input, shape index: {}]
  %s3 = inlined_call_operand.hbm [shape: f32[1,128], index: 3, kind: input, shape index: {}]
  %s4 = inlined_call_operand.hbm [shape: bf16[128,128], index: 4, kind: input, shape index: {}]
  %s5 = inlined_call_operand.vmem [shape: f32[1,128], index: 5, kind: input, shape index: {}]
  %s6 = inlined_call_operand.hbm [shape: bf16[128,128], index: 6, kind: input, shape index: {}]
  %s7 = inlined_call_operand.vmem [shape: f32[1,128], index: 7, kind: input, shape index: {}]
  %s8 = inlined_call_operand.hbm [shape: bf16[128,128], index: 8, kind: input, shape index: {}]
  %s9 = inlined_call_operand.vmem [shape: f32[1,128], index: 9, kind: input, shape index: {}]
  %s10 = inlined_call_operand.hbm [shape: bf16[128,128], index: 10, kind: input, shape index: {}]
  %s11 = inlined_call_operand.vmem [shape: f32[1,128], index: 11, kind: input, shape index: {}]
  %s12 = inlined_call_operand.vmem [shape: f32[1,128], index: 12, kind: input, shape index: {}]
  %s13 = inlined_call_operand.vmem [shape: f32[1,128], index: 13, kind: input, shape index: {}]
  %s14 = inlined_call_operand.hbm [shape: bf16[128,256], index: 14, kind: input, shape index: {}]
  %s15 = inlined_call_operand.vmem [shape: f32[1,256], index: 15, kind: input, shape index: {}]
  %s16 = inlined_call_operand.hbm [shape: bf16[256,128], index: 16, kind: input, shape index: {}]
  %s17 = inlined_call_operand.vmem [shape: f32[1,128], index: 17, kind: input, shape index: {}]
  %s18 = inlined_call_operand.vmem [shape: f32[1,128], index: 18, kind: input, shape index: {}]
  %s19 = inlined_call_operand.vmem [shape: f32[1,128], index: 19, kind: input, shape index: {}]
  %s20 = inlined_call_operand.hbm [shape: f32[2,64,128], index: 20, kind: output, shape index: {}]
  %s21 = sld [smem:[#allocation0]]
  $region153: #{tpu_custom_call.1} parent=0
    _
  %s23 = ssub.s32 1, %s21
  %s24 = scalar_select 0, %s23, %s21
  $region1: #{tpu_custom_call.1} parent=0
    #allocation4 [shape = 'u8[65536]{0}', space=vmem, size = 0x10000, scoped, tag = 'input window, operand 0']
    #allocation5 [shape = 's32[2]{0}', space=sflag, size = 0x8, scoped, tag = 'scoped memory for tpu_custom_call.1']
    #allocation6 [shape = 's32[2]{0}', space=sflag, size = 0x8, scoped, tag = 'scoped memory for tpu_custom_call.1']
    #allocation7 [shape = 'u8[1024]{0}', space=vmem, size = 0x400, scoped, tag = 'input window, operand 1']
    #allocation8 [shape = 's32[2]{0}', space=sflag, size = 0x8, scoped, tag = 'scoped memory for tpu_custom_call.1']
    #allocation9 [shape = 'u8[512]{0}', space=vmem, size = 0x400, scoped, tag = 'input window, operand 3, single buffered']
    #allocation10 [shape = 'u8[32768]{0}', space=vmem, size = 0x8000, scoped, tag = 'input window, operand 4, single buffered']
    #allocation11 [shape = 's32[1]{0}', space=sflag, size = 0x4, scoped, tag = 'scoped memory for tpu_custom_call.1']
    #allocation12 [shape = 'u8[32768]{0}', space=vmem, size = 0x8000, scoped, tag = 'input window, operand 6, single buffered']
    #allocation13 [shape = 'u8[32768]{0}', space=vmem, size = 0x8000, scoped, tag = 'input window, operand 8, single buffered']
    #allocation14 [shape = 's32[1]{0}', space=sflag, size = 0x4, scoped, tag = 'scoped memory for tpu_custom_call.1']
    #allocation15 [shape = 'u8[32768]{0}', space=vmem, size = 0x8000, scoped, tag = 'input window, operand 10, single buffered']
    #allocation16 [shape = 'u8[65536]{0}', space=vmem, size = 0x10000, scoped, tag = 'input window, operand 14, single buffered']
    #allocation17 [shape = 's32[1]{0}', space=sflag, size = 0x4, scoped, tag = 'scoped memory for tpu_custom_call.1']
    #allocation18 [shape = 'u8[65536]{0}', space=vmem, size = 0x10000, scoped, tag = 'input window, operand 16, single buffered']
    #allocation19 [shape = 'u8[32768]{0}', space=vmem, size = 0x8000, scoped, tag = 'output window, operand 0']
    %25 = vsyncpa [#allocation5], 0
    %s26 = scalar_lea.sflag [#allocation5], 1
    %27 = vsyncpa %s26, 0
    %28 = vsyncpa [#allocation8], 0
    %s29 = scalar_lea.sflag [#allocation8], 1
    %30 = vsyncpa %s29, 0
    %31 = vsyncpa [#allocation11], 0
    %32 = vsyncpa [#allocation14], 0
    %33 = vsyncpa [#allocation17], 0
    %34 = vsyncpa [#allocation6], 0
    %s35 = scalar_lea.sflag [#allocation6], 1
    %36 = vsyncpa %s35, 0
    loop: start=0, step=1, limit=6
    $region2: #{tpu_custom_call.1} parent=1 // loop_pre_header
      _
    $region3: #{tpu_custom_call.1} parent=1 // loop_header
      %s38 = sphi 0, %s42
      %p39 = scmp.ge.s32.totalorder %s38, 6
      %s45 = sphi 0, %s57
      %s46 = sphi 0, %s53
      %s47 = sphi 0, %s45
      %s48 = sphi 0, %s46
      %s49 = sphi 0, %s47
      %s50 = sphi 0, %s48
      %s60 = sphi 0, %s62
      %s63 = sphi 0, %s60
      %s64 = sphi 0, %s63
      %s80 = sphi 0, %s64
      %s86 = sphi 0, %s88
      %s89 = sphi 0, %s86
      %s90 = sphi 0, %s89
      %s106 = sphi 0, %s90
      %s110 = sphi 0, %s110
      %s112 = sphi 0, %s110
      %s113 = sphi 0, %s112
      %s127 = sphi 0, %s113
      %s131 = sphi 0, %s131
      %s133 = sphi 0, %s131
      %s134 = sphi 0, %s133
      %s148 = sphi 0, %s134
      %s152 = sphi 0, %s152
      %s154 = sphi 0, %s152
      %s155 = sphi 0, %s154
      %s169 = sphi 0, %s155
      %s173 = sphi 0, %s173
      %s175 = sphi 0, %s173
      %s176 = sphi 0, %s175
      %s190 = sphi 0, %s176
      %s194 = sphi 0, %s194
      %s196 = sphi 0, %s194
      %s197 = sphi 0, %s196
      %s211 = sphi 0, %s197
      %s215 = sphi 0, %s215
      %s217 = sphi 0, %s215
      %s218 = sphi 0, %s217
      %s232 = sphi 0, %s218
      %s236 = sphi 0, %s236
      %s238 = sphi 0, %s236
      %s239 = sphi 0, %s238
      %s253 = sphi 0, %s239
      %s257 = sphi 0, %s257
      %s259 = sphi 0, %s257
      %s260 = sphi 0, %s259
      %s274 = sphi 0, %s260
      %s278 = sphi 0, %s278
      %s280 = sphi 0, %s278
      %s281 = sphi 0, %s280
      %s295 = sphi 0, %s281
      %s299 = sphi 0, %s299
      %s301 = sphi 0, %s299
      %s302 = sphi 0, %s301
      %s316 = sphi 0, %s302
      %s320 = sphi 0, %s320
      %s322 = sphi 0, %s320
      %s323 = sphi 0, %s322
      %s337 = sphi 0, %s323
      %s341 = sphi 0, %s341
      %s343 = sphi 0, %s341
      %s344 = sphi 0, %s343
      %s358 = sphi 0, %s344
      %s362 = sphi 0, %s362
      %s364 = sphi 0, %s362
      %s365 = sphi 0, %s364
      %s379 = sphi 0, %s365
      %s383 = sphi 0, %s383
      %s385 = sphi 0, %s383
      %s386 = sphi 0, %s385
      %s400 = sphi 0, %s386
      %s404 = sphi 0, %s404
      %s406 = sphi 0, %s404
      %s407 = sphi 0, %s406
      %s421 = sphi 0, %s407
      %s425 = sphi 0, %s425
      %s427 = sphi 0, %s425
      %s428 = sphi 0, %s427
      %s442 = sphi 0, %s428
      %s446 = sphi 0, %s446
      %s448 = sphi 0, %s446
      %s449 = sphi 0, %s448
      %s463 = sphi 0, %s449
      %s467 = sphi 0, %s467
      %s469 = sphi 0, %s467
      %s470 = sphi 0, %s469
      %s484 = sphi 0, %s470
      %s492 = sphi 0, %s494
      %s495 = sphi 0, %s492
      %s496 = sphi 0, %s495
      %s512 = sphi 0, %s496
    $region4: #{tpu_custom_call.1} parent=1 // loop_header_branch
      %41 = sbr.rel (%p39) target = $region8
    $region5: #{tpu_custom_call.1} parent=1 // loop_body
      %s43 = ssub.s32 %s38, 1
      %s44 = ssub.s32 %s38, 2
      %s51 = sadd.s32 1, %s46
      %p52 = scmp.ge.s32.totalorder %s51, 2
      %s53 = scalar_select %p52, 0, %s51
      %s54 = sadd.s32 1, %s45
      %s55 = scalar_select %p52, %s54, %s45
      %p56 = scmp.ge.s32.totalorder %s55, 2
      %s57 = scalar_select %p56, 0, %s55
      %s58 = ssub.s32 %s45, %s57
      %p59 = scmp.eq.s32.totalorder %s58, 0
      %s61 = sadd.s32 %s60, 1
      %s62 = scalar_select %p59, %s60, %s61
      %p65 = pneg %p59
      %p66 = scmp.eq.s32.totalorder %s38, 3
      %p67 = por %p65, %p66
      %p68 = scmp.ne.s32.totalorder %s60, %s63
      %p69 = scmp.eq.s32.totalorder %s38, 0
      %p70 = por %p68, %p69
      %p71 = scmp.ne.s32.totalorder %s60, %s63
      %p72 = scmp.eq.s32.totalorder %s43, 3
      %p73 = por %p71, %p72
      %p74 = scmp.ne.s32.totalorder %s63, %s64
      %p75 = scmp.eq.s32.totalorder %s43, 0
      %p76 = por %p74, %p75
      %p77 = scmp.ne.s32.totalorder %s63, %s64
      %p78 = scmp.eq.s32.totalorder %s44, 3
      %p79 = por %p77, %p78
      %p81 = scmp.ne.s32.totalorder %s64, %s80
      %p82 = scmp.eq.s32.totalorder %s44, 0
      %p83 = por %p81, %p82
      %s84 = ssub.s32 %s45, %s57
      %p85 = scmp.eq.s32.totalorder %s84, 0
      %s87 = sadd.s32 %s86, 1
      %s88 = scalar_select %p85, %s86, %s87
      %p91 = pneg %p85
      %p92 = scmp.eq.s32.totalorder %s38, 3
      %p93 = por %p91, %p92
      %p94 = scmp.ne.s32.totalorder %s86, %s89
      %p95 = scmp.eq.s32.totalorder %s38, 0
      %p96 = por %p94, %p95
      %p97 = scmp.ne.s32.totalorder %s86, %s89
      %p98 = scmp.eq.s32.totalorder %s43, 3
      %p99 = por %p97, %p98
      %p100 = scmp.ne.s32.totalorder %s89, %s90
      %p101 = scmp.eq.s32.totalorder %s43, 0
      %p102 = por %p100, %p101
      %p103 = scmp.ne.s32.totalorder %s89, %s90
      %p104 = scmp.eq.s32.totalorder %s44, 3
      %p105 = por %p103, %p104
      %p107 = scmp.ne.s32.totalorder %s90, %s106
      %p108 = scmp.eq.s32.totalorder %s44, 0
      %p109 = por %p107, %p108
      %s111 = sadd.s32 %s110, 1
      %p114 = scmp.eq.s32.totalorder %s38, 3
      %p115 = scmp.ne.s32.totalorder %s110, %s112
      %p116 = scmp.eq.s32.totalorder %s38, 0
      %p117 = por %p115, %p116
      %p118 = scmp.ne.s32.totalorder %s110, %s112
      %p119 = scmp.eq.s32.totalorder %s43, 3
      %p120 = por %p118, %p119
      %p121 = scmp.ne.s32.totalorder %s112, %s113
      %p122 = scmp.eq.s32.totalorder %s43, 0
      %p123 = por %p121, %p122
      %p124 = scmp.ne.s32.totalorder %s112, %s113
      %p125 = scmp.eq.s32.totalorder %s44, 3
      %p126 = por %p124, %p125
      %p128 = scmp.ne.s32.totalorder %s113, %s127
      %p129 = scmp.eq.s32.totalorder %s44, 0
      %p130 = por %p128, %p129
      %s132 = sadd.s32 %s131, 1
      %p135 = scmp.eq.s32.totalorder %s38, 3
      %p136 = scmp.ne.s32.totalorder %s131, %s133
      %p137 = scmp.eq.s32.totalorder %s38, 0
      %p138 = por %p136, %p137
      %p139 = scmp.ne.s32.totalorder %s131, %s133
      %p140 = scmp.eq.s32.totalorder %s43, 3
      %p141 = por %p139, %p140
      %p142 = scmp.ne.s32.totalorder %s133, %s134
      %p143 = scmp.eq.s32.totalorder %s43, 0
      %p144 = por %p142, %p143
      %p145 = scmp.ne.s32.totalorder %s133, %s134
      %p146 = scmp.eq.s32.totalorder %s44, 3
      %p147 = por %p145, %p146
      %p149 = scmp.ne.s32.totalorder %s134, %s148
      %p150 = scmp.eq.s32.totalorder %s44, 0
      %p151 = por %p149, %p150
      %s153 = sadd.s32 %s152, 1
      %p156 = scmp.eq.s32.totalorder %s38, 3
      %p157 = scmp.ne.s32.totalorder %s152, %s154
      %p158 = scmp.eq.s32.totalorder %s38, 0
      %p159 = por %p157, %p158
      %p160 = scmp.ne.s32.totalorder %s152, %s154
      %p161 = scmp.eq.s32.totalorder %s43, 3
      %p162 = por %p160, %p161
      %p163 = scmp.ne.s32.totalorder %s154, %s155
      %p164 = scmp.eq.s32.totalorder %s43, 0
      %p165 = por %p163, %p164
      %p166 = scmp.ne.s32.totalorder %s154, %s155
      %p167 = scmp.eq.s32.totalorder %s44, 3
      %p168 = por %p166, %p167
      %p170 = scmp.ne.s32.totalorder %s155, %s169
      %p171 = scmp.eq.s32.totalorder %s44, 0
      %p172 = por %p170, %p171
      %s174 = sadd.s32 %s173, 1
      %p177 = scmp.eq.s32.totalorder %s38, 3
      %p178 = scmp.ne.s32.totalorder %s173, %s175
      %p179 = scmp.eq.s32.totalorder %s38, 0
      %p180 = por %p178, %p179
      %p181 = scmp.ne.s32.totalorder %s173, %s175
      %p182 = scmp.eq.s32.totalorder %s43, 3
      %p183 = por %p181, %p182
      %p184 = scmp.ne.s32.totalorder %s175, %s176
      %p185 = scmp.eq.s32.totalorder %s43, 0
      %p186 = por %p184, %p185
      %p187 = scmp.ne.s32.totalorder %s175, %s176
      %p188 = scmp.eq.s32.totalorder %s44, 3
      %p189 = por %p187, %p188
      %p191 = scmp.ne.s32.totalorder %s176, %s190
      %p192 = scmp.eq.s32.totalorder %s44, 0
      %p193 = por %p191, %p192
      %s195 = sadd.s32 %s194, 1
      %p198 = scmp.eq.s32.totalorder %s38, 3
      %p199 = scmp.ne.s32.totalorder %s194, %s196
      %p200 = scmp.eq.s32.totalorder %s38, 0
      %p201 = por %p199, %p200
      %p202 = scmp.ne.s32.totalorder %s194, %s196
      %p203 = scmp.eq.s32.totalorder %s43, 3
      %p204 = por %p202, %p203
      %p205 = scmp.ne.s32.totalorder %s196, %s197
      %p206 = scmp.eq.s32.totalorder %s43, 0
      %p207 = por %p205, %p206
      %p208 = scmp.ne.s32.totalorder %s196, %s197
      %p209 = scmp.eq.s32.totalorder %s44, 3
      %p210 = por %p208, %p209
      %p212 = scmp.ne.s32.totalorder %s197, %s211
      %p213 = scmp.eq.s32.totalorder %s44, 0
      %p214 = por %p212, %p213
      %s216 = sadd.s32 %s215, 1
      %p219 = scmp.eq.s32.totalorder %s38, 3
      %p220 = scmp.ne.s32.totalorder %s215, %s217
      %p221 = scmp.eq.s32.totalorder %s38, 0
      %p222 = por %p220, %p221
      %p223 = scmp.ne.s32.totalorder %s215, %s217
      %p224 = scmp.eq.s32.totalorder %s43, 3
      %p225 = por %p223, %p224
      %p226 = scmp.ne.s32.totalorder %s217, %s218
      %p227 = scmp.eq.s32.totalorder %s43, 0
      %p228 = por %p226, %p227
      %p229 = scmp.ne.s32.totalorder %s217, %s218
      %p230 = scmp.eq.s32.totalorder %s44, 3
      %p231 = por %p229, %p230
      %p233 = scmp.ne.s32.totalorder %s218, %s232
      %p234 = scmp.eq.s32.totalorder %s44, 0
      %p235 = por %p233, %p234
      %s237 = sadd.s32 %s236, 1
      %p240 = scmp.eq.s32.totalorder %s38, 3
      %p241 = scmp.ne.s32.totalorder %s236, %s238
      %p242 = scmp.eq.s32.totalorder %s38, 0
      %p243 = por %p241, %p242
      %p244 = scmp.ne.s32.totalorder %s236, %s238
      %p245 = scmp.eq.s32.totalorder %s43, 3
      %p246 = por %p244, %p245
      %p247 = scmp.ne.s32.totalorder %s238, %s239
      %p248 = scmp.eq.s32.totalorder %s43, 0
      %p249 = por %p247, %p248
      %p250 = scmp.ne.s32.totalorder %s238, %s239
      %p251 = scmp.eq.s32.totalorder %s44, 3
      %p252 = por %p250, %p251
      %p254 = scmp.ne.s32.totalorder %s239, %s253
      %p255 = scmp.eq.s32.totalorder %s44, 0
      %p256 = por %p254, %p255
      %s258 = sadd.s32 %s257, 1
      %p261 = scmp.eq.s32.totalorder %s38, 3
      %p262 = scmp.ne.s32.totalorder %s257, %s259
      %p263 = scmp.eq.s32.totalorder %s38, 0
      %p264 = por %p262, %p263
      %p265 = scmp.ne.s32.totalorder %s257, %s259
      %p266 = scmp.eq.s32.totalorder %s43, 3
      %p267 = por %p265, %p266
      %p268 = scmp.ne.s32.totalorder %s259, %s260
      %p269 = scmp.eq.s32.totalorder %s43, 0
      %p270 = por %p268, %p269
      %p271 = scmp.ne.s32.totalorder %s259, %s260
      %p272 = scmp.eq.s32.totalorder %s44, 3
      %p273 = por %p271, %p272
      %p275 = scmp.ne.s32.totalorder %s260, %s274
      %p276 = scmp.eq.s32.totalorder %s44, 0
      %p277 = por %p275, %p276
      %s279 = sadd.s32 %s278, 1
      %p282 = scmp.eq.s32.totalorder %s38, 3
      %p283 = scmp.ne.s32.totalorder %s278, %s280
      %p284 = scmp.eq.s32.totalorder %s38, 0
      %p285 = por %p283, %p284
      %p286 = scmp.ne.s32.totalorder %s278, %s280
      %p287 = scmp.eq.s32.totalorder %s43, 3
      %p288 = por %p286, %p287
      %p289 = scmp.ne.s32.totalorder %s280, %s281
      %p290 = scmp.eq.s32.totalorder %s43, 0
      %p291 = por %p289, %p290
      %p292 = scmp.ne.s32.totalorder %s280, %s281
      %p293 = scmp.eq.s32.totalorder %s44, 3
      %p294 = por %p292, %p293
      %p296 = scmp.ne.s32.totalorder %s281, %s295
      %p297 = scmp.eq.s32.totalorder %s44, 0
      %p298 = por %p296, %p297
      %s300 = sadd.s32 %s299, 1
      %p303 = scmp.eq.s32.totalorder %s38, 3
      %p304 = scmp.ne.s32.totalorder %s299, %s301
      %p305 = scmp.eq.s32.totalorder %s38, 0
      %p306 = por %p304, %p305
      %p307 = scmp.ne.s32.totalorder %s299, %s301
      %p308 = scmp.eq.s32.totalorder %s43, 3
      %p309 = por %p307, %p308
      %p310 = scmp.ne.s32.totalorder %s301, %s302
      %p311 = scmp.eq.s32.totalorder %s43, 0
      %p312 = por %p310, %p311
      %p313 = scmp.ne.s32.totalorder %s301, %s302
      %p314 = scmp.eq.s32.totalorder %s44, 3
      %p315 = por %p313, %p314
      %p317 = scmp.ne.s32.totalorder %s302, %s316
      %p318 = scmp.eq.s32.totalorder %s44, 0
      %p319 = por %p317, %p318
      %s321 = sadd.s32 %s320, 1
      %p324 = scmp.eq.s32.totalorder %s38, 3
      %p325 = scmp.ne.s32.totalorder %s320, %s322
      %p326 = scmp.eq.s32.totalorder %s38, 0
      %p327 = por %p325, %p326
      %p328 = scmp.ne.s32.totalorder %s320, %s322
      %p329 = scmp.eq.s32.totalorder %s43, 3
      %p330 = por %p328, %p329
      %p331 = scmp.ne.s32.totalorder %s322, %s323
      %p332 = scmp.eq.s32.totalorder %s43, 0
      %p333 = por %p331, %p332
      %p334 = scmp.ne.s32.totalorder %s322, %s323
      %p335 = scmp.eq.s32.totalorder %s44, 3
      %p336 = por %p334, %p335
      %p338 = scmp.ne.s32.totalorder %s323, %s337
      %p339 = scmp.eq.s32.totalorder %s44, 0
      %p340 = por %p338, %p339
      %s342 = sadd.s32 %s341, 1
      %p345 = scmp.eq.s32.totalorder %s38, 3
      %p346 = scmp.ne.s32.totalorder %s341, %s343
      %p347 = scmp.eq.s32.totalorder %s38, 0
      %p348 = por %p346, %p347
      %p349 = scmp.ne.s32.totalorder %s341, %s343
      %p350 = scmp.eq.s32.totalorder %s43, 3
      %p351 = por %p349, %p350
      %p352 = scmp.ne.s32.totalorder %s343, %s344
      %p353 = scmp.eq.s32.totalorder %s43, 0
      %p354 = por %p352, %p353
      %p355 = scmp.ne.s32.totalorder %s343, %s344
      %p356 = scmp.eq.s32.totalorder %s44, 3
      %p357 = por %p355, %p356
      %p359 = scmp.ne.s32.totalorder %s344, %s358
      %p360 = scmp.eq.s32.totalorder %s44, 0
      %p361 = por %p359, %p360
      %s363 = sadd.s32 %s362, 1
      %p366 = scmp.eq.s32.totalorder %s38, 3
      %p367 = scmp.ne.s32.totalorder %s362, %s364
      %p368 = scmp.eq.s32.totalorder %s38, 0
      %p369 = por %p367, %p368
      %p370 = scmp.ne.s32.totalorder %s362, %s364
      %p371 = scmp.eq.s32.totalorder %s43, 3
      %p372 = por %p370, %p371
      %p373 = scmp.ne.s32.totalorder %s364, %s365
      %p374 = scmp.eq.s32.totalorder %s43, 0
      %p375 = por %p373, %p374
      %p376 = scmp.ne.s32.totalorder %s364, %s365
      %p377 = scmp.eq.s32.totalorder %s44, 3
      %p378 = por %p376, %p377
      %p380 = scmp.ne.s32.totalorder %s365, %s379
      %p381 = scmp.eq.s32.totalorder %s44, 0
      %p382 = por %p380, %p381
      %s384 = sadd.s32 %s383, 1
      %p387 = scmp.eq.s32.totalorder %s38, 3
      %p388 = scmp.ne.s32.totalorder %s383, %s385
      %p389 = scmp.eq.s32.totalorder %s38, 0
      %p390 = por %p388, %p389
      %p391 = scmp.ne.s32.totalorder %s383, %s385
      %p392 = scmp.eq.s32.totalorder %s43, 3
      %p393 = por %p391, %p392
      %p394 = scmp.ne.s32.totalorder %s385, %s386
      %p395 = scmp.eq.s32.totalorder %s43, 0
      %p396 = por %p394, %p395
      %p397 = scmp.ne.s32.totalorder %s385, %s386
      %p398 = scmp.eq.s32.totalorder %s44, 3
      %p399 = por %p397, %p398
      %p401 = scmp.ne.s32.totalorder %s386, %s400
      %p402 = scmp.eq.s32.totalorder %s44, 0
      %p403 = por %p401, %p402
      %s405 = sadd.s32 %s404, 1
      %p408 = scmp.eq.s32.totalorder %s38, 3
      %p409 = scmp.ne.s32.totalorder %s404, %s406
      %p410 = scmp.eq.s32.totalorder %s38, 0
      %p411 = por %p409, %p410
      %p412 = scmp.ne.s32.totalorder %s404, %s406
      %p413 = scmp.eq.s32.totalorder %s43, 3
      %p414 = por %p412, %p413
      %p415 = scmp.ne.s32.totalorder %s406, %s407
      %p416 = scmp.eq.s32.totalorder %s43, 0
      %p417 = por %p415, %p416
      %p418 = scmp.ne.s32.totalorder %s406, %s407
      %p419 = scmp.eq.s32.totalorder %s44, 3
      %p420 = por %p418, %p419
      %p422 = scmp.ne.s32.totalorder %s407, %s421
      %p423 = scmp.eq.s32.totalorder %s44, 0
      %p424 = por %p422, %p423
      %s426 = sadd.s32 %s425, 1
      %p429 = scmp.eq.s32.totalorder %s38, 3
      %p430 = scmp.ne.s32.totalorder %s425, %s427
      %p431 = scmp.eq.s32.totalorder %s38, 0
      %p432 = por %p430, %p431
      %p433 = scmp.ne.s32.totalorder %s425, %s427
      %p434 = scmp.eq.s32.totalorder %s43, 3
      %p435 = por %p433, %p434
      %p436 = scmp.ne.s32.totalorder %s427, %s428
      %p437 = scmp.eq.s32.totalorder %s43, 0
      %p438 = por %p436, %p437
      %p439 = scmp.ne.s32.totalorder %s427, %s428
      %p440 = scmp.eq.s32.totalorder %s44, 3
      %p441 = por %p439, %p440
      %p443 = scmp.ne.s32.totalorder %s428, %s442
      %p444 = scmp.eq.s32.totalorder %s44, 0
      %p445 = por %p443, %p444
      %s447 = sadd.s32 %s446, 1
      %p450 = scmp.eq.s32.totalorder %s38, 3
      %p451 = scmp.ne.s32.totalorder %s446, %s448
      %p452 = scmp.eq.s32.totalorder %s38, 0
      %p453 = por %p451, %p452
      %p454 = scmp.ne.s32.totalorder %s446, %s448
      %p455 = scmp.eq.s32.totalorder %s43, 3
      %p456 = por %p454, %p455
      %p457 = scmp.ne.s32.totalorder %s448, %s449
      %p458 = scmp.eq.s32.totalorder %s43, 0
      %p459 = por %p457, %p458
      %p460 = scmp.ne.s32.totalorder %s448, %s449
      %p461 = scmp.eq.s32.totalorder %s44, 3
      %p462 = por %p460, %p461
      %p464 = scmp.ne.s32.totalorder %s449, %s463
      %p465 = scmp.eq.s32.totalorder %s44, 0
      %p466 = por %p464, %p465
      %s468 = sadd.s32 %s467, 1
      %p471 = scmp.eq.s32.totalorder %s38, 3
      %p472 = scmp.ne.s32.totalorder %s467, %s469
      %p473 = scmp.eq.s32.totalorder %s38, 0
      %p474 = por %p472, %p473
      %p475 = scmp.ne.s32.totalorder %s467, %s469
      %p476 = scmp.eq.s32.totalorder %s43, 3
      %p477 = por %p475, %p476
      %p478 = scmp.ne.s32.totalorder %s469, %s470
      %p479 = scmp.eq.s32.totalorder %s43, 0
      %p480 = por %p478, %p479
      %p481 = scmp.ne.s32.totalorder %s469, %s470
      %p482 = scmp.eq.s32.totalorder %s44, 3
      %p483 = por %p481, %p482
      %p485 = scmp.ne.s32.totalorder %s470, %s484
      %p486 = scmp.eq.s32.totalorder %s44, 0
      %p487 = por %p485, %p486
      %s488 = ssub.s32 %s45, %s57
      %s489 = ssub.s32 %s46, %s53
      %s490 = sor.u32 %s488, %s489
      %p491 = scmp.eq.s32.totalorder %s490, 0
      %s493 = sadd.s32 %s492, 1
      %s494 = scalar_select %p491, %s492, %s493
      %p497 = pneg %p491
      %p498 = scmp.eq.s32.totalorder %s38, 3
      %p499 = por %p497, %p498
      %p500 = scmp.ne.s32.totalorder %s492, %s495
      %p501 = scmp.eq.s32.totalorder %s38, 0
      %p502 = por %p500, %p501
      %p503 = scmp.ne.s32.totalorder %s492, %s495
      %p504 = scmp.eq.s32.totalorder %s43, 3
      %p505 = por %p503, %p504
      %p506 = scmp.ne.s32.totalorder %s495, %s496
      %p507 = scmp.eq.s32.totalorder %s43, 0
      %p508 = por %p506, %p507
      %p509 = scmp.ne.s32.totalorder %s495, %s496
      %p510 = scmp.eq.s32.totalorder %s44, 3
      %p511 = por %p509, %p510
      %p513 = scmp.ne.s32.totalorder %s496, %s512
      %p514 = scmp.eq.s32.totalorder %s44, 0
      %p515 = por %p513, %p514
      %p516 = scmp.le.s32.totalorder 1, %s38
      %p517 = scmp.lt.s32.totalorder %s38, 5
      %p518 = pnand %p516, %p517
      %p519 = pneg %p518
      // Predicated region
      $region9: #{tpu_custom_call.1} parent=5 // pred_check
        _
      $region10: #{tpu_custom_call.1} parent=5 // pred_check_branch
        %521 = sbr.rel (%p518) target = $region12
      $region11: #{tpu_custom_call.1} parent=5 // pred_region
        %s522 = ssub.s32 %s38, 1
        // Predicated region
        $region13: #{tpu_custom_call.1} parent=11 // pred_check
          %p523 = pneg %p123
        $region14: #{tpu_custom_call.1} parent=11 // pred_check_branch
          %525 = sbr.rel (%p523) target = $region16
        $region15: #{tpu_custom_call.1} parent=11 // pred_region
          _
        $region16: #{tpu_custom_call.1} parent=11 // pred_fallthru
          _
        // Predicated region
        $region17: #{tpu_custom_call.1} parent=11 // pred_check
          %p526 = pneg %p144
        $region18: #{tpu_custom_call.1} parent=11 // pred_check_branch
          %528 = sbr.rel (%p526) target = $region20
        $region19: #{tpu_custom_call.1} parent=11 // pred_region
          %530 = vsyncadd [#allocation8], 0
          %s532 = sshll.u32 %s3, 4
          %s533 = int_to_ptr.hbm [resolvable:$true] %s532
          %s534 = sshll.u32 [#allocation9], 4
          %s535 = int_to_ptr.vmem [resolvable:$true] %s534
          %537 = dma.hbm_to_vmem [thread:$0]  %s533, 16, %s535, [#allocation8]
        $region20: #{tpu_custom_call.1} parent=11 // pred_fallthru
          _
        // Predicated region
        $region21: #{tpu_custom_call.1} parent=11 // pred_check
          %p538 = pneg %p165
        $region22: #{tpu_custom_call.1} parent=11 // pred_check_branch
          %540 = sbr.rel (%p538) target = $region24
        $region23: #{tpu_custom_call.1} parent=11 // pred_region
          %542 = vsyncadd [#allocation11], 0
          %s543 = sshll.u32 %s4, 4
          %s544 = int_to_ptr.hbm [resolvable:$true] %s543
          %s545 = sshll.u32 [#allocation10], 4
          %s546 = int_to_ptr.vmem [resolvable:$true] %s545
          %551 = dma.hbm_to_vmem [thread:$0]  %s544, 1024, %s546, [#allocation11], 64, 64, 4
        $region24: #{tpu_custom_call.1} parent=11 // pred_fallthru
          _
        // Predicated region
        $region25: #{tpu_custom_call.1} parent=11 // pred_check
          %p552 = pneg %p186
        $region26: #{tpu_custom_call.1} parent=11 // pred_check_branch
          %554 = sbr.rel (%p552) target = $region28
        $region27: #{tpu_custom_call.1} parent=11 // pred_region
          _
        $region28: #{tpu_custom_call.1} parent=11 // pred_fallthru
          _
        // Predicated region
        $region29: #{tpu_custom_call.1} parent=11 // pred_check
          %p555 = pneg %p207
        $region30: #{tpu_custom_call.1} parent=11 // pred_check_branch
          %557 = sbr.rel (%p555) target = $region32
        $region31: #{tpu_custom_call.1} parent=11 // pred_region
          %559 = vsyncadd [#allocation11], 0
          %s560 = sshll.u32 %s6, 4
          %s561 = int_to_ptr.hbm [resolvable:$true] %s560
          %s562 = sshll.u32 [#allocation12], 4
          %s563 = int_to_ptr.vmem [resolvable:$true] %s562
          %568 = dma.hbm_to_vmem [thread:$0]  %s561, 1024, %s563, [#allocation11], 64, 64, 4
        $region32: #{tpu_custom_call.1} parent=11 // pred_fallthru
          _
        // Predicated region
        $region33: #{tpu_custom_call.1} parent=11 // pred_check
          %p569 = pneg %p228
        $region34: #{tpu_custom_call.1} parent=11 // pred_check_branch
          %571 = sbr.rel (%p569) target = $region36
        $region35: #{tpu_custom_call.1} parent=11 // pred_region
          _
        $region36: #{tpu_custom_call.1} parent=11 // pred_fallthru
          _
        // Predicated region
        $region37: #{tpu_custom_call.1} parent=11 // pred_check
          %p572 = pneg %p249
        $region38: #{tpu_custom_call.1} parent=11 // pred_check_branch
          %574 = sbr.rel (%p572) target = $region40
        $region39: #{tpu_custom_call.1} parent=11 // pred_region
          %576 = vsyncadd [#allocation14], 0
          %s577 = sshll.u32 %s8, 4
          %s578 = int_to_ptr.hbm [resolvable:$true] %s577
          %s579 = sshll.u32 [#allocation13], 4
          %s580 = int_to_ptr.vmem [resolvable:$true] %s579
          %585 = dma.hbm_to_vmem [thread:$0]  %s578, 1024, %s580, [#allocation14], 64, 64, 4
        $region40: #{tpu_custom_call.1} parent=11 // pred_fallthru
          _
        // Predicated region
        $region41: #{tpu_custom_call.1} parent=11 // pred_check
          %p586 = pneg %p270
        $region42: #{tpu_custom_call.1} parent=11 // pred_check_branch
          %588 = sbr.rel (%p586) target = $region44
        $region43: #{tpu_custom_call.1} parent=11 // pred_region
          _
        $region44: #{tpu_custom_call.1} parent=11 // pred_fallthru
          _
        // Predicated region
        $region45: #{tpu_custom_call.1} parent=11 // pred_check
          %p589 = pneg %p291
        $region46: #{tpu_custom_call.1} parent=11 // pred_check_branch
          %591 = sbr.rel (%p589) target = $region48
        $region47: #{tpu_custom_call.1} parent=11 // pred_region
          %593 = vsyncadd [#allocation14], 0
          %s594 = sshll.u32 %s10, 4
          %s595 = int_to_ptr.hbm [resolvable:$true] %s594
          %s596 = sshll.u32 [#allocation15], 4
          %s597 = int_to_ptr.vmem [resolvable:$true] %s596
          %602 = dma.hbm_to_vmem [thread:$0]  %s595, 1024, %s597, [#allocation14], 64, 64, 4
        $region48: #{tpu_custom_call.1} parent=11 // pred_fallthru
          _
        // Predicated region
        $region49: #{tpu_custom_call.1} parent=11 // pred_check
          %p603 = pneg %p312
        $region50: #{tpu_custom_call.1} parent=11 // pred_check_branch
          %605 = sbr.rel (%p603) target = $region52
        $region51: #{tpu_custom_call.1} parent=11 // pred_region
          _
        $region52: #{tpu_custom_call.1} parent=11 // pred_fallthru
          _
        // Predicated region
        $region53: #{tpu_custom_call.1} parent=11 // pred_check
          %p606 = pneg %p333
        $region54: #{tpu_custom_call.1} parent=11 // pred_check_branch
          %608 = sbr.rel (%p606) target = $region56
        $region55: #{tpu_custom_call.1} parent=11 // pred_region
          _
        $region56: #{tpu_custom_call.1} parent=11 // pred_fallthru
          _
        // Predicated region
        $region57: #{tpu_custom_call.1} parent=11 // pred_check
          %p609 = pneg %p354
        $region58: #{tpu_custom_call.1} parent=11 // pred_check_branch
          %611 = sbr.rel (%p609) target = $region60
        $region59: #{tpu_custom_call.1} parent=11 // pred_region
          _
        $region60: #{tpu_custom_call.1} parent=11 // pred_fallthru
          _
        // Predicated region
        $region61: #{tpu_custom_call.1} parent=11 // pred_check
          %p612 = pneg %p375
        $region62: #{tpu_custom_call.1} parent=11 // pred_check_branch
          %614 = sbr.rel (%p612) target = $region64
        $region63: #{tpu_custom_call.1} parent=11 // pred_region
          %616 = vsyncadd [#allocation17], 0
          %s617 = sshll.u32 %s14, 4
          %s618 = int_to_ptr.hbm [resolvable:$true] %s617
          %s619 = sshll.u32 [#allocation16], 4
          %s620 = int_to_ptr.vmem [resolvable:$true] %s619
          %625 = dma.hbm_to_vmem [thread:$0]  %s618, 2048, %s620, [#allocation17], 128, 128, 8
        $region64: #{tpu_custom_call.1} parent=11 // pred_fallthru
          _
        // Predicated region
        $region65: #{tpu_custom_call.1} parent=11 // pred_check
          %p626 = pneg %p396
        $region66: #{tpu_custom_call.1} parent=11 // pred_check_branch
          %628 = sbr.rel (%p626) target = $region68
        $region67: #{tpu_custom_call.1} parent=11 // pred_region
          _
        $region68: #{tpu_custom_call.1} parent=11 // pred_fallthru
          _
        // Predicated region
        $region69: #{tpu_custom_call.1} parent=11 // pred_check
          %p629 = pneg %p417
        $region70: #{tpu_custom_call.1} parent=11 // pred_check_branch
          %631 = sbr.rel (%p629) target = $region72
        $region71: #{tpu_custom_call.1} parent=11 // pred_region
          %633 = vsyncadd [#allocation17], 0
          %s634 = sshll.u32 %s16, 4
          %s635 = int_to_ptr.hbm [resolvable:$true] %s634
          %s636 = sshll.u32 [#allocation18], 4
          %s637 = int_to_ptr.vmem [resolvable:$true] %s636
          %642 = dma.hbm_to_vmem [thread:$0]  %s635, 2048, %s637, [#allocation17], 64, 64, 4
        $region72: #{tpu_custom_call.1} parent=11 // pred_fallthru
          _
        // Predicated region
        $region73: #{tpu_custom_call.1} parent=11 // pred_check
          %p643 = pneg %p438
        $region74: #{tpu_custom_call.1} parent=11 // pred_check_branch
          %645 = sbr.rel (%p643) target = $region76
        $region75: #{tpu_custom_call.1} parent=11 // pred_region
          _
        $region76: #{tpu_custom_call.1} parent=11 // pred_fallthru
          _
        // Predicated region
        $region77: #{tpu_custom_call.1} parent=11 // pred_check
          %p646 = pneg %p459
        $region78: #{tpu_custom_call.1} parent=11 // pred_check_branch
          %648 = sbr.rel (%p646) target = $region80
        $region79: #{tpu_custom_call.1} parent=11 // pred_region
          _
        $region80: #{tpu_custom_call.1} parent=11 // pred_fallthru
          _
        // Predicated region
        $region81: #{tpu_custom_call.1} parent=11 // pred_check
          %p649 = pneg %p480
        $region82: #{tpu_custom_call.1} parent=11 // pred_check_branch
          %651 = sbr.rel (%p649) target = $region84
        $region83: #{tpu_custom_call.1} parent=11 // pred_region
          _
        $region84: #{tpu_custom_call.1} parent=11 // pred_fallthru
          _
      $region12: #{tpu_custom_call.1} parent=5 // pred_fallthru
        _
      %p652 = scmp.lt.s32.totalorder %s38, 4
      // Predicated region
      $region85: #{tpu_custom_call.1} parent=5 // pred_check
        %p653 = pneg %p652
      $region86: #{tpu_custom_call.1} parent=5 // pred_check_branch
        %655 = sbr.rel (%p653) target = $region88
      $region87: #{tpu_custom_call.1} parent=5 // pred_region
        // Predicated region
        $region89: #{tpu_custom_call.1} parent=87 // pred_check
          %p656 = pneg %p70
        $region90: #{tpu_custom_call.1} parent=87 // pred_check_branch
          %658 = sbr.rel (%p656) target = $region92
        $region91: #{tpu_custom_call.1} parent=87 // pred_region
          %s659 = sand.u32 %s60, 1
          %s660 = scalar_lea.sflag [#allocation5], %s659
          %s661 = sand.u32 %s60, 1
          %s662 = smul.addr %s661, 64
          %s663 = scalar_lea.vmem [#allocation4], %s662
          %665 = vsyncadd %s660, 0
          %s666 = smul.addr %s45, 8
          %s667 = smul.addr %s666, 8
          %s668 = scalar_lea.hbm %s0, %s667
          %s669 = sshll.u32 %s668, 4
          %s670 = int_to_ptr.hbm [resolvable:$true] %s669
          %s671 = sshll.u32 %s663, 4
          %s672 = int_to_ptr.vmem [resolvable:$true] %s671
          %677 = dma.hbm_to_vmem [thread:$0]  %s670, 1024, %s672, %s660, 128, 128, 8
        $region92: #{tpu_custom_call.1} parent=87 // pred_fallthru
          _
        // Predicated region
        $region93: #{tpu_custom_call.1} parent=87 // pred_check
          %p678 = pneg %p96
        $region94: #{tpu_custom_call.1} parent=87 // pred_check_branch
          %680 = sbr.rel (%p678) target = $region96
        $region95: #{tpu_custom_call.1} parent=87 // pred_region
          %s681 = sand.u32 %s38, 1
          %s682 = scalar_lea.sflag [#allocation8], %s681
          %s683 = sand.u32 %s86, 1
          %s684 = scalar_lea.vmem [#allocation7], %s683
          %686 = vsyncadd %s682, 0
          %s687 = scalar_lea.hbm %s1, %s45
          %s689 = sshll.u32 %s687, 4
          %s690 = int_to_ptr.hbm [resolvable:$true] %s689
          %s691 = sshll.u32 %s684, 4
          %s692 = int_to_ptr.vmem [resolvable:$true] %s691
          %694 = dma.hbm_to_vmem [thread:$0]  %s690, 16, %s692, %s682
        $region96: #{tpu_custom_call.1} parent=87 // pred_fallthru
          _
      $region88: #{tpu_custom_call.1} parent=5 // pred_fallthru
        _
      %p695 = scmp.le.s32.totalorder 1, %s38
      %p696 = scmp.lt.s32.totalorder %s38, 5
      %p697 = pnand %p695, %p696
      %p698 = pneg %p697
      // Predicated region
      $region97: #{tpu_custom_call.1} parent=5 // pred_check
        _
      $region98: #{tpu_custom_call.1} parent=5 // pred_check_branch
        %700 = sbr.rel (%p697) target = $region100
      $region99: #{tpu_custom_call.1} parent=5 // pred_region
        %s701 = ssub.s32 %s38, 1
        %s702 = sand.u32 %s63, 1
        %s703 = scalar_lea.sflag [#allocation5], %s702
        %s704 = sand.u32 %s63, 1
        %s705 = smul.addr %s704, 64
        %s706 = scalar_lea.vmem [#allocation4], %s705
        // Predicated region
        $region101: #{tpu_custom_call.1} parent=99 // pred_check
          %p707 = pneg %p76
        $region102: #{tpu_custom_call.1} parent=99 // pred_check_branch
          %709 = sbr.rel (%p707) target = $region104
        $region103: #{tpu_custom_call.1} parent=99 // pred_region
          %711 = dma.done %s703, 1024
        $region104: #{tpu_custom_call.1} parent=99 // pred_fallthru
          _
        %s712 = sand.u32 %s43, 1
        %s713 = scalar_lea.sflag [#allocation8], %s712
        %s714 = sand.u32 %s89, 1
        %s715 = scalar_lea.vmem [#allocation7], %s714
        // Predicated region
        $region105: #{tpu_custom_call.1} parent=99 // pred_check
          %p716 = pneg %p102
        $region106: #{tpu_custom_call.1} parent=99 // pred_check_branch
          %718 = sbr.rel (%p716) target = $region108
        $region107: #{tpu_custom_call.1} parent=99 // pred_region
          %720 = dma.done %s713, 16
        $region108: #{tpu_custom_call.1} parent=99 // pred_fallthru
          _
        // Predicated region
        $region109: #{tpu_custom_call.1} parent=99 // pred_check
          %p721 = pneg %p144
        $region110: #{tpu_custom_call.1} parent=99 // pred_check_branch
          %723 = sbr.rel (%p721) target = $region112
        $region111: #{tpu_custom_call.1} parent=99 // pred_region
          %725 = dma.done [#allocation8], 16
        $region112: #{tpu_custom_call.1} parent=99 // pred_fallthru
          _
        // Predicated region
        $region113: #{tpu_custom_call.1} parent=99 // pred_check
          %p726 = pneg %p165
        $region114: #{tpu_custom_call.1} parent=99 // pred_check_branch
          %728 = sbr.rel (%p726) target = $region116
        $region115: #{tpu_custom_call.1} parent=99 // pred_region
          %730 = dma.done [#allocation11], 1024
        $region116: #{tpu_custom_call.1} parent=99 // pred_fallthru
          _
        // Predicated region
        $region117: #{tpu_custom_call.1} parent=99 // pred_check
          %p731 = pneg %p207
        $region118: #{tpu_custom_call.1} parent=99 // pred_check_branch
          %733 = sbr.rel (%p731) target = $region120
        $region119: #{tpu_custom_call.1} parent=99 // pred_region
          %735 = dma.done [#allocation11], 1024
        $region120: #{tpu_custom_call.1} parent=99 // pred_fallthru
          _
        // Predicated region
        $region121: #{tpu_custom_call.1} parent=99 // pred_check
          %p736 = pneg %p249
        $region122: #{tpu_custom_call.1} parent=99 // pred_check_branch
          %738 = sbr.rel (%p736) target = $region124
        $region123: #{tpu_custom_call.1} parent=99 // pred_region
          %740 = dma.done [#allocation14], 1024
        $region124: #{tpu_custom_call.1} parent=99 // pred_fallthru
          _
        // Predicated region
        $region125: #{tpu_custom_call.1} parent=99 // pred_check
          %p741 = pneg %p291
        $region126: #{tpu_custom_call.1} parent=99 // pred_check_branch
          %743 = sbr.rel (%p741) target = $region128
        $region127: #{tpu_custom_call.1} parent=99 // pred_region
          %745 = dma.done [#allocation14], 1024
        $region128: #{tpu_custom_call.1} parent=99 // pred_fallthru
          _
        // Predicated region
        $region129: #{tpu_custom_call.1} parent=99 // pred_check
          %p746 = pneg %p375
        $region130: #{tpu_custom_call.1} parent=99 // pred_check_branch
          %748 = sbr.rel (%p746) target = $region132
        $region131: #{tpu_custom_call.1} parent=99 // pred_region
          %750 = dma.done [#allocation17], 2048
        $region132: #{tpu_custom_call.1} parent=99 // pred_fallthru
          _
        // Predicated region
        $region133: #{tpu_custom_call.1} parent=99 // pred_check
          %p751 = pneg %p417
        $region134: #{tpu_custom_call.1} parent=99 // pred_check_branch
          %753 = sbr.rel (%p751) target = $region136
        $region135: #{tpu_custom_call.1} parent=99 // pred_region
          %755 = dma.done [#allocation17], 2048
        $region136: #{tpu_custom_call.1} parent=99 // pred_fallthru
          _
        %s756 = sand.u32 %s63, 1
        %s757 = scalar_lea.sflag [#allocation5], %s756
        %s758 = sand.u32 %s63, 1
        %s759 = smul.addr %s758, 64
        %s760 = scalar_lea.vmem [#allocation4], %s759
        %p761 = pneg %p76
        %p762 = pneg %p73
        %s763 = sand.u32 %s43, 1
        %s764 = scalar_lea.sflag [#allocation8], %s763
        %s765 = sand.u32 %s89, 1
        %s766 = scalar_lea.vmem [#allocation7], %s765
        %p767 = pneg %p102
        %p768 = pneg %p99
        %p769 = pneg %p123
        %p770 = pneg %p120
        %p771 = pneg %p144
        %p772 = pneg %p141
        %p773 = pneg %p165
        %p774 = pneg %p162
        %p775 = pneg %p186
        %p776 = pneg %p183
        %p777 = pneg %p207
        %p778 = pneg %p204
        %p779 = pneg %p228
        %p780 = pneg %p225
        %p781 = pneg %p249
        %p782 = pneg %p246
        %p783 = pneg %p270
        %p784 = pneg %p267
        %p785 = pneg %p291
        %p786 = pneg %p288
        %p787 = pneg %p312
        %p788 = pneg %p309
        %p789 = pneg %p333
        %p790 = pneg %p330
        %p791 = pneg %p354
        %p792 = pneg %p351
        %p793 = pneg %p375
        %p794 = pneg %p372
        %p795 = pneg %p396
        %p796 = pneg %p393
        %p797 = pneg %p417
        %p798 = pneg %p414
        %p799 = pneg %p438
        %p800 = pneg %p435
        %p801 = pneg %p459
        %p802 = pneg %p456
        %p803 = pneg %p480
        %p804 = pneg %p477
        %p805 = pneg %p508
        %p806 = pneg %p505
        %s807 = sand.u32 %s495, 1
        %s808 = scalar_lea.sflag [#allocation6], %s807
        %s809 = sand.u32 %s495, 1
        %s810 = smul.addr %s809, 32
        %s811 = scalar_lea.vmem [#allocation19], %s810
        %s812 = smul.u32 4, %s48
        %v814 = vld [vmem:[%s715] sm:$0x1]
        %p815 = scmp.eq.s32.totalorder %s48, 0
        // Predicated region
        $region137: #{tpu_custom_call.1} parent=99 // pred_check
          %p816 = pneg %p815
        $region138: #{tpu_custom_call.1} parent=99 // pred_check_branch
          %818 = sbr.rel (%p816) target = $region140
        $region139: #{tpu_custom_call.1} parent=99 // pred_region
          %v819 = vld [vmem:[%s706] sm:$0xff]
          %v820 = vld [vmem:[%s706 + $0x8] sm:$0xff]
          %v821 = vld [vmem:[%s706 + $0x10] sm:$0xff]
          %v822 = vld [vmem:[%s706 + $0x18] sm:$0xff]
          %v823 = vld [vmem:[%s706 + $0x20] sm:$0xff]
          %v824 = vld [vmem:[%s706 + $0x28] sm:$0xff]
          %v825 = vld [vmem:[%s706 + $0x30] sm:$0xff]
          %v826 = vld [vmem:[%s706 + $0x38] sm:$0xff]
          %v827 = vld [vmem:[%s2] sm:$0x1]
          %v828 = vld [vmem:[#allocation9] sm:$0x1]
          %829 = vadd.xlane.f32.xlu0 %v819
          %v830 = vpop.xlane.xlu0 %829
          %831 = vadd.xlane.f32.xlu0 %v820
          %v832 = vpop.xlane.xlu0 %831
          %833 = vadd.xlane.f32.xlu0 %v821
          %v834 = vpop.xlane.xlu0 %833
          %835 = vadd.xlane.f32.xlu0 %v822
          %v836 = vpop.xlane.xlu0 %835
          %837 = vadd.xlane.f32.xlu0 %v823
          %v838 = vpop.xlane.xlu0 %837
          %839 = vadd.xlane.f32.xlu0 %v824
          %v840 = vpop.xlane.xlu0 %839
          %841 = vadd.xlane.f32.xlu0 %v825
          %v842 = vpop.xlane.xlu0 %841
          %843 = vadd.xlane.f32.xlu0 %v826
          %v844 = vpop.xlane.xlu0 %843
          %v845 = vrcp.pop 128.0
          %v846 = vmul.f32 128.0, %v845
          %v847 = vsub.f32 1.0, %v846
          %v848 = vmul.f32 %v845, %v847
          %v849 = vadd.f32 %v845, %v848
          %vm850 = vweird.f32 %v845
          %v851 = vsel %vm850, %v845, %v849
          %v852 = vmul.f32 %v830, %v851
          %v853 = vmul.f32 %v832, %v851
          %v854 = vmul.f32 %v834, %v851
          %v855 = vmul.f32 %v836, %v851
          %v856 = vmul.f32 %v838, %v851
          %v857 = vmul.f32 %v840, %v851
          %v858 = vmul.f32 %v842, %v851
          %v859 = vmul.f32 %v844, %v851
          %v860 = vsub.f32 %v819, %v852
          %v861 = vsub.f32 %v820, %v853
          %v862 = vsub.f32 %v821, %v854
          %v863 = vsub.f32 %v822, %v855
          %v864 = vsub.f32 %v823, %v856
          %v865 = vsub.f32 %v824, %v857
          %v866 = vsub.f32 %v825, %v858
          %v867 = vsub.f32 %v826, %v859
          %v868 = vmul.f32 %v860, %v860
          %v869 = vmul.f32 %v861, %v861
          %v870 = vmul.f32 %v862, %v862
          %v871 = vmul.f32 %v863, %v863
          %v872 = vmul.f32 %v864, %v864
          %v873 = vmul.f32 %v865, %v865
          %v874 = vmul.f32 %v866, %v866
          %v875 = vmul.f32 %v867, %v867
          %876 = vadd.xlane.f32.xlu0 %v868
          %v877 = vpop.xlane.xlu0 %876
          %878 = vadd.xlane.f32.xlu0 %v869
          %v879 = vpop.xlane.xlu0 %878
          %880 = vadd.xlane.f32.xlu0 %v870
          %v881 = vpop.xlane.xlu0 %880
          %882 = vadd.xlane.f32.xlu0 %v871
          %v883 = vpop.xlane.xlu0 %882
          %884 = vadd.xlane.f32.xlu0 %v872
          %v885 = vpop.xlane.xlu0 %884
          %886 = vadd.xlane.f32.xlu0 %v873
          %v887 = vpop.xlane.xlu0 %886
          %888 = vadd.xlane.f32.xlu0 %v874
          %v889 = vpop.xlane.xlu0 %888
          %890 = vadd.xlane.f32.xlu0 %v875
          %v891 = vpop.xlane.xlu0 %890
          %v892 = vmul.f32 %v877, %v851
          %v893 = vmul.f32 %v879, %v851
          %v894 = vmul.f32 %v881, %v851
          %v895 = vmul.f32 %v883, %v851
          %v896 = vmul.f32 %v885, %v851
          %v897 = vmul.f32 %v887, %v851
          %v898 = vmul.f32 %v889, %v851
          %v899 = vmul.f32 %v891, %v851
          %v900 = vadd.f32 %v892, 1e-06
          %v901 = vadd.f32 %v893, 1e-06
          %v902 = vadd.f32 %v894, 1e-06
          %v903 = vadd.f32 %v895, 1e-06
          %v904 = vadd.f32 %v896, 1e-06
          %v905 = vadd.f32 %v897, 1e-06
          %v906 = vadd.f32 %v898, 1e-06
          %v907 = vadd.f32 %v899, 1e-06
          %v908 = vrsqrt.pop %v900
          %v909 = vmul.f32 %v908, %v900
          %v910 = vmul.f32 %v909, %v908
          %v911 = vmul.f32 0.5, %v910
          %v912 = vsub.f32 1.5, %v911
          %v913 = vmul.f32 %v908, %v912
          %vm914 = vweird.f32 %v900
          %vm915 = vweird.f32 %v908
          %vm916 = vmor %vm914, %vm915
          %v917 = vsel %vm916, %v908, %v913
          %v918 = vrsqrt.pop %v901
          %v919 = vmul.f32 %v918, %v901
          %v920 = vmul.f32 %v919, %v918
          %v921 = vmul.f32 0.5, %v920
          %v922 = vsub.f32 1.5, %v921
          %v923 = vmul.f32 %v918, %v922
          %vm924 = vweird.f32 %v901
          %vm925 = vweird.f32 %v918
          %vm926 = vmor %vm924, %vm925
          %v927 = vsel %vm926, %v918, %v923
          %v928 = vrsqrt.pop %v902
          %v929 = vmul.f32 %v928, %v902
          %v930 = vmul.f32 %v929, %v928
          %v931 = vmul.f32 0.5, %v930
          %v932 = vsub.f32 1.5, %v931
          %v933 = vmul.f32 %v928, %v932
          %vm934 = vweird.f32 %v902
          %vm935 = vweird.f32 %v928
          %vm936 = vmor %vm934, %vm935
          %v937 = vsel %vm936, %v928, %v933
          %v938 = vrsqrt.pop %v903
          %v939 = vmul.f32 %v938, %v903
          %v940 = vmul.f32 %v939, %v938
          %v941 = vmul.f32 0.5, %v940
          %v942 = vsub.f32 1.5, %v941
          %v943 = vmul.f32 %v938, %v942
          %vm944 = vweird.f32 %v903
          %vm945 = vweird.f32 %v938
          %vm946 = vmor %vm944, %vm945
          %v947 = vsel %vm946, %v938, %v943
          %v948 = vrsqrt.pop %v904
          %v949 = vmul.f32 %v948, %v904
          %v950 = vmul.f32 %v949, %v948
          %v951 = vmul.f32 0.5, %v950
          %v952 = vsub.f32 1.5, %v951
          %v953 = vmul.f32 %v948, %v952
          %vm954 = vweird.f32 %v904
          %vm955 = vweird.f32 %v948
          %vm956 = vmor %vm954, %vm955
          %v957 = vsel %vm956, %v948, %v953
          %v958 = vrsqrt.pop %v905
          %v959 = vmul.f32 %v958, %v905
          %v960 = vmul.f32 %v959, %v958
          %v961 = vmul.f32 0.5, %v960
          %v962 = vsub.f32 1.5, %v961
          %v963 = vmul.f32 %v958, %v962
          %vm964 = vweird.f32 %v905
          %vm965 = vweird.f32 %v958
          %vm966 = vmor %vm964, %vm965
          %v967 = vsel %vm966, %v958, %v963
          %v968 = vrsqrt.pop %v906
          %v969 = vmul.f32 %v968, %v906
          %v970 = vmul.f32 %v969, %v968
          %v971 = vmul.f32 0.5, %v970
          %v972 = vsub.f32 1.5, %v971
          %v973 = vmul.f32 %v968, %v972
          %vm974 = vweird.f32 %v906
          %vm975 = vweird.f32 %v968
          %vm976 = vmor %vm974, %vm975
          %v977 = vsel %vm976, %v968, %v973
          %v978 = vrsqrt.pop %v907
          %v979 = vmul.f32 %v978, %v907
          %v980 = vmul.f32 %v979, %v978
          %v981 = vmul.f32 0.5, %v980
          %v982 = vsub.f32 1.5, %v981
          %v983 = vmul.f32 %v978, %v982
          %vm984 = vweird.f32 %v907
          %vm985 = vweird.f32 %v978
          %vm986 = vmor %vm984, %vm985
          %v987 = vsel %vm986, %v978, %v983
          %v988 = vmul.f32 %v860, %v917
          %v989 = vmul.f32 %v861, %v927
          %v990 = vmul.f32 %v862, %v937
          %v991 = vmul.f32 %v863, %v947
          %v992 = vmul.f32 %v864, %v957
          %v993 = vmul.f32 %v865, %v967
          %v994 = vmul.f32 %v866, %v977
          %v995 = vmul.f32 %v867, %v987
          %v997 = vperm.slane %v827, 0
          %v999 = vmul.f32 %v988, %v997
          %v1000 = vmul.f32 %v989, %v997
          %v1001 = vmul.f32 %v990, %v997
          %v1002 = vmul.f32 %v991, %v997
          %v1003 = vmul.f32 %v992, %v997
          %v1004 = vmul.f32 %v993, %v997
          %v1005 = vmul.f32 %v994, %v997
          %v1006 = vmul.f32 %v995, %v997
          %v1008 = vperm.slane %v828, 0
          %v1010 = vadd.f32 %v999, %v1008
          %v1011 = vadd.f32 %v1000, %v1008
          %v1012 = vadd.f32 %v1001, %v1008
          %v1013 = vadd.f32 %v1002, %v1008
          %v1014 = vadd.f32 %v1003, %v1008
          %v1015 = vadd.f32 %v1004, %v1008
          %v1016 = vadd.f32 %v1005, %v1008
          %v1017 = vadd.f32 %v1006, %v1008
          %v1018 = vpack.c.bf16 %v1011, %v1010
          %v1019 = vpack.c.bf16 %v1013, %v1012
          %v1020 = vpack.c.bf16 %v1015, %v1014
          %v1021 = vpack.c.bf16 %v1017, %v1016
          %v1022 = vld [vmem:[#allocation12] sm:$0xf]
          %v1023 = vld [vmem:[#allocation12 + $0x4] sm:$0xf]
          %v1024 = vld [vmem:[#allocation12 + $0x8] sm:$0xf]
          %v1025 = vld [vmem:[#allocation12 + $0xc] sm:$0xf]
          %v1026 = vld [vmem:[#allocation12 + $0x10] sm:$0xf]
          %v1027 = vld [vmem:[#allocation12 + $0x14] sm:$0xf]
          %v1028 = vld [vmem:[#allocation12 + $0x18] sm:$0xf]
          %v1029 = vld [vmem:[#allocation12 + $0x1c] sm:$0xf]
          %v1030 = vld [vmem:[#allocation12 + $0x20] sm:$0xf]
          %v1031 = vld [vmem:[#allocation12 + $0x24] sm:$0xf]
          %v1032 = vld [vmem:[#allocation12 + $0x28] sm:$0xf]
          %v1033 = vld [vmem:[#allocation12 + $0x2c] sm:$0xf]
          %v1034 = vld [vmem:[#allocation12 + $0x30] sm:$0xf]
          %v1035 = vld [vmem:[#allocation12 + $0x34] sm:$0xf]
          %v1036 = vld [vmem:[#allocation12 + $0x38] sm:$0xf]
          %v1037 = vld [vmem:[#allocation12 + $0x3c] sm:$0xf]
          %v1038 = vld [vmem:[%s7] sm:$0x1]
          %v1040 = vperm.slane %v1038, 0
          %v1058 = vunpack.c.l.b16 %v1022
          %v1059 = vunpack.c.l.b16 %v1023
          %v1060 = vunpack.c.l.b16 %v1024
          %v1061 = vunpack.c.l.b16 %v1025
          %v1062 = vunpack.c.l.b16 %v1026
          %v1063 = vunpack.c.l.b16 %v1027
          %v1064 = vunpack.c.l.b16 %v1028
          %v1065 = vunpack.c.l.b16 %v1029
          %v1066 = vunpack.c.l.b16 %v1030
          %v1067 = vunpack.c.l.b16 %v1031
          %v1068 = vunpack.c.l.b16 %v1032
          %v1069 = vunpack.c.l.b16 %v1033
          %v1070 = vunpack.c.l.b16 %v1034
          %v1071 = vunpack.c.l.b16 %v1035
          %v1072 = vunpack.c.l.b16 %v1036
          %v1073 = vunpack.c.l.b16 %v1037
          %v1074 = vpack.c.b16 %v1059, %v1058
          %v1075 = vpack.c.b16 %v1061, %v1060
          %v1076 = vpack.c.b16 %v1063, %v1062
          %v1077 = vpack.c.b16 %v1065, %v1064
          %v1078 = vpack.c.b16 %v1067, %v1066
          %v1079 = vpack.c.b16 %v1069, %v1068
          %v1080 = vpack.c.b16 %v1071, %v1070
          %v1081 = vpack.c.b16 %v1073, %v1072
          %1090 = vmatpush.bf16.msra.mxu0 %v1081
          %1091 = vmatpush.bf16.msra.mxu0 %v1080
          %1092 = vmatpush.bf16.msra.mxu0 %v1079
          %1093 = vmatpush.bf16.msra.mxu0 %v1078
          %1094 = vmatpush.bf16.msra.mxu0 %v1077
          %1095 = vmatpush.bf16.msra.mxu0 %v1076
          %1096 = vmatpush.bf16.msra.mxu0 %v1075
          %1097 = vmatpush.bf16.msra.mxu0 %v1074
          %1098 = vmatmul.bf16.gmra.mxu0 %v1018
          %v1099 = vpop.f32.mrf.mxu0
          %v1100 = vadd.f32 %v1040, %v1099
          %v1101 = vpop.f32.mrf.mxu0
          %v1102 = vadd.f32 %v1040, %v1101
          %1103 = vmatmul.bf16.gmra.mxu0 %v1019
          %v1104 = vpop.f32.mrf.mxu0
          %v1105 = vadd.f32 %v1040, %v1104
          %v1106 = vpop.f32.mrf.mxu0
          %v1107 = vadd.f32 %v1040, %v1106
          %1108 = vmatmul.bf16.gmra.mxu0 %v1020
          %v1109 = vpop.f32.mrf.mxu0
          %v1110 = vadd.f32 %v1040, %v1109
          %v1111 = vpop.f32.mrf.mxu0
          %v1112 = vadd.f32 %v1040, %v1111
          %1113 = vmatmul.bf16.gmra.mxu0 %v1021
          %v1114 = vpop.f32.mrf.mxu0
          %v1115 = vadd.f32 %v1040, %v1114
          %v1116 = vpop.f32.mrf.mxu0
          %v1117 = vadd.f32 %v1040, %v1116
          %1118 = vdwg.mxu0
          %v1119 = vld [vmem:[#allocation13] sm:$0xf]
          %v1120 = vld [vmem:[#allocation13 + $0x4] sm:$0xf]
          %v1121 = vld [vmem:[#allocation13 + $0x8] sm:$0xf]
          %v1122 = vld [vmem:[#allocation13 + $0xc] sm:$0xf]
          %v1123 = vld [vmem:[#allocation13 + $0x10] sm:$0xf]
          %v1124 = vld [vmem:[#allocation13 + $0x14] sm:$0xf]
          %v1125 = vld [vmem:[#allocation13 + $0x18] sm:$0xf]
          %v1126 = vld [vmem:[#allocation13 + $0x1c] sm:$0xf]
          %v1127 = vld [vmem:[#allocation13 + $0x20] sm:$0xf]
          %v1128 = vld [vmem:[#allocation13 + $0x24] sm:$0xf]
          %v1129 = vld [vmem:[#allocation13 + $0x28] sm:$0xf]
          %v1130 = vld [vmem:[#allocation13 + $0x2c] sm:$0xf]
          %v1131 = vld [vmem:[#allocation13 + $0x30] sm:$0xf]
          %v1132 = vld [vmem:[#allocation13 + $0x34] sm:$0xf]
          %v1133 = vld [vmem:[#allocation13 + $0x38] sm:$0xf]
          %v1134 = vld [vmem:[#allocation13 + $0x3c] sm:$0xf]
          %v1135 = vld [vmem:[%s9] sm:$0x1]
          %v1137 = vperm.slane %v1135, 0
          %v1155 = vunpack.c.l.b16 %v1119
          %v1156 = vunpack.c.l.b16 %v1120
          %v1157 = vunpack.c.l.b16 %v1121
          %v1158 = vunpack.c.l.b16 %v1122
          %v1159 = vunpack.c.l.b16 %v1123
          %v1160 = vunpack.c.l.b16 %v1124
          %v1161 = vunpack.c.l.b16 %v1125
          %v1162 = vunpack.c.l.b16 %v1126
          %v1163 = vunpack.c.l.b16 %v1127
          %v1164 = vunpack.c.l.b16 %v1128
          %v1165 = vunpack.c.l.b16 %v1129
          %v1166 = vunpack.c.l.b16 %v1130
          %v1167 = vunpack.c.l.b16 %v1131
          %v1168 = vunpack.c.l.b16 %v1132
          %v1169 = vunpack.c.l.b16 %v1133
          %v1170 = vunpack.c.l.b16 %v1134
          %v1171 = vpack.c.b16 %v1156, %v1155
          %v1172 = vpack.c.b16 %v1158, %v1157
          %v1173 = vpack.c.b16 %v1160, %v1159
          %v1174 = vpack.c.b16 %v1162, %v1161
          %v1175 = vpack.c.b16 %v1164, %v1163
          %v1176 = vpack.c.b16 %v1166, %v1165
          %v1177 = vpack.c.b16 %v1168, %v1167
          %v1178 = vpack.c.b16 %v1170, %v1169
          %1187 = vmatpush.bf16.msra.mxu0 %v1178
          %1188 = vmatpush.bf16.msra.mxu0 %v1177
          %1189 = vmatpush.bf16.msra.mxu0 %v1176
          %1190 = vmatpush.bf16.msra.mxu0 %v1175
          %1191 = vmatpush.bf16.msra.mxu0 %v1174
          %1192 = vmatpush.bf16.msra.mxu0 %v1173
          %1193 = vmatpush.bf16.msra.mxu0 %v1172
          %1194 = vmatpush.bf16.msra.mxu0 %v1171
          %1195 = vmatmul.bf16.gmra.mxu0 %v1018
          %v1196 = vpop.f32.mrf.mxu0
          %v1197 = vadd.f32 %v1137, %v1196
          %v1198 = vpop.f32.mrf.mxu0
          %v1199 = vadd.f32 %v1137, %v1198
          %1200 = vmatmul.bf16.gmra.mxu0 %v1019
          %v1201 = vpop.f32.mrf.mxu0
          %v1202 = vadd.f32 %v1137, %v1201
          %v1203 = vpop.f32.mrf.mxu0
          %v1204 = vadd.f32 %v1137, %v1203
          %1205 = vmatmul.bf16.gmra.mxu0 %v1020
          %v1206 = vpop.f32.mrf.mxu0
          %v1207 = vadd.f32 %v1137, %v1206
          %v1208 = vpop.f32.mrf.mxu0
          %v1209 = vadd.f32 %v1137, %v1208
          %1210 = vmatmul.bf16.gmra.mxu0 %v1021
          %v1211 = vpop.f32.mrf.mxu0
          %v1212 = vadd.f32 %v1137, %v1211
          %v1213 = vpop.f32.mrf.mxu0
          %v1214 = vadd.f32 %v1137, %v1213
          %1215 = vdwg.mxu0
          %v1216 = vpack.c.bf16 %v1100, %v1100
          %v1217 = vpack.c.bf16 %v1102, %v1102
          %v1218 = vpack.c.bf16 %v1105, %v1105
          %v1219 = vpack.c.bf16 %v1107, %v1107
          %v1220 = vpack.c.bf16 %v1110, %v1110
          %v1221 = vpack.c.bf16 %v1112, %v1112
          %v1222 = vpack.c.bf16 %v1115, %v1115
          %v1223 = vpack.c.bf16 %v1117, %v1117
          %1224 = vst [vmem:[#allocation2] sm:$0xf] %v1216
          %1225 = vst [vmem:[#allocation2 + $0x4] sm:$0xf] %v1217
          %1226 = vst [vmem:[#allocation2 + $0x8] sm:$0xf] %v1218
          %1227 = vst [vmem:[#allocation2 + $0xc] sm:$0xf] %v1219
          %1228 = vst [vmem:[#allocation2 + $0x10] sm:$0xf] %v1220
          %1229 = vst [vmem:[#allocation2 + $0x14] sm:$0xf] %v1221
          %1230 = vst [vmem:[#allocation2 + $0x18] sm:$0xf] %v1222
          %1231 = vst [vmem:[#allocation2 + $0x1c] sm:$0xf] %v1223
          %v1232 = vpack.c.bf16 %v1197, %v1197
          %v1233 = vpack.c.bf16 %v1199, %v1199
          %v1234 = vpack.c.bf16 %v1202, %v1202
          %v1235 = vpack.c.bf16 %v1204, %v1204
          %v1236 = vpack.c.bf16 %v1207, %v1207
          %v1237 = vpack.c.bf16 %v1209, %v1209
          %v1238 = vpack.c.bf16 %v1212, %v1212
          %v1239 = vpack.c.bf16 %v1214, %v1214
          %1240 = vst [vmem:[#allocation3] sm:$0xf] %v1232
          %1241 = vst [vmem:[#allocation3 + $0x4] sm:$0xf] %v1233
          %1242 = vst [vmem:[#allocation3 + $0x8] sm:$0xf] %v1234
          %1243 = vst [vmem:[#allocation3 + $0xc] sm:$0xf] %v1235
          %1244 = vst [vmem:[#allocation3 + $0x10] sm:$0xf] %v1236
          %1245 = vst [vmem:[#allocation3 + $0x14] sm:$0xf] %v1237
          %1246 = vst [vmem:[#allocation3 + $0x18] sm:$0xf] %v1238
          %1247 = vst [vmem:[#allocation3 + $0x1c] sm:$0xf] %v1239
        $region140: #{tpu_custom_call.1} parent=99 // pred_fallthru
          _
        %vm1248 = vcmp.gt.f32.partialorder %v814, 0.5
        %v1249 = vsel %vm1248, -1e+18, 0.0
        %s1250 = smul.u32 %s48, 32
        %s1251 = scalar_lea.vmem %s706, %s1250 [#allocation4]
        %v1252 = vld [vmem:[%s1251] sm:$0xff]
        %v1253 = vld [vmem:[%s1251 + $0x8] sm:$0xff]
        %v1254 = vld [vmem:[%s1251 + $0x10] sm:$0xff]
        %v1255 = vld [vmem:[%s1251 + $0x18] sm:$0xff]
        %v1256 = vld [vmem:[%s2] sm:$0x1]
        %v1257 = vld [vmem:[#allocation9] sm:$0x1]
        %1258 = vadd.xlane.f32.xlu0 %v1252
        %v1259 = vpop.xlane.xlu0 %1258
        %1260 = vadd.xlane.f32.xlu0 %v1253
        %v1261 = vpop.xlane.xlu0 %1260
        %1262 = vadd.xlane.f32.xlu0 %v1254
        %v1263 = vpop.xlane.xlu0 %1262
        %1264 = vadd.xlane.f32.xlu0 %v1255
        %v1265 = vpop.xlane.xlu0 %1264
        %v1266 = vrcp.pop 128.0
        %v1267 = vmul.f32 128.0, %v1266
        %v1268 = vsub.f32 1.0, %v1267
        %v1269 = vmul.f32 %v1266, %v1268
        %v1270 = vadd.f32 %v1266, %v1269
        %vm1271 = vweird.f32 %v1266
        %v1272 = vsel %vm1271, %v1266, %v1270
        %v1273 = vmul.f32 %v1259, %v1272
        %v1274 = vmul.f32 %v1261, %v1272
        %v1275 = vmul.f32 %v1263, %v1272
        %v1276 = vmul.f32 %v1265, %v1272
        %v1277 = vsub.f32 %v1252, %v1273
        %v1278 = vsub.f32 %v1253, %v1274
        %v1279 = vsub.f32 %v1254, %v1275
        %v1280 = vsub.f32 %v1255, %v1276
        %v1281 = vmul.f32 %v1277, %v1277
        %v1282 = vmul.f32 %v1278, %v1278
        %v1283 = vmul.f32 %v1279, %v1279
        %v1284 = vmul.f32 %v1280, %v1280
        %1285 = vadd.xlane.f32.xlu0 %v1281
        %v1286 = vpop.xlane.xlu0 %1285
        %1287 = vadd.xlane.f32.xlu0 %v1282
        %v1288 = vpop.xlane.xlu0 %1287
        %1289 = vadd.xlane.f32.xlu0 %v1283
        %v1290 = vpop.xlane.xlu0 %1289
        %1291 = vadd.xlane.f32.xlu0 %v1284
        %v1292 = vpop.xlane.xlu0 %1291
        %v1293 = vmul.f32 %v1286, %v1272
        %v1294 = vmul.f32 %v1288, %v1272
        %v1295 = vmul.f32 %v1290, %v1272
        %v1296 = vmul.f32 %v1292, %v1272
        %v1297 = vadd.f32 %v1293, 1e-06
        %v1298 = vadd.f32 %v1294, 1e-06
        %v1299 = vadd.f32 %v1295, 1e-06
        %v1300 = vadd.f32 %v1296, 1e-06
        %v1301 = vrsqrt.pop %v1297
        %v1302 = vmul.f32 %v1301, %v1297
        %v1303 = vmul.f32 %v1302, %v1301
        %v1304 = vmul.f32 0.5, %v1303
        %v1305 = vsub.f32 1.5, %v1304
        %v1306 = vmul.f32 %v1301, %v1305
        %vm1307 = vweird.f32 %v1297
        %vm1308 = vweird.f32 %v1301
        %vm1309 = vmor %vm1307, %vm1308
        %v1310 = vsel %vm1309, %v1301, %v1306
        %v1311 = vrsqrt.pop %v1298
        %v1312 = vmul.f32 %v1311, %v1298
        %v1313 = vmul.f32 %v1312, %v1311
        %v1314 = vmul.f32 0.5, %v1313
        %v1315 = vsub.f32 1.5, %v1314
        %v1316 = vmul.f32 %v1311, %v1315
        %vm1317 = vweird.f32 %v1298
        %vm1318 = vweird.f32 %v1311
        %vm1319 = vmor %vm1317, %vm1318
        %v1320 = vsel %vm1319, %v1311, %v1316
        %v1321 = vrsqrt.pop %v1299
        %v1322 = vmul.f32 %v1321, %v1299
        %v1323 = vmul.f32 %v1322, %v1321
        %v1324 = vmul.f32 0.5, %v1323
        %v1325 = vsub.f32 1.5, %v1324
        %v1326 = vmul.f32 %v1321, %v1325
        %vm1327 = vweird.f32 %v1299
        %vm1328 = vweird.f32 %v1321
        %vm1329 = vmor %vm1327, %vm1328
        %v1330 = vsel %vm1329, %v1321, %v1326
        %v1331 = vrsqrt.pop %v1300
        %v1332 = vmul.f32 %v1331, %v1300
        %v1333 = vmul.f32 %v1332, %v1331
        %v1334 = vmul.f32 0.5, %v1333
        %v1335 = vsub.f32 1.5, %v1334
        %v1336 = vmul.f32 %v1331, %v1335
        %vm1337 = vweird.f32 %v1300
        %vm1338 = vweird.f32 %v1331
        %vm1339 = vmor %vm1337, %vm1338
        %v1340 = vsel %vm1339, %v1331, %v1336
        %v1341 = vmul.f32 %v1277, %v1310
        %v1342 = vmul.f32 %v1278, %v1320
        %v1343 = vmul.f32 %v1279, %v1330
        %v1344 = vmul.f32 %v1280, %v1340
        %v1346 = vperm.slane %v1256, 0
        %v1348 = vmul.f32 %v1341, %v1346
        %v1349 = vmul.f32 %v1342, %v1346
        %v1350 = vmul.f32 %v1343, %v1346
        %v1351 = vmul.f32 %v1344, %v1346
        %v1353 = vperm.slane %v1257, 0
        %v1355 = vadd.f32 %v1348, %v1353
        %v1356 = vadd.f32 %v1349, %v1353
        %v1357 = vadd.f32 %v1350, %v1353
        %v1358 = vadd.f32 %v1351, %v1353
        %v1359 = vpack.c.bf16 %v1356, %v1355
        %v1360 = vpack.c.bf16 %v1358, %v1357
        %v1361 = vld [vmem:[#allocation10] sm:$0xf]
        %v1362 = vld [vmem:[#allocation10 + $0x4] sm:$0xf]
        %v1363 = vld [vmem:[#allocation10 + $0x8] sm:$0xf]
        %v1364 = vld [vmem:[#allocation10 + $0xc] sm:$0xf]
        %v1365 = vld [vmem:[#allocation10 + $0x10] sm:$0xf]
        %v1366 = vld [vmem:[#allocation10 + $0x14] sm:$0xf]
        %v1367 = vld [vmem:[#allocation10 + $0x18] sm:$0xf]
        %v1368 = vld [vmem:[#allocation10 + $0x1c] sm:$0xf]
        %v1369 = vld [vmem:[#allocation10 + $0x20] sm:$0xf]
        %v1370 = vld [vmem:[#allocation10 + $0x24] sm:$0xf]
        %v1371 = vld [vmem:[#allocation10 + $0x28] sm:$0xf]
        %v1372 = vld [vmem:[#allocation10 + $0x2c] sm:$0xf]
        %v1373 = vld [vmem:[#allocation10 + $0x30] sm:$0xf]
        %v1374 = vld [vmem:[#allocation10 + $0x34] sm:$0xf]
        %v1375 = vld [vmem:[#allocation10 + $0x38] sm:$0xf]
        %v1376 = vld [vmem:[#allocation10 + $0x3c] sm:$0xf]
        %v1377 = vld [vmem:[%s5] sm:$0x1]
        %v1379 = vperm.slane %v1377, 0
        %v1397 = vunpack.c.l.b16 %v1361
        %v1398 = vunpack.c.l.b16 %v1362
        %v1399 = vunpack.c.l.b16 %v1363
        %v1400 = vunpack.c.l.b16 %v1364
        %v1401 = vunpack.c.l.b16 %v1365
        %v1402 = vunpack.c.l.b16 %v1366
        %v1403 = vunpack.c.l.b16 %v1367
        %v1404 = vunpack.c.l.b16 %v1368
        %v1405 = vunpack.c.l.b16 %v1369
        %v1406 = vunpack.c.l.b16 %v1370
        %v1407 = vunpack.c.l.b16 %v1371
        %v1408 = vunpack.c.l.b16 %v1372
        %v1409 = vunpack.c.l.b16 %v1373
        %v1410 = vunpack.c.l.b16 %v1374
        %v1411 = vunpack.c.l.b16 %v1375
        %v1412 = vunpack.c.l.b16 %v1376
        %v1413 = vpack.c.b16 %v1398, %v1397
        %v1414 = vpack.c.b16 %v1400, %v1399
        %v1415 = vpack.c.b16 %v1402, %v1401
        %v1416 = vpack.c.b16 %v1404, %v1403
        %v1417 = vpack.c.b16 %v1406, %v1405
        %v1418 = vpack.c.b16 %v1408, %v1407
        %v1419 = vpack.c.b16 %v1410, %v1409
        %v1420 = vpack.c.b16 %v1412, %v1411
        %1429 = vmatpush.bf16.msra.mxu0 %v1420
        %1430 = vmatpush.bf16.msra.mxu0 %v1419
        %1431 = vmatpush.bf16.msra.mxu0 %v1418
        %1432 = vmatpush.bf16.msra.mxu0 %v1417
        %1433 = vmatpush.bf16.msra.mxu0 %v1416
        %1434 = vmatpush.bf16.msra.mxu0 %v1415
        %1435 = vmatpush.bf16.msra.mxu0 %v1414
        %1436 = vmatpush.bf16.msra.mxu0 %v1413
        %1437 = vmatmul.bf16.gmra.mxu0 %v1359
        %v1438 = vpop.f32.mrf.mxu0
        %v1439 = vadd.f32 %v1379, %v1438
        %v1440 = vpop.f32.mrf.mxu0
        %v1441 = vadd.f32 %v1379, %v1440
        %1442 = vmatmul.bf16.gmra.mxu0 %v1360
        %v1443 = vpop.f32.mrf.mxu0
        %v1444 = vadd.f32 %v1379, %v1443
        %v1445 = vpop.f32.mrf.mxu0
        %v1446 = vadd.f32 %v1379, %v1445
        %1447 = vdwg.mxu0
        %v1448 = vld [vmem:[#allocation2] sm:$0xf]
        %v1449 = vld [vmem:[#allocation2 + $0x4] sm:$0xf]
        %v1450 = vld [vmem:[#allocation2 + $0x8] sm:$0xf]
        %v1451 = vld [vmem:[#allocation2 + $0xc] sm:$0xf]
        %v1452 = vld [vmem:[#allocation2 + $0x10] sm:$0xf]
        %v1453 = vld [vmem:[#allocation2 + $0x14] sm:$0xf]
        %v1454 = vld [vmem:[#allocation2 + $0x18] sm:$0xf]
        %v1455 = vld [vmem:[#allocation2 + $0x1c] sm:$0xf]
        %v1456 = vld [vmem:[#allocation3] sm:$0xf]
        %v1457 = vld [vmem:[#allocation3 + $0x4] sm:$0xf]
        %v1458 = vld [vmem:[#allocation3 + $0x8] sm:$0xf]
        %v1459 = vld [vmem:[#allocation3 + $0xc] sm:$0xf]
        %v1460 = vld [vmem:[#allocation3 + $0x10] sm:$0xf]
        %v1461 = vld [vmem:[#allocation3 + $0x14] sm:$0xf]
        %v1462 = vld [vmem:[#allocation3 + $0x18] sm:$0xf]
        %v1463 = vld [vmem:[#allocation3 + $0x1c] sm:$0xf]
        %v1464 = vmul.f32 %v1439, 0.17677669
        %v1465 = vmul.f32 %v1441, 0.17677669
        %v1466 = vmul.f32 %v1444, 0.17677669
        %v1467 = vmul.f32 %v1446, 0.17677669
        %v1468 = vpack.c.bf16 %v1465, %v1464
        %v1469 = vpack.c.bf16 %v1467, %v1466
        %v1471 = vperm.slane %v1249, 0
        %v1481 = vunpack.c.l.b16 %v1448
        %v1482 = vunpack.c.l.b16 %v1449
        %v1483 = vunpack.c.l.b16 %v1450
        %v1484 = vunpack.c.l.b16 %v1451
        %v1485 = vunpack.c.l.b16 %v1452
        %v1486 = vunpack.c.l.b16 %v1453
        %v1487 = vunpack.c.l.b16 %v1454
        %v1488 = vunpack.c.l.b16 %v1455
        %v1489 = vpack.c.b16 %v1482, %v1481
        %v1490 = vpack.c.b16 %v1484, %v1483
        %v1491 = vpack.c.b16 %v1486, %v1485
        %v1492 = vpack.c.b16 %v1488, %v1487
        %vm1493 = vcmask 261120
        %v1495 = vsel %vm1493, %v1468, 0
        %v1498 = vsel %vm1493, %v1469, 0
        %v1501 = vsel %vm1493, %v1489, 0
        %v1504 = vsel %vm1493, %v1490, 0
        %v1507 = vsel %vm1493, %v1491, 0
        %v1510 = vsel %vm1493, %v1492, 0
        %1512 = vmatpush.bf16.xpose.msra.mxu0 0
        %1513 = vmatpush.bf16.xpose.msra.mxu0 0
        %1514 = vmatpush.bf16.xpose.msra.mxu0 0
        %1515 = vmatpush.bf16.xpose.msra.mxu0 0
        %1516 = vmatpush.bf16.xpose.msra.mxu0 %v1510
        %1517 = vmatpush.bf16.xpose.msra.mxu0 %v1507
        %1518 = vmatpush.bf16.xpose.msra.mxu0 %v1504
        %1519 = vmatpush.bf16.xpose.msra.mxu0 %v1501
        %1520 = vmatmul.bf16.gmra.mxu0 %v1495
        %v1521 = vpop.f32.mrf.mxu0
        %v1522 = vadd.f32 %v1471, %v1521
        %v1523 = vpop.f32.mrf.mxu0
        %v1524 = vadd.f32 %v1471, %v1523
        %1525 = vmatmul.bf16.gmra.mxu0 %v1498
        %v1526 = vpop.f32.mrf.mxu0
        %v1527 = vadd.f32 %v1471, %v1526
        %v1528 = vpop.f32.mrf.mxu0
        %v1529 = vadd.f32 %v1471, %v1528
        %1530 = vdwg.mxu0
        %vm1531 = vcmask 523264
        %v1532 = vsel %vm1531, %v1522, -inf
        %1533 = vmax.xlane.f32.xlu0 %v1532
        %v1534 = vpop.xlane.xlu0 %1533
        %v1535 = vsel %vm1531, %v1524, -inf
        %1536 = vmax.xlane.f32.xlu0 %v1535
        %v1537 = vpop.xlane.xlu0 %1536
        %v1538 = vsel %vm1531, %v1527, -inf
        %1539 = vmax.xlane.f32.xlu0 %v1538
        %v1540 = vpop.xlane.xlu0 %1539
        %v1541 = vsel %vm1531, %v1529, -inf
        %1542 = vmax.xlane.f32.xlu0 %v1541
        %v1543 = vpop.xlane.xlu0 %1542
        %v1544 = vsub.f32 %v1522, %v1534
        %v1545 = vsub.f32 %v1524, %v1537
        %v1546 = vsub.f32 %v1527, %v1540
        %v1547 = vsub.f32 %v1529, %v1543
        %v1548 = vmul.f32 %v1544, 1.442695
        %v1549 = vpow.pop %v1548
        %v1550 = vmul.f32 %v1545, 1.442695
        %v1551 = vpow.pop %v1550
        %v1552 = vmul.f32 %v1546, 1.442695
        %v1553 = vpow.pop %v1552
        %v1554 = vmul.f32 %v1547, 1.442695
        %v1555 = vpow.pop %v1554
        %v1556 = vsel %vm1531, %v1549, 0.0
        %1557 = vadd.xlane.f32.xlu0 %v1556
        %v1558 = vpop.xlane.xlu0 %1557
        %v1559 = vsel %vm1531, %v1551, 0.0
        %1560 = vadd.xlane.f32.xlu0 %v1559
        %v1561 = vpop.xlane.xlu0 %1560
        %v1562 = vsel %vm1531, %v1553, 0.0
        %1563 = vadd.xlane.f32.xlu0 %v1562
        %v1564 = vpop.xlane.xlu0 %1563
        %v1565 = vsel %vm1531, %v1555, 0.0
        %1566 = vadd.xlane.f32.xlu0 %v1565
        %v1567 = vpop.xlane.xlu0 %1566
        %v1568 = vpack.c.bf16 %v1551, %v1549
        %v1569 = vpack.c.bf16 %v1555, %v1553
        %v1578 = vunpack.c.l.b16 %v1456
        %v1579 = vunpack.c.l.b16 %v1457
        %v1580 = vunpack.c.l.b16 %v1458
        %v1581 = vunpack.c.l.b16 %v1459
        %v1582 = vunpack.c.l.b16 %v1460
        %v1583 = vunpack.c.l.b16 %v1461
        %v1584 = vunpack.c.l.b16 %v1462
        %v1585 = vunpack.c.l.b16 %v1463
        %v1586 = vpack.c.b16 %v1579, %v1578
        %v1587 = vpack.c.b16 %v1581, %v1580
        %v1588 = vpack.c.b16 %v1583, %v1582
        %v1589 = vpack.c.b16 %v1585, %v1584
        %v1595 = vsel %vm1531, %v1568, 0
        %v1598 = vsel %vm1531, %v1569, 0
        %1600 = vmatpush.bf16.msra.mxu0 0
        %1601 = vmatpush.bf16.msra.mxu0 0
        %1602 = vmatpush.bf16.msra.mxu0 0
        %1603 = vmatpush.bf16.msra.mxu0 0
        %1604 = vmatpush.bf16.msra.mxu0 %v1589
        %1605 = vmatpush.bf16.msra.mxu0 %v1588
        %1606 = vmatpush.bf16.msra.mxu0 %v1587
        %1607 = vmatpush.bf16.msra.mxu0 %v1586
        %1608 = vmatmul.bf16.gmra.mxu0 %v1595
        %v1609 = vpop.f32.mrf.mxu0
        %v1610 = vadd.f32 0.0, %v1609
        %v1611 = vpop.f32.mrf.mxu0
        %v1612 = vadd.f32 0.0, %v1611
        %1613 = vmatmul.bf16.gmra.mxu0 %v1598
        %v1614 = vpop.f32.mrf.mxu0
        %v1615 = vadd.f32 0.0, %v1614
        %v1616 = vpop.f32.mrf.mxu0
        %v1617 = vadd.f32 0.0, %v1616
        %1618 = vdwg.mxu0
        %v1619 = vrcp.pop %v1558
        %v1620 = vrcp.pop %v1561
        %v1621 = vrcp.pop %v1564
        %v1622 = vrcp.pop %v1567
        %v1623 = vmul.f32 %v1610, %v1619
        %v1624 = vmul.f32 %v1612, %v1620
        %v1625 = vmul.f32 %v1615, %v1621
        %v1626 = vmul.f32 %v1617, %v1622
        %1629 = vrot.lane.b32.xlu0 %v1468, 96
        %v1630 = vpop.permute.xlu0 %1629
        %1631 = vrot.lane.b32.xlu0 %v1469, 96
        %v1632 = vpop.permute.xlu0 %1631
        %1633 = vrot.lane.b32.xlu0 %v1489, 96
        %v1634 = vpop.permute.xlu0 %1633
        %1635 = vrot.lane.b32.xlu0 %v1490, 96
        %v1636 = vpop.permute.xlu0 %1635
        %1637 = vrot.lane.b32.xlu0 %v1491, 96
        %v1638 = vpop.permute.xlu0 %1637
        %1639 = vrot.lane.b32.xlu0 %v1492, 96
        %v1640 = vpop.permute.xlu0 %1639
        %v1642 = vsel %vm1493, %v1630, 0
        %v1645 = vsel %vm1493, %v1632, 0
        %v1648 = vsel %vm1493, %v1634, 0
        %v1651 = vsel %vm1493, %v1636, 0
        %v1654 = vsel %vm1493, %v1638, 0
        %v1657 = vsel %vm1493, %v1640, 0
        %1659 = vmatpush.bf16.xpose.msra.mxu0 0
        %1660 = vmatpush.bf16.xpose.msra.mxu0 0
        %1661 = vmatpush.bf16.xpose.msra.mxu0 0
        %1662 = vmatpush.bf16.xpose.msra.mxu0 0
        %1663 = vmatpush.bf16.xpose.msra.mxu0 %v1657
        %1664 = vmatpush.bf16.xpose.msra.mxu0 %v1654
        %1665 = vmatpush.bf16.xpose.msra.mxu0 %v1651
        %1666 = vmatpush.bf16.xpose.msra.mxu0 %v1648
        %1667 = vmatmul.bf16.gmra.mxu0 %v1642
        %v1668 = vpop.f32.mrf.mxu0
        %v1669 = vadd.f32 %v1471, %v1668
        %v1670 = vpop.f32.mrf.mxu0
        %v1671 = vadd.f32 %v1471, %v1670
        %1672 = vmatmul.bf16.gmra.mxu0 %v1645
        %v1673 = vpop.f32.mrf.mxu0
        %v1674 = vadd.f32 %v1471, %v1673
        %v1675 = vpop.f32.mrf.mxu0
        %v1676 = vadd.f32 %v1471, %v1675
        %1677 = vdwg.mxu0
        %v1678 = vsel %vm1531, %v1669, -inf
        %1679 = vmax.xlane.f32.xlu0 %v1678
        %v1680 = vpop.xlane.xlu0 %1679
        %v1681 = vsel %vm1531, %v1671, -inf
        %1682 = vmax.xlane.f32.xlu0 %v1681
        %v1683 = vpop.xlane.xlu0 %1682
        %v1684 = vsel %vm1531, %v1674, -inf
        %1685 = vmax.xlane.f32.xlu0 %v1684
        %v1686 = vpop.xlane.xlu0 %1685
        %v1687 = vsel %vm1531, %v1676, -inf
        %1688 = vmax.xlane.f32.xlu0 %v1687
        %v1689 = vpop.xlane.xlu0 %1688
        %v1690 = vsub.f32 %v1669, %v1680
        %v1691 = vsub.f32 %v1671, %v1683
        %v1692 = vsub.f32 %v1674, %v1686
        %v1693 = vsub.f32 %v1676, %v1689
        %v1694 = vmul.f32 %v1690, 1.442695
        %v1695 = vpow.pop %v1694
        %v1696 = vmul.f32 %v1691, 1.442695
        %v1697 = vpow.pop %v1696
        %v1698 = vmul.f32 %v1692, 1.442695
        %v1699 = vpow.pop %v1698
        %v1700 = vmul.f32 %v1693, 1.442695
        %v1701 = vpow.pop %v1700
        %v1702 = vsel %vm1531, %v1695, 0.0
        %1703 = vadd.xlane.f32.xlu0 %v1702
        %v1704 = vpop.xlane.xlu0 %1703
        %v1705 = vsel %vm1531, %v1697, 0.0
        %1706 = vadd.xlane.f32.xlu0 %v1705
        %v1707 = vpop.xlane.xlu0 %1706
        %v1708 = vsel %vm1531, %v1699, 0.0
        %1709 = vadd.xlane.f32.xlu0 %v1708
        %v1710 = vpop.xlane.xlu0 %1709
        %v1711 = vsel %vm1531, %v1701, 0.0
        %1712 = vadd.xlane.f32.xlu0 %v1711
        %v1713 = vpop.xlane.xlu0 %1712
        %v1714 = vpack.c.bf16 %v1697, %v1695
        %v1715 = vpack.c.bf16 %v1701, %v1699
        %1716 = vrot.lane.b32.xlu0 %v1586, 96
        %v1717 = vpop.permute.xlu0 %1716
        %1718 = vrot.lane.b32.xlu0 %v1587, 96
        %v1719 = vpop.permute.xlu0 %1718
        %1720 = vrot.lane.b32.xlu0 %v1588, 96
        %v1721 = vpop.permute.xlu0 %1720
        %1722 = vrot.lane.b32.xlu0 %v1589, 96
        %v1723 = vpop.permute.xlu0 %1722
        %v1729 = vsel %vm1531, %v1714, 0
        %v1732 = vsel %vm1531, %v1715, 0
        %1734 = vmatpush.bf16.msra.mxu0 0
        %1735 = vmatpush.bf16.msra.mxu0 0
        %1736 = vmatpush.bf16.msra.mxu0 0
        %1737 = vmatpush.bf16.msra.mxu0 0
        %1738 = vmatpush.bf16.msra.mxu0 %v1723
        %1739 = vmatpush.bf16.msra.mxu0 %v1721
        %1740 = vmatpush.bf16.msra.mxu0 %v1719
        %1741 = vmatpush.bf16.msra.mxu0 %v1717
        %1742 = vmatmul.bf16.gmra.mxu0 %v1729
        %v1743 = vpop.f32.mrf.mxu0
        %v1744 = vadd.f32 0.0, %v1743
        %v1745 = vpop.f32.mrf.mxu0
        %v1746 = vadd.f32 0.0, %v1745
        %1747 = vmatmul.bf16.gmra.mxu0 %v1732
        %v1748 = vpop.f32.mrf.mxu0
        %v1749 = vadd.f32 0.0, %v1748
        %v1750 = vpop.f32.mrf.mxu0
        %v1751 = vadd.f32 0.0, %v1750
        %1752 = vdwg.mxu0
        %v1753 = vrcp.pop %v1704
        %v1754 = vrcp.pop %v1707
        %v1755 = vrcp.pop %v1710
        %v1756 = vrcp.pop %v1713
        %v1757 = vmul.f32 %v1744, %v1753
        %v1758 = vmul.f32 %v1746, %v1754
        %v1759 = vmul.f32 %v1749, %v1755
        %v1760 = vmul.f32 %v1751, %v1756
        %1761 = vrot.lane.b32.xlu0 %v1468, 64
        %v1762 = vpop.permute.xlu0 %1761
        %1763 = vrot.lane.b32.xlu0 %v1469, 64
        %v1764 = vpop.permute.xlu0 %1763
        %1765 = vrot.lane.b32.xlu0 %v1489, 64
        %v1766 = vpop.permute.xlu0 %1765
        %1767 = vrot.lane.b32.xlu0 %v1490, 64
        %v1768 = vpop.permute.xlu0 %1767
        %1769 = vrot.lane.b32.xlu0 %v1491, 64
        %v1770 = vpop.permute.xlu0 %1769
        %1771 = vrot.lane.b32.xlu0 %v1492, 64
        %v1772 = vpop.permute.xlu0 %1771
        %v1774 = vsel %vm1493, %v1762, 0
        %v1777 = vsel %vm1493, %v1764, 0
        %v1780 = vsel %vm1493, %v1766, 0
        %v1783 = vsel %vm1493, %v1768, 0
        %v1786 = vsel %vm1493, %v1770, 0
        %v1789 = vsel %vm1493, %v1772, 0
        %1791 = vmatpush.bf16.xpose.msra.mxu0 0
        %1792 = vmatpush.bf16.xpose.msra.mxu0 0
        %1793 = vmatpush.bf16.xpose.msra.mxu0 0
        %1794 = vmatpush.bf16.xpose.msra.mxu0 0
        %1795 = vmatpush.bf16.xpose.msra.mxu0 %v1789
        %1796 = vmatpush.bf16.xpose.msra.mxu0 %v1786
        %1797 = vmatpush.bf16.xpose.msra.mxu0 %v1783
        %1798 = vmatpush.bf16.xpose.msra.mxu0 %v1780
        %1799 = vmatmul.bf16.gmra.mxu0 %v1774
        %v1800 = vpop.f32.mrf.mxu0
        %v1801 = vadd.f32 %v1471, %v1800
        %v1802 = vpop.f32.mrf.mxu0
        %v1803 = vadd.f32 %v1471, %v1802
        %1804 = vmatmul.bf16.gmra.mxu0 %v1777
        %v1805 = vpop.f32.mrf.mxu0
        %v1806 = vadd.f32 %v1471, %v1805
        %v1807 = vpop.f32.mrf.mxu0
        %v1808 = vadd.f32 %v1471, %v1807
        %1809 = vdwg.mxu0
        %v1810 = vsel %vm1531, %v1801, -inf
        %1811 = vmax.xlane.f32.xlu0 %v1810
        %v1812 = vpop.xlane.xlu0 %1811
        %v1813 = vsel %vm1531, %v1803, -inf
        %1814 = vmax.xlane.f32.xlu0 %v1813
        %v1815 = vpop.xlane.xlu0 %1814
        %v1816 = vsel %vm1531, %v1806, -inf
        %1817 = vmax.xlane.f32.xlu0 %v1816
        %v1818 = vpop.xlane.xlu0 %1817
        %v1819 = vsel %vm1531, %v1808, -inf
        %1820 = vmax.xlane.f32.xlu0 %v1819
        %v1821 = vpop.xlane.xlu0 %1820
        %v1822 = vsub.f32 %v1801, %v1812
        %v1823 = vsub.f32 %v1803, %v1815
        %v1824 = vsub.f32 %v1806, %v1818
        %v1825 = vsub.f32 %v1808, %v1821
        %v1826 = vmul.f32 %v1822, 1.442695
        %v1827 = vpow.pop %v1826
        %v1828 = vmul.f32 %v1823, 1.442695
        %v1829 = vpow.pop %v1828
        %v1830 = vmul.f32 %v1824, 1.442695
        %v1831 = vpow.pop %v1830
        %v1832 = vmul.f32 %v1825, 1.442695
        %v1833 = vpow.pop %v1832
        %v1834 = vsel %vm1531, %v1827, 0.0
        %1835 = vadd.xlane.f32.xlu0 %v1834
        %v1836 = vpop.xlane.xlu0 %1835
        %v1837 = vsel %vm1531, %v1829, 0.0
        %1838 = vadd.xlane.f32.xlu0 %v1837
        %v1839 = vpop.xlane.xlu0 %1838
        %v1840 = vsel %vm1531, %v1831, 0.0
        %1841 = vadd.xlane.f32.xlu0 %v1840
        %v1842 = vpop.xlane.xlu0 %1841
        %v1843 = vsel %vm1531, %v1833, 0.0
        %1844 = vadd.xlane.f32.xlu0 %v1843
        %v1845 = vpop.xlane.xlu0 %1844
        %v1846 = vpack.c.bf16 %v1829, %v1827
        %v1847 = vpack.c.bf16 %v1833, %v1831
        %1848 = vrot.lane.b32.xlu0 %v1586, 64
        %v1849 = vpop.permute.xlu0 %1848
        %1850 = vrot.lane.b32.xlu0 %v1587, 64
        %v1851 = vpop.permute.xlu0 %1850
        %1852 = vrot.lane.b32.xlu0 %v1588, 64
        %v1853 = vpop.permute.xlu0 %1852
        %1854 = vrot.lane.b32.xlu0 %v1589, 64
        %v1855 = vpop.permute.xlu0 %1854
        %v1861 = vsel %vm1531, %v1846, 0
        %v1864 = vsel %vm1531, %v1847, 0
        %1866 = vmatpush.bf16.msra.mxu0 0
        %1867 = vmatpush.bf16.msra.mxu0 0
        %1868 = vmatpush.bf16.msra.mxu0 0
        %1869 = vmatpush.bf16.msra.mxu0 0
        %1870 = vmatpush.bf16.msra.mxu0 %v1855
        %1871 = vmatpush.bf16.msra.mxu0 %v1853
        %1872 = vmatpush.bf16.msra.mxu0 %v1851
        %1873 = vmatpush.bf16.msra.mxu0 %v1849
        %1874 = vmatmul.bf16.gmra.mxu0 %v1861
        %v1875 = vpop.f32.mrf.mxu0
        %v1876 = vadd.f32 0.0, %v1875
        %v1877 = vpop.f32.mrf.mxu0
        %v1878 = vadd.f32 0.0, %v1877
        %1879 = vmatmul.bf16.gmra.mxu0 %v1864
        %v1880 = vpop.f32.mrf.mxu0
        %v1881 = vadd.f32 0.0, %v1880
        %v1882 = vpop.f32.mrf.mxu0
        %v1883 = vadd.f32 0.0, %v1882
        %1884 = vdwg.mxu0
        %v1885 = vrcp.pop %v1836
        %v1886 = vrcp.pop %v1839
        %v1887 = vrcp.pop %v1842
        %v1888 = vrcp.pop %v1845
        %v1889 = vmul.f32 %v1876, %v1885
        %v1890 = vmul.f32 %v1878, %v1886
        %v1891 = vmul.f32 %v1881, %v1887
        %v1892 = vmul.f32 %v1883, %v1888
        %1893 = vrot.lane.b32.xlu0 %v1468, 32
        %v1894 = vpop.permute.xlu0 %1893
        %1895 = vrot.lane.b32.xlu0 %v1469, 32
        %v1896 = vpop.permute.xlu0 %1895
        %1897 = vrot.lane.b32.xlu0 %v1489, 32
        %v1898 = vpop.permute.xlu0 %1897
        %1899 = vrot.lane.b32.xlu0 %v1490, 32
        %v1900 = vpop.permute.xlu0 %1899
        %1901 = vrot.lane.b32.xlu0 %v1491, 32
        %v1902 = vpop.permute.xlu0 %1901
        %1903 = vrot.lane.b32.xlu0 %v1492, 32
        %v1904 = vpop.permute.xlu0 %1903
        %v1906 = vsel %vm1493, %v1894, 0
        %v1909 = vsel %vm1493, %v1896, 0
        %v1912 = vsel %vm1493, %v1898, 0
        %v1915 = vsel %vm1493, %v1900, 0
        %v1918 = vsel %vm1493, %v1902, 0
        %v1921 = vsel %vm1493, %v1904, 0
        %1923 = vmatpush.bf16.xpose.msra.mxu0 0
        %1924 = vmatpush.bf16.xpose.msra.mxu0 0
        %1925 = vmatpush.bf16.xpose.msra.mxu0 0
        %1926 = vmatpush.bf16.xpose.msra.mxu0 0
        %1927 = vmatpush.bf16.xpose.msra.mxu0 %v1921
        %1928 = vmatpush.bf16.xpose.msra.mxu0 %v1918
        %1929 = vmatpush.bf16.xpose.msra.mxu0 %v1915
        %1930 = vmatpush.bf16.xpose.msra.mxu0 %v1912
        %1931 = vmatmul.bf16.gmra.mxu0 %v1906
        %v1932 = vpop.f32.mrf.mxu0
        %v1933 = vadd.f32 %v1471, %v1932
        %v1934 = vpop.f32.mrf.mxu0
        %v1935 = vadd.f32 %v1471, %v1934
        %1936 = vmatmul.bf16.gmra.mxu0 %v1909
        %v1937 = vpop.f32.mrf.mxu0
        %v1938 = vadd.f32 %v1471, %v1937
        %v1939 = vpop.f32.mrf.mxu0
        %v1940 = vadd.f32 %v1471, %v1939
        %1941 = vdwg.mxu0
        %v1942 = vsel %vm1531, %v1933, -inf
        %1943 = vmax.xlane.f32.xlu0 %v1942
        %v1944 = vpop.xlane.xlu0 %1943
        %v1945 = vsel %vm1531, %v1935, -inf
        %1946 = vmax.xlane.f32.xlu0 %v1945
        %v1947 = vpop.xlane.xlu0 %1946
        %v1948 = vsel %vm1531, %v1938, -inf
        %1949 = vmax.xlane.f32.xlu0 %v1948
        %v1950 = vpop.xlane.xlu0 %1949
        %v1951 = vsel %vm1531, %v1940, -inf
        %1952 = vmax.xlane.f32.xlu0 %v1951
        %v1953 = vpop.xlane.xlu0 %1952
        %v1954 = vsub.f32 %v1933, %v1944
        %v1955 = vsub.f32 %v1935, %v1947
        %v1956 = vsub.f32 %v1938, %v1950
        %v1957 = vsub.f32 %v1940, %v1953
        %v1958 = vmul.f32 %v1954, 1.442695
        %v1959 = vpow.pop %v1958
        %v1960 = vmul.f32 %v1955, 1.442695
        %v1961 = vpow.pop %v1960
        %v1962 = vmul.f32 %v1956, 1.442695
        %v1963 = vpow.pop %v1962
        %v1964 = vmul.f32 %v1957, 1.442695
        %v1965 = vpow.pop %v1964
        %v1966 = vsel %vm1531, %v1959, 0.0
        %1967 = vadd.xlane.f32.xlu0 %v1966
        %v1968 = vpop.xlane.xlu0 %1967
        %v1969 = vsel %vm1531, %v1961, 0.0
        %1970 = vadd.xlane.f32.xlu0 %v1969
        %v1971 = vpop.xlane.xlu0 %1970
        %v1972 = vsel %vm1531, %v1963, 0.0
        %1973 = vadd.xlane.f32.xlu0 %v1972
        %v1974 = vpop.xlane.xlu0 %1973
        %v1975 = vsel %vm1531, %v1965, 0.0
        %1976 = vadd.xlane.f32.xlu0 %v1975
        %v1977 = vpop.xlane.xlu0 %1976
        %v1978 = vpack.c.bf16 %v1961, %v1959
        %v1979 = vpack.c.bf16 %v1965, %v1963
        %1980 = vrot.lane.b32.xlu0 %v1586, 32
        %v1981 = vpop.permute.xlu0 %1980
        %1982 = vrot.lane.b32.xlu0 %v1587, 32
        %v1983 = vpop.permute.xlu0 %1982
        %1984 = vrot.lane.b32.xlu0 %v1588, 32
        %v1985 = vpop.permute.xlu0 %1984
        %1986 = vrot.lane.b32.xlu0 %v1589, 32
        %v1987 = vpop.permute.xlu0 %1986
        %v1993 = vsel %vm1531, %v1978, 0
        %v1996 = vsel %vm1531, %v1979, 0
        %1998 = vmatpush.bf16.msra.mxu0 0
        %1999 = vmatpush.bf16.msra.mxu0 0
        %2000 = vmatpush.bf16.msra.mxu0 0
        %2001 = vmatpush.bf16.msra.mxu0 0
        %2002 = vmatpush.bf16.msra.mxu0 %v1987
        %2003 = vmatpush.bf16.msra.mxu0 %v1985
        %2004 = vmatpush.bf16.msra.mxu0 %v1983
        %2005 = vmatpush.bf16.msra.mxu0 %v1981
        %2006 = vmatmul.bf16.gmra.mxu0 %v1993
        %v2007 = vpop.f32.mrf.mxu0
        %v2008 = vadd.f32 0.0, %v2007
        %v2009 = vpop.f32.mrf.mxu0
        %v2010 = vadd.f32 0.0, %v2009
        %2011 = vmatmul.bf16.gmra.mxu0 %v1996
        %v2012 = vpop.f32.mrf.mxu0
        %v2013 = vadd.f32 0.0, %v2012
        %v2014 = vpop.f32.mrf.mxu0
        %v2015 = vadd.f32 0.0, %v2014
        %2016 = vdwg.mxu0
        %v2017 = vrcp.pop %v1968
        %v2018 = vrcp.pop %v1971
        %v2019 = vrcp.pop %v1974
        %v2020 = vrcp.pop %v1977
        %v2021 = vmul.f32 %v2008, %v2017
        %v2022 = vmul.f32 %v2010, %v2018
        %v2023 = vmul.f32 %v2013, %v2019
        %v2024 = vmul.f32 %v2015, %v2020
        %2029 = vrot.lane.b32.xlu0 %v1757, 32
        %v2030 = vpop.permute.xlu0 %2029
        %2031 = vrot.lane.b32.xlu0 %v1758, 32
        %v2032 = vpop.permute.xlu0 %2031
        %2033 = vrot.lane.b32.xlu0 %v1759, 32
        %v2034 = vpop.permute.xlu0 %2033
        %2035 = vrot.lane.b32.xlu0 %v1760, 32
        %v2036 = vpop.permute.xlu0 %2035
        %2045 = vrot.lane.b32.xlu0 %v1889, 64
        %v2046 = vpop.permute.xlu0 %2045
        %2047 = vrot.lane.b32.xlu0 %v1890, 64
        %v2048 = vpop.permute.xlu0 %2047
        %2049 = vrot.lane.b32.xlu0 %v1891, 64
        %v2050 = vpop.permute.xlu0 %2049
        %2051 = vrot.lane.b32.xlu0 %v1892, 64
        %v2052 = vpop.permute.xlu0 %2051
        %2061 = vrot.lane.b32.xlu0 %v2021, 96
        %v2062 = vpop.permute.xlu0 %2061
        %2063 = vrot.lane.b32.xlu0 %v2022, 96
        %v2064 = vpop.permute.xlu0 %2063
        %2065 = vrot.lane.b32.xlu0 %v2023, 96
        %v2066 = vpop.permute.xlu0 %2065
        %2067 = vrot.lane.b32.xlu0 %v2024, 96
        %v2068 = vpop.permute.xlu0 %2067
        %v2073 = vsel %vm1493, %v1623, %v2030
        %v2074 = vsel %vm1493, %v1624, %v2032
        %v2075 = vsel %vm1493, %v1625, %v2034
        %v2076 = vsel %vm1493, %v1626, %v2036
        %v2077 = vsel %vm1531, %v2073, %v2046
        %v2078 = vsel %vm1531, %v2074, %v2048
        %v2079 = vsel %vm1531, %v2075, %v2050
        %v2080 = vsel %vm1531, %v2076, %v2052
        %vm2081 = vcmask 785408
        %v2082 = vsel %vm2081, %v2077, %v2062
        %v2083 = vsel %vm2081, %v2078, %v2064
        %v2084 = vsel %vm2081, %v2079, %v2066
        %v2085 = vsel %vm2081, %v2080, %v2068
        %v2086 = vpack.c.bf16 %v2083, %v2082
        %v2087 = vpack.c.bf16 %v2085, %v2084
        %v2088 = vld [vmem:[#allocation15] sm:$0xf]
        %v2089 = vld [vmem:[#allocation15 + $0x4] sm:$0xf]
        %v2090 = vld [vmem:[#allocation15 + $0x8] sm:$0xf]
        %v2091 = vld [vmem:[#allocation15 + $0xc] sm:$0xf]
        %v2092 = vld [vmem:[#allocation15 + $0x10] sm:$0xf]
        %v2093 = vld [vmem:[#allocation15 + $0x14] sm:$0xf]
        %v2094 = vld [vmem:[#allocation15 + $0x18] sm:$0xf]
        %v2095 = vld [vmem:[#allocation15 + $0x1c] sm:$0xf]
        %v2096 = vld [vmem:[#allocation15 + $0x20] sm:$0xf]
        %v2097 = vld [vmem:[#allocation15 + $0x24] sm:$0xf]
        %v2098 = vld [vmem:[#allocation15 + $0x28] sm:$0xf]
        %v2099 = vld [vmem:[#allocation15 + $0x2c] sm:$0xf]
        %v2100 = vld [vmem:[#allocation15 + $0x30] sm:$0xf]
        %v2101 = vld [vmem:[#allocation15 + $0x34] sm:$0xf]
        %v2102 = vld [vmem:[#allocation15 + $0x38] sm:$0xf]
        %v2103 = vld [vmem:[#allocation15 + $0x3c] sm:$0xf]
        %v2104 = vld [vmem:[%s11] sm:$0x1]
        %v2106 = vperm.slane %v2104, 0
        %v2124 = vunpack.c.l.b16 %v2088
        %v2125 = vunpack.c.l.b16 %v2089
        %v2126 = vunpack.c.l.b16 %v2090
        %v2127 = vunpack.c.l.b16 %v2091
        %v2128 = vunpack.c.l.b16 %v2092
        %v2129 = vunpack.c.l.b16 %v2093
        %v2130 = vunpack.c.l.b16 %v2094
        %v2131 = vunpack.c.l.b16 %v2095
        %v2132 = vunpack.c.l.b16 %v2096
        %v2133 = vunpack.c.l.b16 %v2097
        %v2134 = vunpack.c.l.b16 %v2098
        %v2135 = vunpack.c.l.b16 %v2099
        %v2136 = vunpack.c.l.b16 %v2100
        %v2137 = vunpack.c.l.b16 %v2101
        %v2138 = vunpack.c.l.b16 %v2102
        %v2139 = vunpack.c.l.b16 %v2103
        %v2140 = vpack.c.b16 %v2125, %v2124
        %v2141 = vpack.c.b16 %v2127, %v2126
        %v2142 = vpack.c.b16 %v2129, %v2128
        %v2143 = vpack.c.b16 %v2131, %v2130
        %v2144 = vpack.c.b16 %v2133, %v2132
        %v2145 = vpack.c.b16 %v2135, %v2134
        %v2146 = vpack.c.b16 %v2137, %v2136
        %v2147 = vpack.c.b16 %v2139, %v2138
        %2156 = vmatpush.bf16.msra.mxu0 %v2147
        %2157 = vmatpush.bf16.msra.mxu0 %v2146
        %2158 = vmatpush.bf16.msra.mxu0 %v2145
        %2159 = vmatpush.bf16.msra.mxu0 %v2144
        %2160 = vmatpush.bf16.msra.mxu0 %v2143
        %2161 = vmatpush.bf16.msra.mxu0 %v2142
        %2162 = vmatpush.bf16.msra.mxu0 %v2141
        %2163 = vmatpush.bf16.msra.mxu0 %v2140
        %2164 = vmatmul.bf16.gmra.mxu0 %v2086
        %v2165 = vpop.f32.mrf.mxu0
        %v2166 = vadd.f32 %v2106, %v2165
        %v2167 = vpop.f32.mrf.mxu0
        %v2168 = vadd.f32 %v2106, %v2167
        %2169 = vmatmul.bf16.gmra.mxu0 %v2087
        %v2170 = vpop.f32.mrf.mxu0
        %v2171 = vadd.f32 %v2106, %v2170
        %v2172 = vpop.f32.mrf.mxu0
        %v2173 = vadd.f32 %v2106, %v2172
        %2174 = vdwg.mxu0
        %v2175 = vadd.f32 %v2166, %v1252
        %v2176 = vadd.f32 %v2168, %v1253
        %v2177 = vadd.f32 %v2171, %v1254
        %v2178 = vadd.f32 %v2173, %v1255
        %v2179 = vld [vmem:[%s12] sm:$0x1]
        %v2180 = vld [vmem:[%s13] sm:$0x1]
        %2181 = vadd.xlane.f32.xlu0 %v2175
        %v2182 = vpop.xlane.xlu0 %2181
        %2183 = vadd.xlane.f32.xlu0 %v2176
        %v2184 = vpop.xlane.xlu0 %2183
        %2185 = vadd.xlane.f32.xlu0 %v2177
        %v2186 = vpop.xlane.xlu0 %2185
        %2187 = vadd.xlane.f32.xlu0 %v2178
        %v2188 = vpop.xlane.xlu0 %2187
        %v2189 = vmul.f32 %v2182, %v1272
        %v2190 = vmul.f32 %v2184, %v1272
        %v2191 = vmul.f32 %v2186, %v1272
        %v2192 = vmul.f32 %v2188, %v1272
        %v2193 = vsub.f32 %v2175, %v2189
        %v2194 = vsub.f32 %v2176, %v2190
        %v2195 = vsub.f32 %v2177, %v2191
        %v2196 = vsub.f32 %v2178, %v2192
        %v2197 = vmul.f32 %v2193, %v2193
        %v2198 = vmul.f32 %v2194, %v2194
        %v2199 = vmul.f32 %v2195, %v2195
        %v2200 = vmul.f32 %v2196, %v2196
        %2201 = vadd.xlane.f32.xlu0 %v2197
        %v2202 = vpop.xlane.xlu0 %2201
        %2203 = vadd.xlane.f32.xlu0 %v2198
        %v2204 = vpop.xlane.xlu0 %2203
        %2205 = vadd.xlane.f32.xlu0 %v2199
        %v2206 = vpop.xlane.xlu0 %2205
        %2207 = vadd.xlane.f32.xlu0 %v2200
        %v2208 = vpop.xlane.xlu0 %2207
        %v2209 = vmul.f32 %v2202, %v1272
        %v2210 = vmul.f32 %v2204, %v1272
        %v2211 = vmul.f32 %v2206, %v1272
        %v2212 = vmul.f32 %v2208, %v1272
        %v2213 = vadd.f32 %v2209, 1e-06
        %v2214 = vadd.f32 %v2210, 1e-06
        %v2215 = vadd.f32 %v2211, 1e-06
        %v2216 = vadd.f32 %v2212, 1e-06
        %v2217 = vrsqrt.pop %v2213
        %v2218 = vmul.f32 %v2217, %v2213
        %v2219 = vmul.f32 %v2218, %v2217
        %v2220 = vmul.f32 0.5, %v2219
        %v2221 = vsub.f32 1.5, %v2220
        %v2222 = vmul.f32 %v2217, %v2221
        %vm2223 = vweird.f32 %v2213
        %vm2224 = vweird.f32 %v2217
        %vm2225 = vmor %vm2223, %vm2224
        %v2226 = vsel %vm2225, %v2217, %v2222
        %v2227 = vrsqrt.pop %v2214
        %v2228 = vmul.f32 %v2227, %v2214
        %v2229 = vmul.f32 %v2228, %v2227
        %v2230 = vmul.f32 0.5, %v2229
        %v2231 = vsub.f32 1.5, %v2230
        %v2232 = vmul.f32 %v2227, %v2231
        %vm2233 = vweird.f32 %v2214
        %vm2234 = vweird.f32 %v2227
        %vm2235 = vmor %vm2233, %vm2234
        %v2236 = vsel %vm2235, %v2227, %v2232
        %v2237 = vrsqrt.pop %v2215
        %v2238 = vmul.f32 %v2237, %v2215
        %v2239 = vmul.f32 %v2238, %v2237
        %v2240 = vmul.f32 0.5, %v2239
        %v2241 = vsub.f32 1.5, %v2240
        %v2242 = vmul.f32 %v2237, %v2241
        %vm2243 = vweird.f32 %v2215
        %vm2244 = vweird.f32 %v2237
        %vm2245 = vmor %vm2243, %vm2244
        %v2246 = vsel %vm2245, %v2237, %v2242
        %v2247 = vrsqrt.pop %v2216
        %v2248 = vmul.f32 %v2247, %v2216
        %v2249 = vmul.f32 %v2248, %v2247
        %v2250 = vmul.f32 0.5, %v2249
        %v2251 = vsub.f32 1.5, %v2250
        %v2252 = vmul.f32 %v2247, %v2251
        %vm2253 = vweird.f32 %v2216
        %vm2254 = vweird.f32 %v2247
        %vm2255 = vmor %vm2253, %vm2254
        %v2256 = vsel %vm2255, %v2247, %v2252
        %v2257 = vmul.f32 %v2193, %v2226
        %v2258 = vmul.f32 %v2194, %v2236
        %v2259 = vmul.f32 %v2195, %v2246
        %v2260 = vmul.f32 %v2196, %v2256
        %v2262 = vperm.slane %v2179, 0
        %v2264 = vmul.f32 %v2257, %v2262
        %v2265 = vmul.f32 %v2258, %v2262
        %v2266 = vmul.f32 %v2259, %v2262
        %v2267 = vmul.f32 %v2260, %v2262
        %v2269 = vperm.slane %v2180, 0
        %v2271 = vadd.f32 %v2264, %v2269
        %v2272 = vadd.f32 %v2265, %v2269
        %v2273 = vadd.f32 %v2266, %v2269
        %v2274 = vadd.f32 %v2267, %v2269
        %v2275 = vpack.c.bf16 %v2272, %v2271
        %v2276 = vpack.c.bf16 %v2274, %v2273
        %v2277 = vld [vmem:[#allocation16] sm:$0xff]
        %v2278 = vld [vmem:[#allocation16 + $0x8] sm:$0xff]
        %v2279 = vld [vmem:[#allocation16 + $0x10] sm:$0xff]
        %v2280 = vld [vmem:[#allocation16 + $0x18] sm:$0xff]
        %v2281 = vld [vmem:[#allocation16 + $0x20] sm:$0xff]
        %v2282 = vld [vmem:[#allocation16 + $0x28] sm:$0xff]
        %v2283 = vld [vmem:[#allocation16 + $0x30] sm:$0xff]
        %v2284 = vld [vmem:[#allocation16 + $0x38] sm:$0xff]
        %v2285 = vld [vmem:[#allocation16 + $0x40] sm:$0xff]
        %v2286 = vld [vmem:[#allocation16 + $0x48] sm:$0xff]
        %v2287 = vld [vmem:[#allocation16 + $0x50] sm:$0xff]
        %v2288 = vld [vmem:[#allocation16 + $0x58] sm:$0xff]
        %v2289 = vld [vmem:[#allocation16 + $0x60] sm:$0xff]
        %v2290 = vld [vmem:[#allocation16 + $0x68] sm:$0xff]
        %v2291 = vld [vmem:[#allocation16 + $0x70] sm:$0xff]
        %v2292 = vld [vmem:[#allocation16 + $0x78] sm:$0xff]
        %v2293 = vld [vmem:[%s15] sm:$0x3]
        %v2295 = vperm.slane %v2293, 0
        %v2296 = vperm.slane %v2293, 1
        %v2315 = vunpack.c.l.b16 %v2277
        %v2316 = vunpack.c.h.b16 %v2277
        %v2317 = vunpack.c.l.b16 %v2278
        %v2318 = vunpack.c.h.b16 %v2278
        %v2319 = vunpack.c.l.b16 %v2279
        %v2320 = vunpack.c.h.b16 %v2279
        %v2321 = vunpack.c.l.b16 %v2280
        %v2322 = vunpack.c.h.b16 %v2280
        %v2323 = vunpack.c.l.b16 %v2281
        %v2324 = vunpack.c.h.b16 %v2281
        %v2325 = vunpack.c.l.b16 %v2282
        %v2326 = vunpack.c.h.b16 %v2282
        %v2327 = vunpack.c.l.b16 %v2283
        %v2328 = vunpack.c.h.b16 %v2283
        %v2329 = vunpack.c.l.b16 %v2284
        %v2330 = vunpack.c.h.b16 %v2284
        %v2331 = vunpack.c.l.b16 %v2285
        %v2332 = vunpack.c.h.b16 %v2285
        %v2333 = vunpack.c.l.b16 %v2286
        %v2334 = vunpack.c.h.b16 %v2286
        %v2335 = vunpack.c.l.b16 %v2287
        %v2336 = vunpack.c.h.b16 %v2287
        %v2337 = vunpack.c.l.b16 %v2288
        %v2338 = vunpack.c.h.b16 %v2288
        %v2339 = vunpack.c.l.b16 %v2289
        %v2340 = vunpack.c.h.b16 %v2289
        %v2341 = vunpack.c.l.b16 %v2290
        %v2342 = vunpack.c.h.b16 %v2290
        %v2343 = vunpack.c.l.b16 %v2291
        %v2344 = vunpack.c.h.b16 %v2291
        %v2345 = vunpack.c.l.b16 %v2292
        %v2346 = vunpack.c.h.b16 %v2292
        %v2347 = vpack.c.b16 %v2317, %v2315
        %v2348 = vpack.c.b16 %v2318, %v2316
        %v2349 = vpack.c.b16 %v2321, %v2319
        %v2350 = vpack.c.b16 %v2322, %v2320
        %v2351 = vpack.c.b16 %v2325, %v2323
        %v2352 = vpack.c.b16 %v2326, %v2324
        %v2353 = vpack.c.b16 %v2329, %v2327
        %v2354 = vpack.c.b16 %v2330, %v2328
        %v2355 = vpack.c.b16 %v2333, %v2331
        %v2356 = vpack.c.b16 %v2334, %v2332
        %v2357 = vpack.c.b16 %v2337, %v2335
        %v2358 = vpack.c.b16 %v2338, %v2336
        %v2359 = vpack.c.b16 %v2341, %v2339
        %v2360 = vpack.c.b16 %v2342, %v2340
        %v2361 = vpack.c.b16 %v2345, %v2343
        %v2362 = vpack.c.b16 %v2346, %v2344
        %2379 = vmatpush.bf16.msra.mxu0 %v2361
        %2380 = vmatpush.bf16.msra.mxu0 %v2359
        %2381 = vmatpush.bf16.msra.mxu0 %v2357
        %2382 = vmatpush.bf16.msra.mxu0 %v2355
        %2383 = vmatpush.bf16.msra.mxu0 %v2353
        %2384 = vmatpush.bf16.msra.mxu0 %v2351
        %2385 = vmatpush.bf16.msra.mxu0 %v2349
        %2386 = vmatpush.bf16.msra.mxu0 %v2347
        %2387 = vmatmul.bf16.gmra.mxu0 %v2275
        %v2388 = vpop.f32.mrf.mxu0
        %v2389 = vadd.f32 %v2295, %v2388
        %v2390 = vpop.f32.mrf.mxu0
        %v2391 = vadd.f32 %v2295, %v2390
        %2392 = vmatmul.bf16.gmra.mxu0 %v2276
        %v2393 = vpop.f32.mrf.mxu0
        %v2394 = vadd.f32 %v2295, %v2393
        %v2395 = vpop.f32.mrf.mxu0
        %v2396 = vadd.f32 %v2295, %v2395
        %2397 = vdwg.mxu0
        %2398 = vmatpush.bf16.msra.mxu0 %v2362
        %2399 = vmatpush.bf16.msra.mxu0 %v2360
        %2400 = vmatpush.bf16.msra.mxu0 %v2358
        %2401 = vmatpush.bf16.msra.mxu0 %v2356
        %2402 = vmatpush.bf16.msra.mxu0 %v2354
        %2403 = vmatpush.bf16.msra.mxu0 %v2352
        %2404 = vmatpush.bf16.msra.mxu0 %v2350
        %2405 = vmatpush.bf16.msra.mxu0 %v2348
        %2406 = vmatmul.bf16.gmra.mxu0 %v2275
        %v2407 = vpop.f32.mrf.mxu0
        %v2408 = vadd.f32 %v2296, %v2407
        %v2409 = vpop.f32.mrf.mxu0
        %v2410 = vadd.f32 %v2296, %v2409
        %2411 = vmatmul.bf16.gmra.mxu0 %v2276
        %v2412 = vpop.f32.mrf.mxu0
        %v2413 = vadd.f32 %v2296, %v2412
        %v2414 = vpop.f32.mrf.mxu0
        %v2415 = vadd.f32 %v2296, %v2414
        %2416 = vdwg.mxu0
        %v2417 = vmax.f32 %v2389, 0.0
        %v2418 = vmax.f32 %v2408, 0.0
        %v2419 = vmax.f32 %v2391, 0.0
        %v2420 = vmax.f32 %v2410, 0.0
        %v2421 = vmax.f32 %v2394, 0.0
        %v2422 = vmax.f32 %v2413, 0.0
        %v2423 = vmax.f32 %v2396, 0.0
        %v2424 = vmax.f32 %v2415, 0.0
        %v2425 = vpack.c.bf16 %v2419, %v2417
        %v2426 = vpack.c.bf16 %v2420, %v2418
        %v2427 = vpack.c.bf16 %v2423, %v2421
        %v2428 = vpack.c.bf16 %v2424, %v2422
        %v2429 = vld [vmem:[#allocation18] sm:$0xf]
        %v2430 = vld [vmem:[#allocation18 + $0x4] sm:$0xf]
        %v2431 = vld [vmem:[#allocation18 + $0x8] sm:$0xf]
        %v2432 = vld [vmem:[#allocation18 + $0xc] sm:$0xf]
        %v2433 = vld [vmem:[#allocation18 + $0x10] sm:$0xf]
        %v2434 = vld [vmem:[#allocation18 + $0x14] sm:$0xf]
        %v2435 = vld [vmem:[#allocation18 + $0x18] sm:$0xf]
        %v2436 = vld [vmem:[#allocation18 + $0x1c] sm:$0xf]
        %v2437 = vld [vmem:[#allocation18 + $0x20] sm:$0xf]
        %v2438 = vld [vmem:[#allocation18 + $0x24] sm:$0xf]
        %v2439 = vld [vmem:[#allocation18 + $0x28] sm:$0xf]
        %v2440 = vld [vmem:[#allocation18 + $0x2c] sm:$0xf]
        %v2441 = vld [vmem:[#allocation18 + $0x30] sm:$0xf]
        %v2442 = vld [vmem:[#allocation18 + $0x34] sm:$0xf]
        %v2443 = vld [vmem:[#allocation18 + $0x38] sm:$0xf]
        %v2444 = vld [vmem:[#allocation18 + $0x3c] sm:$0xf]
        %v2445 = vld [vmem:[#allocation18 + $0x40] sm:$0xf]
        %v2446 = vld [vmem:[#allocation18 + $0x44] sm:$0xf]
        %v2447 = vld [vmem:[#allocation18 + $0x48] sm:$0xf]
        %v2448 = vld [vmem:[#allocation18 + $0x4c] sm:$0xf]
        %v2449 = vld [vmem:[#allocation18 + $0x50] sm:$0xf]
        %v2450 = vld [vmem:[#allocation18 + $0x54] sm:$0xf]
        %v2451 = vld [vmem:[#allocation18 + $0x58] sm:$0xf]
        %v2452 = vld [vmem:[#allocation18 + $0x5c] sm:$0xf]
        %v2453 = vld [vmem:[#allocation18 + $0x60] sm:$0xf]
        %v2454 = vld [vmem:[#allocation18 + $0x64] sm:$0xf]
        %v2455 = vld [vmem:[#allocation18 + $0x68] sm:$0xf]
        %v2456 = vld [vmem:[#allocation18 + $0x6c] sm:$0xf]
        %v2457 = vld [vmem:[#allocation18 + $0x70] sm:$0xf]
        %v2458 = vld [vmem:[#allocation18 + $0x74] sm:$0xf]
        %v2459 = vld [vmem:[#allocation18 + $0x78] sm:$0xf]
        %v2460 = vld [vmem:[#allocation18 + $0x7c] sm:$0xf]
        %v2461 = vld [vmem:[%s17] sm:$0x1]
        %v2463 = vperm.slane %v2461, 0
        %v2497 = vunpack.c.l.b16 %v2429
        %v2498 = vunpack.c.l.b16 %v2430
        %v2499 = vunpack.c.l.b16 %v2431
        %v2500 = vunpack.c.l.b16 %v2432
        %v2501 = vunpack.c.l.b16 %v2433
        %v2502 = vunpack.c.l.b16 %v2434
        %v2503 = vunpack.c.l.b16 %v2435
        %v2504 = vunpack.c.l.b16 %v2436
        %v2505 = vunpack.c.l.b16 %v2437
        %v2506 = vunpack.c.l.b16 %v2438
        %v2507 = vunpack.c.l.b16 %v2439
        %v2508 = vunpack.c.l.b16 %v2440
        %v2509 = vunpack.c.l.b16 %v2441
        %v2510 = vunpack.c.l.b16 %v2442
        %v2511 = vunpack.c.l.b16 %v2443
        %v2512 = vunpack.c.l.b16 %v2444
        %v2513 = vunpack.c.l.b16 %v2445
        %v2514 = vunpack.c.l.b16 %v2446
        %v2515 = vunpack.c.l.b16 %v2447
        %v2516 = vunpack.c.l.b16 %v2448
        %v2517 = vunpack.c.l.b16 %v2449
        %v2518 = vunpack.c.l.b16 %v2450
        %v2519 = vunpack.c.l.b16 %v2451
        %v2520 = vunpack.c.l.b16 %v2452
        %v2521 = vunpack.c.l.b16 %v2453
        %v2522 = vunpack.c.l.b16 %v2454
        %v2523 = vunpack.c.l.b16 %v2455
        %v2524 = vunpack.c.l.b16 %v2456
        %v2525 = vunpack.c.l.b16 %v2457
        %v2526 = vunpack.c.l.b16 %v2458
        %v2527 = vunpack.c.l.b16 %v2459
        %v2528 = vunpack.c.l.b16 %v2460
        %v2529 = vpack.c.b16 %v2498, %v2497
        %v2530 = vpack.c.b16 %v2500, %v2499
        %v2531 = vpack.c.b16 %v2502, %v2501
        %v2532 = vpack.c.b16 %v2504, %v2503
        %v2533 = vpack.c.b16 %v2506, %v2505
        %v2534 = vpack.c.b16 %v2508, %v2507
        %v2535 = vpack.c.b16 %v2510, %v2509
        %v2536 = vpack.c.b16 %v2512, %v2511
        %v2537 = vpack.c.b16 %v2514, %v2513
        %v2538 = vpack.c.b16 %v2516, %v2515
        %v2539 = vpack.c.b16 %v2518, %v2517
        %v2540 = vpack.c.b16 %v2520, %v2519
        %v2541 = vpack.c.b16 %v2522, %v2521
        %v2542 = vpack.c.b16 %v2524, %v2523
        %v2543 = vpack.c.b16 %v2526, %v2525
        %v2544 = vpack.c.b16 %v2528, %v2527
        %2561 = vmatpush.bf16.msra.mxu0 %v2536
        %2562 = vmatpush.bf16.msra.mxu0 %v2535
        %2563 = vmatpush.bf16.msra.mxu0 %v2534
        %2564 = vmatpush.bf16.msra.mxu0 %v2533
        %2565 = vmatpush.bf16.msra.mxu0 %v2532
        %2566 = vmatpush.bf16.msra.mxu0 %v2531
        %2567 = vmatpush.bf16.msra.mxu0 %v2530
        %2568 = vmatpush.bf16.msra.mxu0 %v2529
        %2569 = vmatmul.bf16.gmra.mxu0 %v2425
        %v2570 = vpop.f32.mrf.mxu0
        %v2571 = vadd.f32 %v2463, %v2570
        %v2572 = vpop.f32.mrf.mxu0
        %v2573 = vadd.f32 %v2463, %v2572
        %2574 = vmatmul.bf16.gmra.mxu0 %v2427
        %v2575 = vpop.f32.mrf.mxu0
        %v2576 = vadd.f32 %v2463, %v2575
        %v2577 = vpop.f32.mrf.mxu0
        %v2578 = vadd.f32 %v2463, %v2577
        %2579 = vdwg.mxu0
        %2580 = vmatpush.bf16.msra.mxu0 %v2544
        %2581 = vmatpush.bf16.msra.mxu0 %v2543
        %2582 = vmatpush.bf16.msra.mxu0 %v2542
        %2583 = vmatpush.bf16.msra.mxu0 %v2541
        %2584 = vmatpush.bf16.msra.mxu0 %v2540
        %2585 = vmatpush.bf16.msra.mxu0 %v2539
        %2586 = vmatpush.bf16.msra.mxu0 %v2538
        %2587 = vmatpush.bf16.msra.mxu0 %v2537
        %2588 = vmatmul.bf16.gmra.mxu0 %v2426
        %v2589 = vpop.f32.mrf.mxu0
        %v2590 = vadd.f32 %v2571, %v2589
        %v2591 = vpop.f32.mrf.mxu0
        %v2592 = vadd.f32 %v2573, %v2591
        %2593 = vmatmul.bf16.gmra.mxu0 %v2428
        %v2594 = vpop.f32.mrf.mxu0
        %v2595 = vadd.f32 %v2576, %v2594
        %v2596 = vpop.f32.mrf.mxu0
        %v2597 = vadd.f32 %v2578, %v2596
        %2598 = vdwg.mxu0
        %v2599 = vadd.f32 %v2590, %v2175
        %v2600 = vadd.f32 %v2592, %v2176
        %v2601 = vadd.f32 %v2595, %v2177
        %v2602 = vadd.f32 %v2597, %v2178
        %2603 = vst [vmem:[%s811] sm:$0xff] %v2599
        %2604 = vst [vmem:[%s811 + $0x8] sm:$0xff] %v2600
        %2605 = vst [vmem:[%s811 + $0x10] sm:$0xff] %v2601
        %2606 = vst [vmem:[%s811 + $0x18] sm:$0xff] %v2602
        %s2607 = sand.u32 %s495, 1
        %s2608 = scalar_lea.sflag [#allocation6], %s2607
        %s2609 = sand.u32 %s495, 1
        %s2610 = smul.addr %s2609, 32
        %s2611 = scalar_lea.vmem [#allocation19], %s2610
        // Predicated region
        $region141: #{tpu_custom_call.1} parent=99 // pred_check
          %p2612 = pneg %p505
        $region142: #{tpu_custom_call.1} parent=99 // pred_check_branch
          %2614 = sbr.rel (%p2612) target = $region144
        $region143: #{tpu_custom_call.1} parent=99 // pred_region
          %s2615 = smul.u32 4, %s48
          %2617 = vsyncadd %s2608, 0
          %s2618 = smul.addr %s47, 8
          %s2619 = sadd.s32 %s2615, %s2618
          %s2620 = smul.addr %s2619, 8
          %s2621 = scalar_lea.hbm %s20, %s2620
          %s2622 = sshll.u32 %s2611, 4
          %s2623 = int_to_ptr.vmem [resolvable:$true] %s2622
          %s2624 = sshll.u32 %s2621, 4
          %s2625 = int_to_ptr.hbm [resolvable:$true] %s2624
          %2630 = dma.vmem_to_hbm [thread:$0]  %s2623, 512, %s2625, %s2608, 128, 128, 8
        $region144: #{tpu_custom_call.1} parent=99 // pred_fallthru
          _
      $region100: #{tpu_custom_call.1} parent=5 // pred_fallthru
        _
      %p2631 = scmp.le.s32.totalorder 2, %s38
      // Predicated region
      $region145: #{tpu_custom_call.1} parent=5 // pred_check
        %p2632 = pneg %p2631
      $region146: #{tpu_custom_call.1} parent=5 // pred_check_branch
        %2634 = sbr.rel (%p2632) target = $region148
      $region147: #{tpu_custom_call.1} parent=5 // pred_region
        %s2635 = ssub.s32 %s38, 2
        // Predicated region
        $region149: #{tpu_custom_call.1} parent=147 // pred_check
          %p2636 = pneg %p511
        $region150: #{tpu_custom_call.1} parent=147 // pred_check_branch
          %2638 = sbr.rel (%p2636) target = $region152
        $region151: #{tpu_custom_call.1} parent=147 // pred_region
          %s2639 = sand.u32 %s496, 1
          %s2640 = scalar_lea.sflag [#allocation6], %s2639
          %s2641 = sand.u32 %s496, 1
          %s2642 = smul.addr %s2641, 32
          %s2643 = scalar_lea.vmem [#allocation19], %s2642
          %2645 = dma.done %s2640, 512
        $region152: #{tpu_custom_call.1} parent=147 // pred_fallthru
          _
      $region148: #{tpu_custom_call.1} parent=5 // pred_fallthru
        _
    $region6: #{tpu_custom_call.1} parent=1 // loop_footer
      %s42 = sadd.s32 1, %s38
    $region7: #{tpu_custom_call.1} parent=1 // loop_footer_branch
      %37 = sbr.rel target = $region3
    $region8: #{tpu_custom_call.1} parent=1 // loop_exit
      _
    %2646 = vsyncpa [#allocation5], 1
    %s2647 = scalar_lea.sflag [#allocation5], 1
    %2648 = vsyncpa %s2647, 1
    %2649 = vsyncpa [#allocation8], 1
    %s2650 = scalar_lea.sflag [#allocation8], 1
    %2651 = vsyncpa %s2650, 1
    %2652 = vsyncpa [#allocation11], 1
    %2653 = vsyncpa [#allocation14], 1
    %2654 = vsyncpa [#allocation17], 1
    %2655 = vsyncpa [#allocation6], 1
    %s2656 = scalar_lea.sflag [#allocation6], 1
    %2657 = vsyncpa %s2656, 1

</llo_original>
